<compile_context>
chip_gen: v6e
topology: v6e:2x2x1
jax: 0.10.0
libtpu: 0.0.40
codegen_flags: <defaults>
</compile_context>

<pallas_src>
import jax
import jax.numpy as jnp
from jax.experimental import pallas as pl
from jax.experimental.pallas import tpu as pltpu

EPS = 1e-5            # InstanceNorm2d eps (nnU-Net default)
LEAKY_SLOPE = 0.01    # nn.LeakyReLU default negative_slope


# --------------------------------------------------------------------------
# Fused per-stage Pallas kernel
# --------------------------------------------------------------------------

def _make_stage_kernel(sh, sw, kh, kw, n_convs, has_seg):
    assert n_convs >= 1

    def kernel(*refs):
        lres_ref, skip_ref, wt_ref, bt_ref = refs[0], refs[1], refs[2], refs[3]
        conv_refs = refs[4:4 + 3 * n_convs]
        pos = 4 + 3 * n_convs
        if has_seg:
            ws_ref, bs_ref = refs[pos], refs[pos + 1]
            pos += 2
        out_x_ref = refs[pos]
        if has_seg:
            out_seg_ref = refs[pos + 1]

        f32 = jnp.float32
        bf16 = jnp.bfloat16
        _, h, w, cin = lres_ref.shape
        _, H, W, cs = skip_ref.shape

        # ---- ConvTranspose2d (kernel == stride): one bf16 MXU matmul -------
        x2d = lres_ref[0].reshape(h * w, cin)                         # bf16
        y = jnp.dot(x2d, wt_ref[...], preferred_element_type=f32) + bt_ref[...]
        # columns of y are ordered (di, dj, c_out)

        # ---- in-VMEM sub-pixel interleave (replaces XLA reshape/transpose) --
        # only lane-preserving reshapes + outer-dim concats are used.
        row_groups = []
        for di in range(sh):
            cols = []
            for dj in range(sw):
                dd = di * sw + dj
                cols.append(y[:, dd * cs:(dd + 1) * cs].reshape(h * w, 1, 1, cs))
            blk = cols[0] if sw == 1 else jnp.concatenate(cols, axis=1)
            row_groups.append(blk.reshape(h, w * sw, cs))             # rows di::sh
        if sh == 1:
            up = row_groups[0]
        else:
            up = jnp.concatenate([r[:, None] for r in row_groups], axis=1)
            up = up.reshape(h * sh, w * sw, cs)                       # (H, W, cs) f32

        # ---- channel concat with the skip, in VMEM; activations stay bf16 ---
        x = jnp.concatenate([up.astype(bf16), skip_ref[0]], axis=-1)  # (H, W, 2cs) bf16

        ph, pw = (kh - 1) // 2, (kw - 1) // 2

        def pad_hw(xv):
            # 'same' zero padding, built with outer-dim concats only.
            Hh, Ww, Ci = xv.shape
            if pw > 0:
                x4 = xv.reshape(Hh, Ww, 1, Ci)
                zc = jnp.zeros((Hh, pw, 1, Ci), xv.dtype)
                xv = jnp.concatenate([zc, x4, zc], axis=1).reshape(Hh, Ww + 2 * pw, Ci)
            if ph > 0:
                zr = jnp.zeros((ph, xv.shape[1], xv.shape[2]), xv.dtype)
                xv = jnp.concatenate([zr, xv, zr], axis=0)
            return xv

        for ci in range(n_convs):
            wm_ref, g_ref, b_ref = conv_refs[3 * ci:3 * ci + 3]
            Ci = x.shape[-1]
            xp = pad_hw(x)                                            # bf16
            # im2col: one wide matmul (K = kh*kw*Ci) instead of kh*kw tiny-K dots.
            taps = [xp[i:i + H, j:j + W, :].reshape(H * W, Ci)
                    for i in range(kh) for j in range(kw)]
            patches = taps[0] if len(taps) == 1 else jnp.concatenate(taps, axis=-1)
            acc = jnp.dot(patches, wm_ref[...],
                          preferred_element_type=f32)                 # (H*W, cs) f32
            # conv bias omitted: exactly cancelled by the InstanceNorm mean subtraction
            # InstanceNorm2d (biased var, single pass) + affine, all in f32.
            m = jnp.mean(acc, axis=0, keepdims=True)
            msq = jnp.mean(acc * acc, axis=0, keepdims=True)
            var = jnp.maximum(msq - m * m, 0.0)
            inv = jax.lax.rsqrt(var + EPS)                            # EUP slot
            scale = inv * g_ref[...]
            shift = b_ref[...] - m * scale
            yv = acc * scale + shift
            # Dropout2d: identity in eval mode.
            yv = jnp.where(yv > 0, yv, LEAKY_SLOPE * yv)              # LeakyReLU
            x = yv.astype(bf16).reshape(H, W, cs)                     # bf16 for next block

        out_x_ref[0] = x

        if has_seg:
            ncp = ws_ref.shape[1]
            seg = jnp.dot(x.reshape(H * W, cs), ws_ref[...],
                          preferred_element_type=f32) + bs_ref[...]
            out_seg_ref[0] = seg.reshape(H, W, ncp)                   # lane-dense (128) store

    return kernel


def pallas_decoder_stage(lres, skip, p, ncls_pad, has_seg):
    B, h, w, cin = lres.shape
    _, H, W, cs = skip.shape
    sh, sw, kh, kw = p['sh'], p['sw'], p['kh'], p['kw']
    n_convs = len(p['convs'])
    kernel = _make_stage_kernel(sh, sw, kh, kw, n_convs, has_seg)

    args = [lres, skip, p['wt'], p['bt']]
    in_specs = [
        pl.BlockSpec((1, h, w, cin), lambda i: (i, 0, 0, 0)),
        pl.BlockSpec((1, H, W, cs), lambda i: (i, 0, 0, 0)),
        pl.BlockSpec(p['wt'].shape, lambda i: (0, 0)),
        pl.BlockSpec(p['bt'].shape, lambda i: (0, 0)),
    ]
    for (wm, _cb, g, b) in p['convs']:
        args += [wm, g, b]
        in_specs += [pl.BlockSpec(wm.shape, lambda i: (0, 0)),
                     pl.BlockSpec(g.shape, lambda i: (0, 0)),
                     pl.BlockSpec(b.shape, lambda i: (0, 0))]

    if has_seg:
        args += [p['ws'], p['bs']]
        in_specs += [pl.BlockSpec(p['ws'].shape, lambda i: (0, 0)),
                     pl.BlockSpec(p['bs'].shape, lambda i: (0, 0))]
        out_shape = (jax.ShapeDtypeStruct((B, H, W, cs), jnp.bfloat16),
                     jax.ShapeDtypeStruct((B, H, W, ncls_pad), jnp.float32))
        out_specs = (pl.BlockSpec((1, H, W, cs), lambda i: (i, 0, 0, 0)),
                     pl.BlockSpec((1, H, W, ncls_pad), lambda i: (i, 0, 0, 0)))
    else:
        out_shape = jax.ShapeDtypeStruct((B, H, W, cs), jnp.bfloat16)
        out_specs = pl.BlockSpec((1, H, W, cs), lambda i: (i, 0, 0, 0))

    return pl.pallas_call(
        kernel,
        out_shape=out_shape,
        grid=(B,),
        in_specs=in_specs,
        out_specs=out_specs,
        compiler_params=pltpu.CompilerParams(dimension_semantics=("parallel",)),
    )(*args)


# --------------------------------------------------------------------------
# Decoder driver (same control flow as UNetDecoderDropout.forward)
# --------------------------------------------------------------------------

def decoder_forward_pallas(skips, params, num_classes, ncls_pad,
                           deep_supervision=False):
    lres = skips[-1]
    n = len(params)
    segs = []
    for s in range(n):
        has_seg = deep_supervision or (s == n - 1)
        outs = pallas_decoder_stage(lres, skips[-(s + 2)], params[s],
                                    ncls_pad, has_seg)
        if has_seg:
            x, seg = outs
            segs.append(seg[..., :num_classes])
        else:
            x = outs
        lres = x
    segs = segs[::-1]
    return segs if deep_supervision else segs[0]


# --------------------------------------------------------------------------
# Pure-JAX reference (same math & quantization points; keeps the conv bias to
# demonstrate it is cancelled by InstanceNorm)
# --------------------------------------------------------------------------

def _ref_stage(lres, skip, p, has_seg):
    f32, bf16 = jnp.float32, jnp.bfloat16
    B, h, w, cin = lres.shape
    _, H, W, cs = skip.shape
    sh, sw, kh, kw = p['sh'], p['sw'], p['kh'], p['kw']

    y = jnp.einsum('bpc,ck->bpk', lres.reshape(B, h * w, cin).astype(bf16),
                   p['wt'], preferred_element_type=f32) + p['bt']
    y = y.reshape(B, h, w, sh, sw, cs).transpose(0, 1, 3, 2, 4, 5)
    y = y.reshape(B, H, W, cs)
    x = jnp.concatenate([y.astype(bf16), skip.astype(bf16)], axis=-1)

    ph, pw = (kh - 1) // 2, (kw - 1) // 2
    for (wm, cb, g, b) in p['convs']:
        Ci = x.shape[-1]
        xp = jnp.pad(x.astype(f32), ((0, 0), (ph, ph), (pw, pw), (0, 0)))
        taps = [xp[:, i:i + H, j:j + W, :].reshape(B, H * W, Ci)
                for i in range(kh) for j in range(kw)]
        patches = jnp.concatenate(taps, axis=-1).astype(bf16)
        acc = jnp.einsum('bpk,kc->bpc', patches, wm, preferred_element_type=f32)
        acc = acc + cb                       # conv bias (cancelled by IN below)
        m = acc.mean(axis=1, keepdims=True)
        v = ((acc - m) ** 2).mean(axis=1, keepdims=True)
        yv = (acc - m) * jax.lax.rsqrt(v + EPS) * g + b
        yv = jnp.where(yv > 0, yv, LEAKY_SLOPE * yv)
        x = yv.astype(bf16).reshape(B, H, W, cs)

    seg = None
    if has_seg:
        seg = jnp.einsum('bpc,ck->bpk', x.reshape(B, H * W, cs), p['ws'],
                         preferred_element_type=f32) + p['bs']
        seg = seg.reshape(B, H, W, -1)
    return x, seg


def decoder_forward_ref(skips, params, num_classes, deep_supervision=False):
    lres = skips[-1]
    n = len(params)
    segs = []
    for s in range(n):
        has_seg = deep_supervision or (s == n - 1)
        x, seg = _ref_stage(lres, skips[-(s + 2)], params[s], has_seg)
        if has_seg:
            segs.append(seg[..., :num_classes])
        lres = x
    segs = segs[::-1]
    return segs if deep_supervision else segs[0]


# --------------------------------------------------------------------------
# Deterministic synthetic parameters (shapes follow UNetDecoderDropout.__init__)
# --------------------------------------------------------------------------

def init_decoder_params(key, channels, strides, kernel_sizes, n_conv_per_stage,
                        num_classes, ncls_pad):
    n_stages = len(channels)
    keys = iter(jax.random.split(key, 512))
    params = []
    for s in range(1, n_stages):
        cin_below = channels[-s]              # input_features_below
        cskip = channels[-(s + 1)]            # input_features_skip
        sh, sw = strides[-s]
        kh, kw = kernel_sizes[-(s + 1)]
        # ConvTranspose2d weight (Cin, Cout, sh, sw) stored as (Cin, sh*sw*Cout),
        # columns ordered (di, dj, c_out); bf16 (bf16 MXU, half the HBM bytes).
        wt = (jax.random.normal(next(keys), (cin_below, sh * sw * cskip),
                                jnp.float32) * 0.1).astype(jnp.bfloat16)
        bt_c = jax.random.normal(next(keys), (1, cskip), jnp.float32) * 0.1
        bt = jnp.tile(bt_c, (1, sh * sw))     # f32, matching the column order
        convs = []
        cin = 2 * cskip                       # after concat with skip
        for _ in range(n_conv_per_stage):
            # Conv2d weight (Cout, Cin, kh, kw) stored im2col-style as
            # (kh*kw*Cin, Cout): row (i*kw+j)*Cin + c_in  <->  W_torch[c_out, c_in, i, j]
            wm = (jax.random.normal(next(keys), (kh * kw * cin, cskip),
                                    jnp.float32) * 0.1).astype(jnp.bfloat16)
            cb = jax.random.normal(next(keys), (1, cskip), jnp.float32) * 0.05
            g = 1.0 + 0.1 * jax.random.normal(next(keys), (1, cskip), jnp.float32)
            b = 0.1 * jax.random.normal(next(keys), (1, cskip), jnp.float32)
            convs.append((wm, cb, g, b))
            cin = cskip
        # 1x1 seg head, channels zero-padded to a lane-dense 128 multiple.
        ws = jax.random.normal(next(keys), (cskip, num_classes), jnp.float32) * 0.1
        ws = jnp.pad(ws, ((0, 0), (0, ncls_pad - num_classes))).astype(jnp.bfloat16)
        bs = jax.random.normal(next(keys), (1, num_classes), jnp.float32) * 0.05
        bs = jnp.pad(bs, ((0, 0), (0, ncls_pad - num_classes)))
        params.append(dict(wt=wt, bt=bt, sh=sh, sw=sw, kh=kh, kw=kw,
                           convs=convs, ws=ws, bs=bs))
    return params


# --------------------------------------------------------------------------

if __name__ == "__main__":
    key = jax.random.PRNGKey(0)
    B = 2
    num_classes = 3
    channels = [8, 16, 32]                   # encoder.output_channels
    strides = [(1, 1), (2, 2), (2, 2)]       # encoder.strides
    kernel_sizes = [(3, 3), (3, 3), (3, 3)]  # encoder.kernel_sizes
    n_conv_per_stage = 2
    spatial0 = 16
    deep_supervision = False
    ncls_pad = ((num_classes + 127) // 128) * 128

    k_in, k_par = jax.random.split(key)

    # Encoder skips in PyTorch NCHW (bottleneck last), converted to NHWC + bf16.
    skips_nchw = []
    h = w = spatial0
    kk = jax.random.split(k_in, len(channels))
    for i, c in enumerate(channels):
        sh, sw = strides[i]
        h //= sh
        w //= sw
        skips_nchw.append(jax.random.normal(kk[i], (B, c, h, w), jnp.float32))
    skips = [jnp.transpose(s, (0, 2, 3, 1)).astype(jnp.bfloat16)
             for s in skips_nchw]

    params = init_decoder_params(k_par, channels, strides, kernel_sizes,
                                 n_conv_per_stage, num_classes, ncls_pad)

    out_nhwc = decoder_forward_pallas(skips, params, num_classes, ncls_pad,
                                      deep_supervision=deep_supervision)
    out_nchw = jnp.transpose(out_nhwc, (0, 3, 1, 2))   # back to PyTorch NCHW
    jax.block_until_ready(out_nchw)

    ref_nhwc = decoder_forward_ref(skips, params, num_classes,
                                   deep_supervision=deep_supervision)
    ref_nchw = jnp.transpose(ref_nhwc, (0, 3, 1, 2))

    assert out_nchw.shape == (B, num_classes, spatial0, spatial0), out_nchw.shape
    max_err = float(jnp.max(jnp.abs(out_nchw - ref_nchw)))
    assert jnp.allclose(out_nchw, ref_nchw, atol=1e-2, rtol=1e-2), max_err

    print("KERNEL_OK")
</pallas_src>

<mosaic_0001>
module attributes {stable_mosaic.version = 11 : i64} {
  func.func @kernel(%arg0: i32, %arg1: memref<1x4x4x32xbf16, #tpu.memory_space<vmem>>, %arg2: memref<1x8x8x16xbf16, #tpu.memory_space<vmem>>, %arg3: memref<32x64xbf16, #tpu.memory_space<vmem>>, %arg4: memref<1x64xf32, #tpu.memory_space<vmem>>, %arg5: memref<288x16xbf16, #tpu.memory_space<vmem>>, %arg6: memref<1x16xf32, #tpu.memory_space<vmem>>, %arg7: memref<1x16xf32, #tpu.memory_space<vmem>>, %arg8: memref<144x16xbf16, #tpu.memory_space<vmem>>, %arg9: memref<1x16xf32, #tpu.memory_space<vmem>>, %arg10: memref<1x16xf32, #tpu.memory_space<vmem>>, %arg11: memref<1x8x8x16xbf16, #tpu.memory_space<vmem>>) attributes {dimension_semantics = [#tpu.dimension_semantics<parallel>], iteration_bounds = array<i64: 2>, scalar_prefetch = 0 : i64, scratch_operands = 0 : i64, tpu.core_type = #tpu.core_type<tc>, window_params = [{transform_indices = @transform_0, window_bounds = array<i64: 1, 4, 4, 32>}, {transform_indices = @transform_1, window_bounds = array<i64: 1, 8, 8, 16>}, {pipeline_mode = #tpu.pipeline_mode<synchronous>, transform_indices = @transform_2, window_bounds = array<i64: 32, 64>}, {pipeline_mode = #tpu.pipeline_mode<synchronous>, transform_indices = @transform_3, window_bounds = array<i64: 1, 64>}, {pipeline_mode = #tpu.pipeline_mode<synchronous>, transform_indices = @transform_4, window_bounds = array<i64: 288, 16>}, {pipeline_mode = #tpu.pipeline_mode<synchronous>, transform_indices = @transform_5, window_bounds = array<i64: 1, 16>}, {pipeline_mode = #tpu.pipeline_mode<synchronous>, transform_indices = @transform_6, window_bounds = array<i64: 1, 16>}, {pipeline_mode = #tpu.pipeline_mode<synchronous>, transform_indices = @transform_7, window_bounds = array<i64: 144, 16>}, {pipeline_mode = #tpu.pipeline_mode<synchronous>, transform_indices = @transform_8, window_bounds = array<i64: 1, 16>}, {pipeline_mode = #tpu.pipeline_mode<synchronous>, transform_indices = @transform_9, window_bounds = array<i64: 1, 16>}, {transform_indices = @transform_10, window_bounds = array<i64: 1, 8, 8, 16>}]} {
    %c0 = arith.constant 0 : index
    %c0_0 = arith.constant 0 : index
    %c0_1 = arith.constant 0 : index
    %c0_2 = arith.constant 0 : index
    %0 = vector.load %arg1[%c0, %c0_0, %c0_1, %c0_2] : memref<1x4x4x32xbf16, #tpu.memory_space<vmem>>, vector<1x4x4x32xbf16>
    %1 = vector.shape_cast %0 : vector<1x4x4x32xbf16> to vector<4x4x32xbf16>
    %2 = vector.shape_cast %1 : vector<4x4x32xbf16> to vector<16x32xbf16>
    %c0_3 = arith.constant 0 : index
    %c0_4 = arith.constant 0 : index
    %3 = vector.load %arg3[%c0_3, %c0_4] : memref<32x64xbf16, #tpu.memory_space<vmem>>, vector<32x64xbf16>
    %cst = arith.constant dense<0.000000e+00> : vector<16x64xf32>
    %4 = tpu.matmul %2, %3, %cst {dimension_numbers = #tpu.dot_dimension_numbers<[1], [0], [0], [1], [0, 0, 1, 1], [], []>} : vector<16x32xbf16>, vector<32x64xbf16>, vector<16x64xf32> -> vector<16x64xf32>
    %c0_5 = arith.constant 0 : index
    %c0_6 = arith.constant 0 : index
    %5 = vector.load %arg4[%c0_5, %c0_6] : memref<1x64xf32, #tpu.memory_space<vmem>>, vector<1x64xf32>
    %6 = vector.broadcast %5 : vector<1x64xf32> to vector<16x64xf32>
    %7 = arith.addf %4, %6 : vector<16x64xf32>
    %8 = vector.extract_strided_slice %7 {offsets = [0, 0], sizes = [16, 16], strides = [1, 1]} : vector<16x64xf32> to vector<16x16xf32>
    %9 = vector.shape_cast %8 : vector<16x16xf32> to vector<16x1x1x16xf32>
    %10 = vector.extract_strided_slice %7 {offsets = [0, 16], sizes = [16, 16], strides = [1, 1]} : vector<16x64xf32> to vector<16x16xf32>
    %11 = vector.shape_cast %10 : vector<16x16xf32> to vector<16x1x1x16xf32>
    %12 = tpu.concatenate %9, %11 in 1 : vector<16x1x1x16xf32>, vector<16x1x1x16xf32> -> vector<16x2x1x16xf32>
    %13 = vector.shape_cast %12 : vector<16x2x1x16xf32> to vector<4x8x16xf32>
    %14 = vector.extract_strided_slice %7 {offsets = [0, 32], sizes = [16, 16], strides = [1, 1]} : vector<16x64xf32> to vector<16x16xf32>
    %15 = vector.shape_cast %14 : vector<16x16xf32> to vector<16x1x1x16xf32>
    %16 = vector.extract_strided_slice %7 {offsets = [0, 48], sizes = [16, 16], strides = [1, 1]} : vector<16x64xf32> to vector<16x16xf32>
    %17 = vector.shape_cast %16 : vector<16x16xf32> to vector<16x1x1x16xf32>
    %18 = tpu.concatenate %15, %17 in 1 : vector<16x1x1x16xf32>, vector<16x1x1x16xf32> -> vector<16x2x1x16xf32>
    %19 = vector.shape_cast %18 : vector<16x2x1x16xf32> to vector<4x8x16xf32>
    %20 = vector.shape_cast %13 : vector<4x8x16xf32> to vector<4x1x8x16xf32>
    %21 = vector.shape_cast %19 : vector<4x8x16xf32> to vector<4x1x8x16xf32>
    %22 = tpu.concatenate %20, %21 in 1 : vector<4x1x8x16xf32>, vector<4x1x8x16xf32> -> vector<4x2x8x16xf32>
    %23 = vector.shape_cast %22 : vector<4x2x8x16xf32> to vector<8x8x16xf32>
    %24 = arith.truncf %23 : vector<8x8x16xf32> to vector<8x8x16xbf16>
    %c0_7 = arith.constant 0 : index
    %c0_8 = arith.constant 0 : index
    %c0_9 = arith.constant 0 : index
    %c0_10 = arith.constant 0 : index
    %25 = vector.load %arg2[%c0_7, %c0_8, %c0_9, %c0_10] : memref<1x8x8x16xbf16, #tpu.memory_space<vmem>>, vector<1x8x8x16xbf16>
    %26 = vector.shape_cast %25 : vector<1x8x8x16xbf16> to vector<8x8x16xbf16>
    %27 = tpu.concatenate %24, %26 in 2 : vector<8x8x16xbf16>, vector<8x8x16xbf16> -> vector<8x8x32xbf16>
    %28 = vector.shape_cast %27 : vector<8x8x32xbf16> to vector<8x8x1x32xbf16>
    %cst_11 = arith.constant 0.000000e+00 : bf16
    %29 = vector.broadcast %cst_11 : bf16 to vector<8x1x1x32xbf16>
    %30 = tpu.concatenate %29, %28, %29 in 1 : vector<8x1x1x32xbf16>, vector<8x8x1x32xbf16>, vector<8x1x1x32xbf16> -> vector<8x10x1x32xbf16>
    %31 = vector.shape_cast %30 : vector<8x10x1x32xbf16> to vector<8x10x32xbf16>
    %cst_12 = arith.constant 0.000000e+00 : bf16
    %32 = vector.broadcast %cst_12 : bf16 to vector<1x10x32xbf16>
    %33 = tpu.concatenate %32, %31, %32 in 0 : vector<1x10x32xbf16>, vector<8x10x32xbf16>, vector<1x10x32xbf16> -> vector<10x10x32xbf16>
    %34 = vector.extract_strided_slice %33 {offsets = [0, 0, 0], sizes = [8, 8, 32], strides = [1, 1, 1]} : vector<10x10x32xbf16> to vector<8x8x32xbf16>
    %35 = vector.shape_cast %34 : vector<8x8x32xbf16> to vector<64x32xbf16>
    %36 = vector.extract_strided_slice %33 {offsets = [0, 1, 0], sizes = [8, 8, 32], strides = [1, 1, 1]} : vector<10x10x32xbf16> to vector<8x8x32xbf16>
    %37 = vector.shape_cast %36 : vector<8x8x32xbf16> to vector<64x32xbf16>
    %38 = vector.extract_strided_slice %33 {offsets = [0, 2, 0], sizes = [8, 8, 32], strides = [1, 1, 1]} : vector<10x10x32xbf16> to vector<8x8x32xbf16>
    %39 = vector.shape_cast %38 : vector<8x8x32xbf16> to vector<64x32xbf16>
    %40 = vector.extract_strided_slice %33 {offsets = [1, 0, 0], sizes = [8, 8, 32], strides = [1, 1, 1]} : vector<10x10x32xbf16> to vector<8x8x32xbf16>
    %41 = vector.shape_cast %40 : vector<8x8x32xbf16> to vector<64x32xbf16>
    %42 = vector.extract_strided_slice %33 {offsets = [1, 1, 0], sizes = [8, 8, 32], strides = [1, 1, 1]} : vector<10x10x32xbf16> to vector<8x8x32xbf16>
    %43 = vector.shape_cast %42 : vector<8x8x32xbf16> to vector<64x32xbf16>
    %44 = vector.extract_strided_slice %33 {offsets = [1, 2, 0], sizes = [8, 8, 32], strides = [1, 1, 1]} : vector<10x10x32xbf16> to vector<8x8x32xbf16>
    %45 = vector.shape_cast %44 : vector<8x8x32xbf16> to vector<64x32xbf16>
    %46 = vector.extract_strided_slice %33 {offsets = [2, 0, 0], sizes = [8, 8, 32], strides = [1, 1, 1]} : vector<10x10x32xbf16> to vector<8x8x32xbf16>
    %47 = vector.shape_cast %46 : vector<8x8x32xbf16> to vector<64x32xbf16>
    %48 = vector.extract_strided_slice %33 {offsets = [2, 1, 0], sizes = [8, 8, 32], strides = [1, 1, 1]} : vector<10x10x32xbf16> to vector<8x8x32xbf16>
    %49 = vector.shape_cast %48 : vector<8x8x32xbf16> to vector<64x32xbf16>
    %50 = vector.extract_strided_slice %33 {offsets = [2, 2, 0], sizes = [8, 8, 32], strides = [1, 1, 1]} : vector<10x10x32xbf16> to vector<8x8x32xbf16>
    %51 = vector.shape_cast %50 : vector<8x8x32xbf16> to vector<64x32xbf16>
    %52 = tpu.concatenate %35, %37, %39, %41, %43, %45, %47, %49, %51 in 1 : vector<64x32xbf16>, vector<64x32xbf16>, vector<64x32xbf16>, vector<64x32xbf16>, vector<64x32xbf16>, vector<64x32xbf16>, vector<64x32xbf16>, vector<64x32xbf16>, vector<64x32xbf16> -> vector<64x288xbf16>
    %c0_13 = arith.constant 0 : index
    %c0_14 = arith.constant 0 : index
    %53 = vector.load %arg5[%c0_13, %c0_14] : memref<288x16xbf16, #tpu.memory_space<vmem>>, vector<288x16xbf16>
    %cst_15 = arith.constant dense<0.000000e+00> : vector<64x16xf32>
    %54 = tpu.matmul %52, %53, %cst_15 {dimension_numbers = #tpu.dot_dimension_numbers<[1], [0], [0], [1], [0, 0, 1, 1], [], []>} : vector<64x288xbf16>, vector<288x16xbf16>, vector<64x16xf32> -> vector<64x16xf32>
    %cst_16 = arith.constant dense<0.000000e+00> : vector<16xf32>
    %55 = vector.multi_reduction <add>, %54, %cst_16 [0] : vector<64x16xf32> to vector<16xf32>
    %56 = vector.shape_cast %55 : vector<16xf32> to vector<1x16xf32>
    %cst_17 = arith.constant 6.400000e+01 : f32
    %57 = vector.broadcast %cst_17 : f32 to vector<1x16xf32>
    %58 = arith.divf %56, %57 : vector<1x16xf32>
    %59 = arith.mulf %54, %54 : vector<64x16xf32>
    %cst_18 = arith.constant dense<0.000000e+00> : vector<16xf32>
    %60 = vector.multi_reduction <add>, %59, %cst_18 [0] : vector<64x16xf32> to vector<16xf32>
    %61 = vector.shape_cast %60 : vector<16xf32> to vector<1x16xf32>
    %cst_19 = arith.constant 6.400000e+01 : f32
    %62 = vector.broadcast %cst_19 : f32 to vector<1x16xf32>
    %63 = arith.divf %61, %62 : vector<1x16xf32>
    %64 = arith.mulf %58, %58 : vector<1x16xf32>
    %65 = arith.subf %63, %64 : vector<1x16xf32>
    %cst_20 = arith.constant 0.000000e+00 : f32
    %66 = vector.broadcast %cst_20 : f32 to vector<1x16xf32>
    %67 = arith.maximumf %65, %66 : vector<1x16xf32>
    %cst_21 = arith.constant 9.99999974E-6 : f32
    %68 = vector.broadcast %cst_21 : f32 to vector<1x16xf32>
    %69 = arith.addf %67, %68 : vector<1x16xf32>
    %70 = math.rsqrt %69 : vector<1x16xf32>
    %c0_22 = arith.constant 0 : index
    %c0_23 = arith.constant 0 : index
    %71 = vector.load %arg6[%c0_22, %c0_23] : memref<1x16xf32, #tpu.memory_space<vmem>>, vector<1x16xf32>
    %72 = arith.mulf %70, %71 : vector<1x16xf32>
    %c0_24 = arith.constant 0 : index
    %c0_25 = arith.constant 0 : index
    %73 = vector.load %arg7[%c0_24, %c0_25] : memref<1x16xf32, #tpu.memory_space<vmem>>, vector<1x16xf32>
    %74 = arith.mulf %58, %72 : vector<1x16xf32>
    %75 = arith.subf %73, %74 : vector<1x16xf32>
    %76 = vector.broadcast %72 : vector<1x16xf32> to vector<64x16xf32>
    %77 = arith.mulf %54, %76 : vector<64x16xf32>
    %78 = vector.broadcast %75 : vector<1x16xf32> to vector<64x16xf32>
    %79 = arith.addf %77, %78 : vector<64x16xf32>
    %cst_26 = arith.constant 0.000000e+00 : f32
    %80 = vector.broadcast %cst_26 : f32 to vector<64x16xf32>
    %81 = arith.cmpf ogt, %79, %80 : vector<64x16xf32>
    %cst_27 = arith.constant 0.00999999977 : f32
    %82 = vector.broadcast %cst_27 : f32 to vector<64x16xf32>
    %83 = arith.mulf %82, %79 : vector<64x16xf32>
    %84 = arith.select %81, %79, %83 : vector<64x16xi1>, vector<64x16xf32>
    %85 = arith.truncf %84 : vector<64x16xf32> to vector<64x16xbf16>
    %86 = vector.shape_cast %85 : vector<64x16xbf16> to vector<8x8x16xbf16>
    %87 = vector.shape_cast %86 : vector<8x8x16xbf16> to vector<8x8x1x16xbf16>
    %cst_28 = arith.constant 0.000000e+00 : bf16
    %88 = vector.broadcast %cst_28 : bf16 to vector<8x1x1x16xbf16>
    %89 = tpu.concatenate %88, %87, %88 in 1 : vector<8x1x1x16xbf16>, vector<8x8x1x16xbf16>, vector<8x1x1x16xbf16> -> vector<8x10x1x16xbf16>
    %90 = vector.shape_cast %89 : vector<8x10x1x16xbf16> to vector<8x10x16xbf16>
    %cst_29 = arith.constant 0.000000e+00 : bf16
    %91 = vector.broadcast %cst_29 : bf16 to vector<1x10x16xbf16>
    %92 = tpu.concatenate %91, %90, %91 in 0 : vector<1x10x16xbf16>, vector<8x10x16xbf16>, vector<1x10x16xbf16> -> vector<10x10x16xbf16>
    %93 = vector.extract_strided_slice %92 {offsets = [0, 0, 0], sizes = [8, 8, 16], strides = [1, 1, 1]} : vector<10x10x16xbf16> to vector<8x8x16xbf16>
    %94 = vector.shape_cast %93 : vector<8x8x16xbf16> to vector<64x16xbf16>
    %95 = vector.extract_strided_slice %92 {offsets = [0, 1, 0], sizes = [8, 8, 16], strides = [1, 1, 1]} : vector<10x10x16xbf16> to vector<8x8x16xbf16>
    %96 = vector.shape_cast %95 : vector<8x8x16xbf16> to vector<64x16xbf16>
    %97 = vector.extract_strided_slice %92 {offsets = [0, 2, 0], sizes = [8, 8, 16], strides = [1, 1, 1]} : vector<10x10x16xbf16> to vector<8x8x16xbf16>
    %98 = vector.shape_cast %97 : vector<8x8x16xbf16> to vector<64x16xbf16>
    %99 = vector.extract_strided_slice %92 {offsets = [1, 0, 0], sizes = [8, 8, 16], strides = [1, 1, 1]} : vector<10x10x16xbf16> to vector<8x8x16xbf16>
    %100 = vector.shape_cast %99 : vector<8x8x16xbf16> to vector<64x16xbf16>
    %101 = vector.extract_strided_slice %92 {offsets = [1, 1, 0], sizes = [8, 8, 16], strides = [1, 1, 1]} : vector<10x10x16xbf16> to vector<8x8x16xbf16>
    %102 = vector.shape_cast %101 : vector<8x8x16xbf16> to vector<64x16xbf16>
    %103 = vector.extract_strided_slice %92 {offsets = [1, 2, 0], sizes = [8, 8, 16], strides = [1, 1, 1]} : vector<10x10x16xbf16> to vector<8x8x16xbf16>
    %104 = vector.shape_cast %103 : vector<8x8x16xbf16> to vector<64x16xbf16>
    %105 = vector.extract_strided_slice %92 {offsets = [2, 0, 0], sizes = [8, 8, 16], strides = [1, 1, 1]} : vector<10x10x16xbf16> to vector<8x8x16xbf16>
    %106 = vector.shape_cast %105 : vector<8x8x16xbf16> to vector<64x16xbf16>
    %107 = vector.extract_strided_slice %92 {offsets = [2, 1, 0], sizes = [8, 8, 16], strides = [1, 1, 1]} : vector<10x10x16xbf16> to vector<8x8x16xbf16>
    %108 = vector.shape_cast %107 : vector<8x8x16xbf16> to vector<64x16xbf16>
    %109 = vector.extract_strided_slice %92 {offsets = [2, 2, 0], sizes = [8, 8, 16], strides = [1, 1, 1]} : vector<10x10x16xbf16> to vector<8x8x16xbf16>
    %110 = vector.shape_cast %109 : vector<8x8x16xbf16> to vector<64x16xbf16>
    %111 = tpu.concatenate %94, %96, %98, %100, %102, %104, %106, %108, %110 in 1 : vector<64x16xbf16>, vector<64x16xbf16>, vector<64x16xbf16>, vector<64x16xbf16>, vector<64x16xbf16>, vector<64x16xbf16>, vector<64x16xbf16>, vector<64x16xbf16>, vector<64x16xbf16> -> vector<64x144xbf16>
    %c0_30 = arith.constant 0 : index
    %c0_31 = arith.constant 0 : index
    %112 = vector.load %arg8[%c0_30, %c0_31] : memref<144x16xbf16, #tpu.memory_space<vmem>>, vector<144x16xbf16>
    %cst_32 = arith.constant dense<0.000000e+00> : vector<64x16xf32>
    %113 = tpu.matmul %111, %112, %cst_32 {dimension_numbers = #tpu.dot_dimension_numbers<[1], [0], [0], [1], [0, 0, 1, 1], [], []>} : vector<64x144xbf16>, vector<144x16xbf16>, vector<64x16xf32> -> vector<64x16xf32>
    %cst_33 = arith.constant dense<0.000000e+00> : vector<16xf32>
    %114 = vector.multi_reduction <add>, %113, %cst_33 [0] : vector<64x16xf32> to vector<16xf32>
    %115 = vector.shape_cast %114 : vector<16xf32> to vector<1x16xf32>
    %cst_34 = arith.constant 6.400000e+01 : f32
    %116 = vector.broadcast %cst_34 : f32 to vector<1x16xf32>
    %117 = arith.divf %115, %116 : vector<1x16xf32>
    %118 = arith.mulf %113, %113 : vector<64x16xf32>
    %cst_35 = arith.constant dense<0.000000e+00> : vector<16xf32>
    %119 = vector.multi_reduction <add>, %118, %cst_35 [0] : vector<64x16xf32> to vector<16xf32>
    %120 = vector.shape_cast %119 : vector<16xf32> to vector<1x16xf32>
    %cst_36 = arith.constant 6.400000e+01 : f32
    %121 = vector.broadcast %cst_36 : f32 to vector<1x16xf32>
    %122 = arith.divf %120, %121 : vector<1x16xf32>
    %123 = arith.mulf %117, %117 : vector<1x16xf32>
    %124 = arith.subf %122, %123 : vector<1x16xf32>
    %cst_37 = arith.constant 0.000000e+00 : f32
    %125 = vector.broadcast %cst_37 : f32 to vector<1x16xf32>
    %126 = arith.maximumf %124, %125 : vector<1x16xf32>
    %cst_38 = arith.constant 9.99999974E-6 : f32
    %127 = vector.broadcast %cst_38 : f32 to vector<1x16xf32>
    %128 = arith.addf %126, %127 : vector<1x16xf32>
    %129 = math.rsqrt %128 : vector<1x16xf32>
    %c0_39 = arith.constant 0 : index
    %c0_40 = arith.constant 0 : index
    %130 = vector.load %arg9[%c0_39, %c0_40] : memref<1x16xf32, #tpu.memory_space<vmem>>, vector<1x16xf32>
    %131 = arith.mulf %129, %130 : vector<1x16xf32>
    %c0_41 = arith.constant 0 : index
    %c0_42 = arith.constant 0 : index
    %132 = vector.load %arg10[%c0_41, %c0_42] : memref<1x16xf32, #tpu.memory_space<vmem>>, vector<1x16xf32>
    %133 = arith.mulf %117, %131 : vector<1x16xf32>
    %134 = arith.subf %132, %133 : vector<1x16xf32>
    %135 = vector.broadcast %131 : vector<1x16xf32> to vector<64x16xf32>
    %136 = arith.mulf %113, %135 : vector<64x16xf32>
    %137 = vector.broadcast %134 : vector<1x16xf32> to vector<64x16xf32>
    %138 = arith.addf %136, %137 : vector<64x16xf32>
    %cst_43 = arith.constant 0.000000e+00 : f32
    %139 = vector.broadcast %cst_43 : f32 to vector<64x16xf32>
    %140 = arith.cmpf ogt, %138, %139 : vector<64x16xf32>
    %cst_44 = arith.constant 0.00999999977 : f32
    %141 = vector.broadcast %cst_44 : f32 to vector<64x16xf32>
    %142 = arith.mulf %141, %138 : vector<64x16xf32>
    %143 = arith.select %140, %138, %142 : vector<64x16xi1>, vector<64x16xf32>
    %144 = arith.truncf %143 : vector<64x16xf32> to vector<64x16xbf16>
    %145 = vector.shape_cast %144 : vector<64x16xbf16> to vector<8x8x16xbf16>
    %c0_45 = arith.constant 0 : index
    %c0_46 = arith.constant 0 : index
    %c0_47 = arith.constant 0 : index
    %c0_48 = arith.constant 0 : index
    %146 = vector.load %arg11[%c0_45, %c0_46, %c0_47, %c0_48] : memref<1x8x8x16xbf16, #tpu.memory_space<vmem>>, vector<1x8x8x16xbf16>
    %147 = vector.shape_cast %146 : vector<1x8x8x16xbf16> to vector<8x8x16xbf16>
    %148 = vector.shape_cast %145 : vector<8x8x16xbf16> to vector<1x8x8x16xbf16>
    tpu.vector_store %arg11[%c0_45, %c0_46, %c0_47, %c0_48], %148 {strides = array<i32>} : memref<1x8x8x16xbf16, #tpu.memory_space<vmem>>, vector<1x8x8x16xbf16>,
    return
  }
  func.func @transform_0(%arg0: i32) -> (i32, i32, i32, i32) {
    %c0_i32 = arith.constant 0 : i32
    %c0_i32_0 = arith.constant 0 : i32
    %c0_i32_1 = arith.constant 0 : i32
    %c0_i32_2 = arith.constant 0 : i32
    return %arg0, %c0_i32, %c0_i32_0, %c0_i32_1 : i32, i32, i32, i32
  }
  func.func @transform_1(%arg0: i32) -> (i32, i32, i32, i32) {
    %c0_i32 = arith.constant 0 : i32
    %c0_i32_0 = arith.constant 0 : i32
    %c0_i32_1 = arith.constant 0 : i32
    %c0_i32_2 = arith.constant 0 : i32
    return %arg0, %c0_i32, %c0_i32_0, %c0_i32_1 : i32, i32, i32, i32
  }
  func.func @transform_2(%arg0: i32) -> (i32, i32) {
    %c0_i32 = arith.constant 0 : i32
    %c0_i32_0 = arith.constant 0 : i32
    %c0_i32_1 = arith.constant 0 : i32
    return %c0_i32, %c0_i32_0 : i32, i32
  }
  func.func @transform_3(%arg0: i32) -> (i32, i32) {
    %c0_i32 = arith.constant 0 : i32
    %c0_i32_0 = arith.constant 0 : i32
    %c0_i32_1 = arith.constant 0 : i32
    return %c0_i32, %c0_i32_0 : i32, i32
  }
  func.func @transform_4(%arg0: i32) -> (i32, i32) {
    %c0_i32 = arith.constant 0 : i32
    %c0_i32_0 = arith.constant 0 : i32
    %c0_i32_1 = arith.constant 0 : i32
    return %c0_i32, %c0_i32_0 : i32, i32
  }
  func.func @transform_5(%arg0: i32) -> (i32, i32) {
    %c0_i32 = arith.constant 0 : i32
    %c0_i32_0 = arith.constant 0 : i32
    %c0_i32_1 = arith.constant 0 : i32
    return %c0_i32, %c0_i32_0 : i32, i32
  }
  func.func @transform_6(%arg0: i32) -> (i32, i32) {
    %c0_i32 = arith.constant 0 : i32
    %c0_i32_0 = arith.constant 0 : i32
    %c0_i32_1 = arith.constant 0 : i32
    return %c0_i32, %c0_i32_0 : i32, i32
  }
  func.func @transform_7(%arg0: i32) -> (i32, i32) {
    %c0_i32 = arith.constant 0 : i32
    %c0_i32_0 = arith.constant 0 : i32
    %c0_i32_1 = arith.constant 0 : i32
    return %c0_i32, %c0_i32_0 : i32, i32
  }
  func.func @transform_8(%arg0: i32) -> (i32, i32) {
    %c0_i32 = arith.constant 0 : i32
    %c0_i32_0 = arith.constant 0 : i32
    %c0_i32_1 = arith.constant 0 : i32
    return %c0_i32, %c0_i32_0 : i32, i32
  }
  func.func @transform_9(%arg0: i32) -> (i32, i32) {
    %c0_i32 = arith.constant 0 : i32
    %c0_i32_0 = arith.constant 0 : i32
    %c0_i32_1 = arith.constant 0 : i32
    return %c0_i32, %c0_i32_0 : i32, i32
  }
  func.func @transform_10(%arg0: i32) -> (i32, i32, i32, i32) {
    %c0_i32 = arith.constant 0 : i32
    %c0_i32_0 = arith.constant 0 : i32
    %c0_i32_1 = arith.constant 0 : i32
    %c0_i32_2 = arith.constant 0 : i32
    return %arg0, %c0_i32, %c0_i32_0, %c0_i32_1 : i32, i32, i32, i32
  }
}

</mosaic_0001>

<llo_original>
// kernel: tpu_custom_call.1
$region0: #{tpu_custom_call.1}
  #allocation0 [shape = 'u32[]', space=smem, size = 0x4, offset = 0x4, fixed_abs, tag = 'smem constant byte address 0x4 - core index']
  #allocation1 [shape = 'u32[144,128]{1,0:T(1,128)}', space=vmem, size = 0x12000, scoped, tag = 'internal scratch']
  %s0 = inlined_call_operand.vmem [shape: bf16[2,4,4,32], index: 0, kind: input, shape index: {}]
  %s1 = inlined_call_operand.vmem [shape: bf16[2,8,8,16], index: 1, kind: input, shape index: {}]
  %s2 = inlined_call_operand.vmem [shape: bf16[32,64], index: 2, kind: input, shape index: {}]
  %s3 = inlined_call_operand.vmem [shape: f32[1,64], index: 3, kind: input, shape index: {}]
  %s4 = inlined_call_operand.vmem [shape: bf16[288,16], index: 4, kind: input, shape index: {}]
  %s5 = inlined_call_operand.vmem [shape: f32[1,16], index: 5, kind: input, shape index: {}]
  %s6 = inlined_call_operand.vmem [shape: f32[1,16], index: 6, kind: input, shape index: {}]
  %s7 = inlined_call_operand.vmem [shape: bf16[144,16], index: 7, kind: input, shape index: {}]
  %s8 = inlined_call_operand.vmem [shape: f32[1,16], index: 8, kind: input, shape index: {}]
  %s9 = inlined_call_operand.vmem [shape: f32[1,16], index: 9, kind: input, shape index: {}]
  %s10 = inlined_call_operand.hbm [shape: bf16[2,8,8,16], index: 10, kind: output, shape index: {}]
  %s11 = sld [smem:[#allocation0]]
  $region73: #{tpu_custom_call.1} parent=0
    _
  %s13 = ssub.s32 1, %s11
  %s14 = scalar_select 0, %s13, %s11
  $region1: #{tpu_custom_call.1} parent=0
    #allocation2 [shape = 'u8[32768]{0}', space=vmem, size = 0x8000, scoped, tag = 'output window, operand 0']
    #allocation3 [shape = 's32[2]{0}', space=sflag, size = 0x8, scoped, tag = 'scoped memory for tpu_custom_call.1']
    %15 = vsyncpa [#allocation3], 0
    %s16 = scalar_lea.sflag [#allocation3], 1
    %17 = vsyncpa %s16, 0
    loop: start=0, step=1, limit=4
    $region2: #{tpu_custom_call.1} parent=1 // loop_pre_header
      _
    $region3: #{tpu_custom_call.1} parent=1 // loop_header
      %s19 = sphi 0, %s23
      %p20 = scmp.ge.s32.totalorder %s19, 4
      %s29 = sphi 0, %s31
      %s32 = sphi 0, %s29
      %s33 = sphi 0, %s32
      %s49 = sphi 0, %s33
      %s55 = sphi 0, %s57
      %s58 = sphi 0, %s55
      %s59 = sphi 0, %s58
      %s75 = sphi 0, %s59
      %s79 = sphi 0, %s79
      %s81 = sphi 0, %s79
      %s82 = sphi 0, %s81
      %s96 = sphi 0, %s82
      %s100 = sphi 0, %s100
      %s102 = sphi 0, %s100
      %s103 = sphi 0, %s102
      %s117 = sphi 0, %s103
      %s121 = sphi 0, %s121
      %s123 = sphi 0, %s121
      %s124 = sphi 0, %s123
      %s138 = sphi 0, %s124
      %s142 = sphi 0, %s142
      %s144 = sphi 0, %s142
      %s145 = sphi 0, %s144
      %s159 = sphi 0, %s145
      %s163 = sphi 0, %s163
      %s165 = sphi 0, %s163
      %s166 = sphi 0, %s165
      %s180 = sphi 0, %s166
      %s184 = sphi 0, %s184
      %s186 = sphi 0, %s184
      %s187 = sphi 0, %s186
      %s201 = sphi 0, %s187
      %s205 = sphi 0, %s205
      %s207 = sphi 0, %s205
      %s208 = sphi 0, %s207
      %s222 = sphi 0, %s208
      %s226 = sphi 0, %s226
      %s228 = sphi 0, %s226
      %s229 = sphi 0, %s228
      %s243 = sphi 0, %s229
      %s249 = sphi 0, %s251
      %s252 = sphi 0, %s249
      %s253 = sphi 0, %s252
      %s269 = sphi 0, %s253
    $region4: #{tpu_custom_call.1} parent=1 // loop_header_branch
      %22 = sbr.rel (%p20) target = $region8
    $region5: #{tpu_custom_call.1} parent=1 // loop_body
      %s24 = ssub.s32 %s19, 1
      %s25 = ssub.s32 %s19, 2
      %s26 = sadd.s32 %s19, 1
      %s27 = ssub.s32 %s19, %s26
      %p28 = scmp.eq.s32.totalorder %s27, 0
      %s30 = sadd.s32 %s29, 1
      %s31 = scalar_select %p28, %s29, %s30
      %p34 = pneg %p28
      %p35 = scmp.eq.s32.totalorder %s19, 1
      %p36 = por %p34, %p35
      %p37 = scmp.ne.s32.totalorder %s29, %s32
      %p38 = scmp.eq.s32.totalorder %s19, 0
      %p39 = por %p37, %p38
      %p40 = scmp.ne.s32.totalorder %s29, %s32
      %p41 = scmp.eq.s32.totalorder %s24, 1
      %p42 = por %p40, %p41
      %p43 = scmp.ne.s32.totalorder %s32, %s33
      %p44 = scmp.eq.s32.totalorder %s24, 0
      %p45 = por %p43, %p44
      %p46 = scmp.ne.s32.totalorder %s32, %s33
      %p47 = scmp.eq.s32.totalorder %s25, 1
      %p48 = por %p46, %p47
      %p50 = scmp.ne.s32.totalorder %s33, %s49
      %p51 = scmp.eq.s32.totalorder %s25, 0
      %p52 = por %p50, %p51
      %s53 = ssub.s32 %s19, %s26
      %p54 = scmp.eq.s32.totalorder %s53, 0
      %s56 = sadd.s32 %s55, 1
      %s57 = scalar_select %p54, %s55, %s56
      %p60 = pneg %p54
      %p61 = scmp.eq.s32.totalorder %s19, 1
      %p62 = por %p60, %p61
      %p63 = scmp.ne.s32.totalorder %s55, %s58
      %p64 = scmp.eq.s32.totalorder %s19, 0
      %p65 = por %p63, %p64
      %p66 = scmp.ne.s32.totalorder %s55, %s58
      %p67 = scmp.eq.s32.totalorder %s24, 1
      %p68 = por %p66, %p67
      %p69 = scmp.ne.s32.totalorder %s58, %s59
      %p70 = scmp.eq.s32.totalorder %s24, 0
      %p71 = por %p69, %p70
      %p72 = scmp.ne.s32.totalorder %s58, %s59
      %p73 = scmp.eq.s32.totalorder %s25, 1
      %p74 = por %p72, %p73
      %p76 = scmp.ne.s32.totalorder %s59, %s75
      %p77 = scmp.eq.s32.totalorder %s25, 0
      %p78 = por %p76, %p77
      %s80 = sadd.s32 %s79, 1
      %p83 = scmp.eq.s32.totalorder %s19, 1
      %p84 = scmp.ne.s32.totalorder %s79, %s81
      %p85 = scmp.eq.s32.totalorder %s19, 0
      %p86 = por %p84, %p85
      %p87 = scmp.ne.s32.totalorder %s79, %s81
      %p88 = scmp.eq.s32.totalorder %s24, 1
      %p89 = por %p87, %p88
      %p90 = scmp.ne.s32.totalorder %s81, %s82
      %p91 = scmp.eq.s32.totalorder %s24, 0
      %p92 = por %p90, %p91
      %p93 = scmp.ne.s32.totalorder %s81, %s82
      %p94 = scmp.eq.s32.totalorder %s25, 1
      %p95 = por %p93, %p94
      %p97 = scmp.ne.s32.totalorder %s82, %s96
      %p98 = scmp.eq.s32.totalorder %s25, 0
      %p99 = por %p97, %p98
      %s101 = sadd.s32 %s100, 1
      %p104 = scmp.eq.s32.totalorder %s19, 1
      %p105 = scmp.ne.s32.totalorder %s100, %s102
      %p106 = scmp.eq.s32.totalorder %s19, 0
      %p107 = por %p105, %p106
      %p108 = scmp.ne.s32.totalorder %s100, %s102
      %p109 = scmp.eq.s32.totalorder %s24, 1
      %p110 = por %p108, %p109
      %p111 = scmp.ne.s32.totalorder %s102, %s103
      %p112 = scmp.eq.s32.totalorder %s24, 0
      %p113 = por %p111, %p112
      %p114 = scmp.ne.s32.totalorder %s102, %s103
      %p115 = scmp.eq.s32.totalorder %s25, 1
      %p116 = por %p114, %p115
      %p118 = scmp.ne.s32.totalorder %s103, %s117
      %p119 = scmp.eq.s32.totalorder %s25, 0
      %p120 = por %p118, %p119
      %s122 = sadd.s32 %s121, 1
      %p125 = scmp.eq.s32.totalorder %s19, 1
      %p126 = scmp.ne.s32.totalorder %s121, %s123
      %p127 = scmp.eq.s32.totalorder %s19, 0
      %p128 = por %p126, %p127
      %p129 = scmp.ne.s32.totalorder %s121, %s123
      %p130 = scmp.eq.s32.totalorder %s24, 1
      %p131 = por %p129, %p130
      %p132 = scmp.ne.s32.totalorder %s123, %s124
      %p133 = scmp.eq.s32.totalorder %s24, 0
      %p134 = por %p132, %p133
      %p135 = scmp.ne.s32.totalorder %s123, %s124
      %p136 = scmp.eq.s32.totalorder %s25, 1
      %p137 = por %p135, %p136
      %p139 = scmp.ne.s32.totalorder %s124, %s138
      %p140 = scmp.eq.s32.totalorder %s25, 0
      %p141 = por %p139, %p140
      %s143 = sadd.s32 %s142, 1
      %p146 = scmp.eq.s32.totalorder %s19, 1
      %p147 = scmp.ne.s32.totalorder %s142, %s144
      %p148 = scmp.eq.s32.totalorder %s19, 0
      %p149 = por %p147, %p148
      %p150 = scmp.ne.s32.totalorder %s142, %s144
      %p151 = scmp.eq.s32.totalorder %s24, 1
      %p152 = por %p150, %p151
      %p153 = scmp.ne.s32.totalorder %s144, %s145
      %p154 = scmp.eq.s32.totalorder %s24, 0
      %p155 = por %p153, %p154
      %p156 = scmp.ne.s32.totalorder %s144, %s145
      %p157 = scmp.eq.s32.totalorder %s25, 1
      %p158 = por %p156, %p157
      %p160 = scmp.ne.s32.totalorder %s145, %s159
      %p161 = scmp.eq.s32.totalorder %s25, 0
      %p162 = por %p160, %p161
      %s164 = sadd.s32 %s163, 1
      %p167 = scmp.eq.s32.totalorder %s19, 1
      %p168 = scmp.ne.s32.totalorder %s163, %s165
      %p169 = scmp.eq.s32.totalorder %s19, 0
      %p170 = por %p168, %p169
      %p171 = scmp.ne.s32.totalorder %s163, %s165
      %p172 = scmp.eq.s32.totalorder %s24, 1
      %p173 = por %p171, %p172
      %p174 = scmp.ne.s32.totalorder %s165, %s166
      %p175 = scmp.eq.s32.totalorder %s24, 0
      %p176 = por %p174, %p175
      %p177 = scmp.ne.s32.totalorder %s165, %s166
      %p178 = scmp.eq.s32.totalorder %s25, 1
      %p179 = por %p177, %p178
      %p181 = scmp.ne.s32.totalorder %s166, %s180
      %p182 = scmp.eq.s32.totalorder %s25, 0
      %p183 = por %p181, %p182
      %s185 = sadd.s32 %s184, 1
      %p188 = scmp.eq.s32.totalorder %s19, 1
      %p189 = scmp.ne.s32.totalorder %s184, %s186
      %p190 = scmp.eq.s32.totalorder %s19, 0
      %p191 = por %p189, %p190
      %p192 = scmp.ne.s32.totalorder %s184, %s186
      %p193 = scmp.eq.s32.totalorder %s24, 1
      %p194 = por %p192, %p193
      %p195 = scmp.ne.s32.totalorder %s186, %s187
      %p196 = scmp.eq.s32.totalorder %s24, 0
      %p197 = por %p195, %p196
      %p198 = scmp.ne.s32.totalorder %s186, %s187
      %p199 = scmp.eq.s32.totalorder %s25, 1
      %p200 = por %p198, %p199
      %p202 = scmp.ne.s32.totalorder %s187, %s201
      %p203 = scmp.eq.s32.totalorder %s25, 0
      %p204 = por %p202, %p203
      %s206 = sadd.s32 %s205, 1
      %p209 = scmp.eq.s32.totalorder %s19, 1
      %p210 = scmp.ne.s32.totalorder %s205, %s207
      %p211 = scmp.eq.s32.totalorder %s19, 0
      %p212 = por %p210, %p211
      %p213 = scmp.ne.s32.totalorder %s205, %s207
      %p214 = scmp.eq.s32.totalorder %s24, 1
      %p215 = por %p213, %p214
      %p216 = scmp.ne.s32.totalorder %s207, %s208
      %p217 = scmp.eq.s32.totalorder %s24, 0
      %p218 = por %p216, %p217
      %p219 = scmp.ne.s32.totalorder %s207, %s208
      %p220 = scmp.eq.s32.totalorder %s25, 1
      %p221 = por %p219, %p220
      %p223 = scmp.ne.s32.totalorder %s208, %s222
      %p224 = scmp.eq.s32.totalorder %s25, 0
      %p225 = por %p223, %p224
      %s227 = sadd.s32 %s226, 1
      %p230 = scmp.eq.s32.totalorder %s19, 1
      %p231 = scmp.ne.s32.totalorder %s226, %s228
      %p232 = scmp.eq.s32.totalorder %s19, 0
      %p233 = por %p231, %p232
      %p234 = scmp.ne.s32.totalorder %s226, %s228
      %p235 = scmp.eq.s32.totalorder %s24, 1
      %p236 = por %p234, %p235
      %p237 = scmp.ne.s32.totalorder %s228, %s229
      %p238 = scmp.eq.s32.totalorder %s24, 0
      %p239 = por %p237, %p238
      %p240 = scmp.ne.s32.totalorder %s228, %s229
      %p241 = scmp.eq.s32.totalorder %s25, 1
      %p242 = por %p240, %p241
      %p244 = scmp.ne.s32.totalorder %s229, %s243
      %p245 = scmp.eq.s32.totalorder %s25, 0
      %p246 = por %p244, %p245
      %s247 = ssub.s32 %s19, %s26
      %p248 = scmp.eq.s32.totalorder %s247, 0
      %s250 = sadd.s32 %s249, 1
      %s251 = scalar_select %p248, %s249, %s250
      %p254 = pneg %p248
      %p255 = scmp.eq.s32.totalorder %s19, 1
      %p256 = por %p254, %p255
      %p257 = scmp.ne.s32.totalorder %s249, %s252
      %p258 = scmp.eq.s32.totalorder %s19, 0
      %p259 = por %p257, %p258
      %p260 = scmp.ne.s32.totalorder %s249, %s252
      %p261 = scmp.eq.s32.totalorder %s24, 1
      %p262 = por %p260, %p261
      %p263 = scmp.ne.s32.totalorder %s252, %s253
      %p264 = scmp.eq.s32.totalorder %s24, 0
      %p265 = por %p263, %p264
      %p266 = scmp.ne.s32.totalorder %s252, %s253
      %p267 = scmp.eq.s32.totalorder %s25, 1
      %p268 = por %p266, %p267
      %p270 = scmp.ne.s32.totalorder %s253, %s269
      %p271 = scmp.eq.s32.totalorder %s25, 0
      %p272 = por %p270, %p271
      %p273 = scmp.le.s32.totalorder 1, %s19
      %p274 = scmp.lt.s32.totalorder %s19, 3
      %p275 = pnand %p273, %p274
      %p276 = pneg %p275
      // Predicated region
      $region9: #{tpu_custom_call.1} parent=5 // pred_check
        _
      $region10: #{tpu_custom_call.1} parent=5 // pred_check_branch
        %278 = sbr.rel (%p275) target = $region12
      $region11: #{tpu_custom_call.1} parent=5 // pred_region
        %s279 = ssub.s32 %s19, 1
        // Predicated region
        $region13: #{tpu_custom_call.1} parent=11 // pred_check
          %p280 = pneg %p92
        $region14: #{tpu_custom_call.1} parent=11 // pred_check_branch
          %282 = sbr.rel (%p280) target = $region16
        $region15: #{tpu_custom_call.1} parent=11 // pred_region
          _
        $region16: #{tpu_custom_call.1} parent=11 // pred_fallthru
          _
        // Predicated region
        $region17: #{tpu_custom_call.1} parent=11 // pred_check
          %p283 = pneg %p113
        $region18: #{tpu_custom_call.1} parent=11 // pred_check_branch
          %285 = sbr.rel (%p283) target = $region20
        $region19: #{tpu_custom_call.1} parent=11 // pred_region
          _
        $region20: #{tpu_custom_call.1} parent=11 // pred_fallthru
          _
        // Predicated region
        $region21: #{tpu_custom_call.1} parent=11 // pred_check
          %p286 = pneg %p134
        $region22: #{tpu_custom_call.1} parent=11 // pred_check_branch
          %288 = sbr.rel (%p286) target = $region24
        $region23: #{tpu_custom_call.1} parent=11 // pred_region
          _
        $region24: #{tpu_custom_call.1} parent=11 // pred_fallthru
          _
        // Predicated region
        $region25: #{tpu_custom_call.1} parent=11 // pred_check
          %p289 = pneg %p155
        $region26: #{tpu_custom_call.1} parent=11 // pred_check_branch
          %291 = sbr.rel (%p289) target = $region28
        $region27: #{tpu_custom_call.1} parent=11 // pred_region
          _
        $region28: #{tpu_custom_call.1} parent=11 // pred_fallthru
          _
        // Predicated region
        $region29: #{tpu_custom_call.1} parent=11 // pred_check
          %p292 = pneg %p176
        $region30: #{tpu_custom_call.1} parent=11 // pred_check_branch
          %294 = sbr.rel (%p292) target = $region32
        $region31: #{tpu_custom_call.1} parent=11 // pred_region
          _
        $region32: #{tpu_custom_call.1} parent=11 // pred_fallthru
          _
        // Predicated region
        $region33: #{tpu_custom_call.1} parent=11 // pred_check
          %p295 = pneg %p197
        $region34: #{tpu_custom_call.1} parent=11 // pred_check_branch
          %297 = sbr.rel (%p295) target = $region36
        $region35: #{tpu_custom_call.1} parent=11 // pred_region
          _
        $region36: #{tpu_custom_call.1} parent=11 // pred_fallthru
          _
        // Predicated region
        $region37: #{tpu_custom_call.1} parent=11 // pred_check
          %p298 = pneg %p218
        $region38: #{tpu_custom_call.1} parent=11 // pred_check_branch
          %300 = sbr.rel (%p298) target = $region40
        $region39: #{tpu_custom_call.1} parent=11 // pred_region
          _
        $region40: #{tpu_custom_call.1} parent=11 // pred_fallthru
          _
        // Predicated region
        $region41: #{tpu_custom_call.1} parent=11 // pred_check
          %p301 = pneg %p239
        $region42: #{tpu_custom_call.1} parent=11 // pred_check_branch
          %303 = sbr.rel (%p301) target = $region44
        $region43: #{tpu_custom_call.1} parent=11 // pred_region
          _
        $region44: #{tpu_custom_call.1} parent=11 // pred_fallthru
          _
      $region12: #{tpu_custom_call.1} parent=5 // pred_fallthru
        _
      %p304 = scmp.lt.s32.totalorder %s19, 2
      // Predicated region
      $region45: #{tpu_custom_call.1} parent=5 // pred_check
        %p305 = pneg %p304
      $region46: #{tpu_custom_call.1} parent=5 // pred_check_branch
        %307 = sbr.rel (%p305) target = $region48
      $region47: #{tpu_custom_call.1} parent=5 // pred_region
        // Predicated region
        $region49: #{tpu_custom_call.1} parent=47 // pred_check
          %p308 = pneg %p39
        $region50: #{tpu_custom_call.1} parent=47 // pred_check_branch
          %310 = sbr.rel (%p308) target = $region52
        $region51: #{tpu_custom_call.1} parent=47 // pred_region
          %p311 = scmp.lt.s32.totalorder %s19, 1
          %s312 = scalar_select %p311, %s19, 1
          %s313 = smul.addr %s312, 4
          %s314 = smul.addr %s313, 2
          %s315 = scalar_lea.vmem %s0, %s314
        $region52: #{tpu_custom_call.1} parent=47 // pred_fallthru
          _
        // Predicated region
        $region53: #{tpu_custom_call.1} parent=47 // pred_check
          %p316 = pneg %p65
        $region54: #{tpu_custom_call.1} parent=47 // pred_check_branch
          %318 = sbr.rel (%p316) target = $region56
        $region55: #{tpu_custom_call.1} parent=47 // pred_region
          %p319 = scmp.lt.s32.totalorder %s19, 1
          %s320 = scalar_select %p319, %s19, 1
          %s321 = smul.addr %s320, 8
          %s322 = smul.addr %s321, 4
          %s323 = scalar_lea.vmem %s1, %s322
        $region56: #{tpu_custom_call.1} parent=47 // pred_fallthru
          _
      $region48: #{tpu_custom_call.1} parent=5 // pred_fallthru
        _
      %p324 = scmp.le.s32.totalorder 1, %s19
      %p325 = scmp.lt.s32.totalorder %s19, 3
      %p326 = pnand %p324, %p325
      %p327 = pneg %p326
      // Predicated region
      $region57: #{tpu_custom_call.1} parent=5 // pred_check
        _
      $region58: #{tpu_custom_call.1} parent=5 // pred_check_branch
        %329 = sbr.rel (%p326) target = $region60
      $region59: #{tpu_custom_call.1} parent=5 // pred_region
        %s330 = ssub.s32 %s19, 1
        %p331 = scmp.lt.s32.totalorder %s24, 1
        %s332 = scalar_select %p331, %s24, 1
        %s333 = smul.addr %s332, 4
        %s334 = smul.addr %s333, 2
        %s335 = scalar_lea.vmem %s0, %s334
        %p336 = pneg %p45
        %p337 = pneg %p42
        %p338 = scmp.lt.s32.totalorder %s24, 1
        %s339 = scalar_select %p338, %s24, 1
        %s340 = smul.addr %s339, 8
        %s341 = smul.addr %s340, 4
        %s342 = scalar_lea.vmem %s1, %s341
        %p343 = pneg %p71
        %p344 = pneg %p68
        %p345 = pneg %p92
        %p346 = pneg %p89
        %p347 = pneg %p113
        %p348 = pneg %p110
        %p349 = pneg %p134
        %p350 = pneg %p131
        %p351 = pneg %p155
        %p352 = pneg %p152
        %p353 = pneg %p176
        %p354 = pneg %p173
        %p355 = pneg %p197
        %p356 = pneg %p194
        %p357 = pneg %p218
        %p358 = pneg %p215
        %p359 = pneg %p239
        %p360 = pneg %p236
        %p361 = pneg %p265
        %p362 = pneg %p262
        %s363 = sand.u32 %s252, 1
        %s364 = scalar_lea.sflag [#allocation3], %s363
        %s365 = sand.u32 %s252, 1
        %s366 = smul.addr %s365, 32
        %s367 = scalar_lea.vmem [#allocation2], %s366
        %p368 = scmp.lt.s32.totalorder %s24, 1
        %s369 = scalar_select %p368, %s24, 1
        %s370 = smul.addr %s369, 4
        %s371 = smul.addr %s370, 2
        %s372 = scalar_lea.vmem %s0, %s371
        %p373 = scmp.lt.s32.totalorder %s24, 1
        %s374 = scalar_select %p373, %s24, 1
        %s375 = smul.addr %s374, 8
        %s376 = smul.addr %s375, 4
        %s377 = scalar_lea.vmem %s1, %s376
        %v379 = vld [vmem:[%s372] sm:$0x3]
        %v380 = vld [vmem:[%s372 + $0x2] sm:$0x3]
        %v381 = vld [vmem:[%s372 + $0x4] sm:$0x3]
        %v382 = vld [vmem:[%s372 + $0x6] sm:$0x3]
        %v383 = vld [vmem:[%s2] sm:$0xf]
        %v384 = vld [vmem:[%s2 + $0x4] sm:$0xf]
        %v385 = vld [vmem:[%s2 + $0x8] sm:$0xf]
        %v386 = vld [vmem:[%s2 + $0xc] sm:$0xf]
        %v387 = vld [vmem:[%s3] sm:$0x1]
        %v389 = vlaneseq
        %v390 = vshrl.u32 %v389, 7
        %v391 = vsub.s32 0, %v390
        %v392 = vrot.slane %v387, %v391
        %v398 = vcombine.low %v379, %v380
        %v399 = vcombine.low %v381, %v382
        %v401 = vunpack.c.l.s4 1983009808
        %v402 = vunpack.c.0.s8 %v401
        %v403 = vlaneseq
        %v404 = vshrl.u32 %v403, 7
        %v405 = vsub.s32 %v402, %v404
        %v406 = vrot.slane %v398, %v405
        %v408 = vunpack.c.l.s4 1983009808
        %v409 = vunpack.c.0.s8 %v408
        %v410 = vlaneseq
        %v411 = vshrl.u32 %v410, 7
        %v412 = vsub.s32 %v409, %v411
        %v413 = vrot.slane %v399, %v412
        %v414 = vcombine.low %v406, %v413
        %v419 = vunpack.c.l.b16 %v383
        %v420 = vunpack.c.l.b16 %v384
        %v421 = vunpack.c.l.b16 %v385
        %v422 = vunpack.c.l.b16 %v386
        %v423 = vpack.c.b16 %v420, %v419
        %v424 = vpack.c.b16 %v422, %v421
        %vm427 = vcmask 261120
        %v429 = vsel %vm427, %v414, 0
        %431 = vmatprep.subr.bf16.mxu0 0
        %432 = vmatpush1.bf16.msra.mxu0 0
        %433 = vmatprep.subr.bf16.mxu0 0
        %434 = vmatpush1.bf16.msra.mxu0 0
        %435 = vmatprep.subr.bf16.mxu0 0
        %436 = vmatpush1.bf16.msra.mxu0 0
        %437 = vmatprep.subr.bf16.mxu0 0
        %438 = vmatpush1.bf16.msra.mxu0 0
        %439 = vmatprep.subr.bf16.mxu0 0
        %440 = vmatpush1.bf16.msra.mxu0 0
        %441 = vmatprep.subr.bf16.mxu0 0
        %442 = vmatpush1.bf16.msra.mxu0 0
        %443 = vmatprep.subr.bf16.mxu0 0
        %444 = vmatpush1.bf16.msra.mxu0 %v424
        %445 = vmatprep.subr.bf16.mxu0 0
        %446 = vmatpush1.bf16.msra.mxu0 %v423
        %447 = vmatprep.subr.bf16.mxu0 0
        %448 = vmatpush2.bf16.msra.mxu0 0
        %449 = vmatprep.subr.bf16.mxu0 0
        %450 = vmatpush2.bf16.msra.mxu0 0
        %451 = vmatprep.subr.bf16.mxu0 0
        %452 = vmatpush2.bf16.msra.mxu0 0
        %453 = vmatprep.subr.bf16.mxu0 0
        %454 = vmatpush2.bf16.msra.mxu0 0
        %455 = vmatprep.subr.bf16.mxu0 0
        %456 = vmatpush2.bf16.msra.mxu0 0
        %457 = vmatprep.subr.bf16.mxu0 0
        %458 = vmatpush2.bf16.msra.mxu0 0
        %459 = vmatprep.subr.bf16.mxu0 0
        %460 = vmatpush2.bf16.msra.mxu0 0
        %461 = vmatprep.subr.bf16.mxu0 0
        %462 = vmatpush2.bf16.msra.mxu0 0
        %463 = vmatprep.mubr.bf16.mxu0 0
        %464 = vmatmul.mubr.bf16.gmra.mxu0 %v429
        %v465 = vpop.f32.mrf.mxu0
        %v466 = vadd.f32 %v392, %v465
        %v467 = vpop.f32.mrf.mxu0
        %v468 = vpop.f32.mrf.mxu0
        %v469 = vadd.f32 %v392, %v468
        %v470 = vpop.f32.mrf.mxu0
        %471 = vdwg.mxu0
        %v474 = vcombine.high %v466, %v466
        %v476 = vunpack.c.l.s4 1966171168
        %v477 = vunpack.c.0.s8 %v476
        %v478 = vlaneseq
        %v479 = vshrl.u32 %v478, 7
        %v480 = vsub.s32 %v477, %v479
        %v481 = vrot.slane %v466, %v480
        %v483 = vunpack.c.l.s4 1966171168
        %v484 = vunpack.c.0.s8 %v483
        %v485 = vlaneseq
        %v486 = vshrl.u32 %v485, 7
        %v487 = vsub.s32 %v484, %v486
        %v488 = vrot.slane %v474, %v487
        %v489 = vcombine.high %v481, %v481
        %v490 = vcombine.high %v488, %v488
        %v492 = vunpack.c.l.s4 1966171168
        %v493 = vunpack.c.0.s8 %v492
        %v494 = vlaneseq
        %v495 = vshrl.u32 %v494, 7
        %v496 = vsub.s32 %v493, %v495
        %v497 = vrot.slane %v481, %v496
        %v499 = vunpack.c.l.s4 1966171168
        %v500 = vunpack.c.0.s8 %v499
        %v501 = vlaneseq
        %v502 = vshrl.u32 %v501, 7
        %v503 = vsub.s32 %v500, %v502
        %v504 = vrot.slane %v488, %v503
        %v506 = vunpack.c.l.s4 1966171168
        %v507 = vunpack.c.0.s8 %v506
        %v508 = vlaneseq
        %v509 = vshrl.u32 %v508, 7
        %v510 = vsub.s32 %v507, %v509
        %v511 = vrot.slane %v489, %v510
        %v513 = vunpack.c.l.s4 1966171168
        %v514 = vunpack.c.0.s8 %v513
        %v515 = vlaneseq
        %v516 = vshrl.u32 %v515, 7
        %v517 = vsub.s32 %v514, %v516
        %v518 = vrot.slane %v490, %v517
        %v519 = vcombine.high %v497, %v497
        %v520 = vcombine.high %v504, %v504
        %v521 = vcombine.high %v511, %v511
        %v522 = vcombine.high %v518, %v518
        %v523 = vcombine.high %v469, %v469
        %v525 = vunpack.c.l.s4 1966171168
        %v526 = vunpack.c.0.s8 %v525
        %v527 = vlaneseq
        %v528 = vshrl.u32 %v527, 7
        %v529 = vsub.s32 %v526, %v528
        %v530 = vrot.slane %v469, %v529
        %v532 = vunpack.c.l.s4 1966171168
        %v533 = vunpack.c.0.s8 %v532
        %v534 = vlaneseq
        %v535 = vshrl.u32 %v534, 7
        %v536 = vsub.s32 %v533, %v535
        %v537 = vrot.slane %v523, %v536
        %v538 = vcombine.high %v530, %v530
        %v539 = vcombine.high %v537, %v537
        %v541 = vunpack.c.l.s4 1966171168
        %v542 = vunpack.c.0.s8 %v541
        %v543 = vlaneseq
        %v544 = vshrl.u32 %v543, 7
        %v545 = vsub.s32 %v542, %v544
        %v546 = vrot.slane %v530, %v545
        %v548 = vunpack.c.l.s4 1966171168
        %v549 = vunpack.c.0.s8 %v548
        %v550 = vlaneseq
        %v551 = vshrl.u32 %v550, 7
        %v552 = vsub.s32 %v549, %v551
        %v553 = vrot.slane %v537, %v552
        %v555 = vunpack.c.l.s4 1966171168
        %v556 = vunpack.c.0.s8 %v555
        %v557 = vlaneseq
        %v558 = vshrl.u32 %v557, 7
        %v559 = vsub.s32 %v556, %v558
        %v560 = vrot.slane %v538, %v559
        %v562 = vunpack.c.l.s4 1966171168
        %v563 = vunpack.c.0.s8 %v562
        %v564 = vlaneseq
        %v565 = vshrl.u32 %v564, 7
        %v566 = vsub.s32 %v563, %v565
        %v567 = vrot.slane %v539, %v566
        %v568 = vcombine.high %v546, %v546
        %v569 = vcombine.high %v553, %v553
        %v570 = vcombine.high %v560, %v560
        %v571 = vcombine.high %v567, %v567
        %588 = vrot.lane.b32.xlu0 %v497, 112
        %v589 = vpop.permute.xlu0 %588
        %590 = vrot.lane.b32.xlu0 %v511, 112
        %v591 = vpop.permute.xlu0 %590
        %592 = vrot.lane.b32.xlu0 %v519, 112
        %v593 = vpop.permute.xlu0 %592
        %594 = vrot.lane.b32.xlu0 %v521, 112
        %v595 = vpop.permute.xlu0 %594
        %596 = vrot.lane.b32.xlu0 %v504, 112
        %v597 = vpop.permute.xlu0 %596
        %598 = vrot.lane.b32.xlu0 %v518, 112
        %v599 = vpop.permute.xlu0 %598
        %600 = vrot.lane.b32.xlu0 %v520, 112
        %v601 = vpop.permute.xlu0 %600
        %602 = vrot.lane.b32.xlu0 %v522, 112
        %v603 = vpop.permute.xlu0 %602
        %604 = vrot.lane.b32.xlu0 %v546, 112
        %v605 = vpop.permute.xlu0 %604
        %606 = vrot.lane.b32.xlu0 %v560, 112
        %v607 = vpop.permute.xlu0 %606
        %608 = vrot.lane.b32.xlu0 %v568, 112
        %v609 = vpop.permute.xlu0 %608
        %610 = vrot.lane.b32.xlu0 %v570, 112
        %v611 = vpop.permute.xlu0 %610
        %612 = vrot.lane.b32.xlu0 %v553, 112
        %v613 = vpop.permute.xlu0 %612
        %614 = vrot.lane.b32.xlu0 %v567, 112
        %v615 = vpop.permute.xlu0 %614
        %616 = vrot.lane.b32.xlu0 %v569, 112
        %v617 = vpop.permute.xlu0 %616
        %618 = vrot.lane.b32.xlu0 %v571, 112
        %v619 = vpop.permute.xlu0 %618
        %636 = vrot.lane.b32.xlu0 %v497, 96
        %v637 = vpop.permute.xlu0 %636
        %638 = vrot.lane.b32.xlu0 %v589, 96
        %v639 = vpop.permute.xlu0 %638
        %640 = vrot.lane.b32.xlu0 %v511, 96
        %v641 = vpop.permute.xlu0 %640
        %642 = vrot.lane.b32.xlu0 %v591, 96
        %v643 = vpop.permute.xlu0 %642
        %644 = vrot.lane.b32.xlu0 %v519, 96
        %v645 = vpop.permute.xlu0 %644
        %646 = vrot.lane.b32.xlu0 %v593, 96
        %v647 = vpop.permute.xlu0 %646
        %648 = vrot.lane.b32.xlu0 %v521, 96
        %v649 = vpop.permute.xlu0 %648
        %650 = vrot.lane.b32.xlu0 %v595, 96
        %v651 = vpop.permute.xlu0 %650
        %652 = vrot.lane.b32.xlu0 %v504, 96
        %v653 = vpop.permute.xlu0 %652
        %654 = vrot.lane.b32.xlu0 %v597, 96
        %v655 = vpop.permute.xlu0 %654
        %656 = vrot.lane.b32.xlu0 %v518, 96
        %v657 = vpop.permute.xlu0 %656
        %658 = vrot.lane.b32.xlu0 %v599, 96
        %v659 = vpop.permute.xlu0 %658
        %660 = vrot.lane.b32.xlu0 %v520, 96
        %v661 = vpop.permute.xlu0 %660
        %662 = vrot.lane.b32.xlu0 %v601, 96
        %v663 = vpop.permute.xlu0 %662
        %664 = vrot.lane.b32.xlu0 %v522, 96
        %v665 = vpop.permute.xlu0 %664
        %666 = vrot.lane.b32.xlu0 %v603, 96
        %v667 = vpop.permute.xlu0 %666
        %668 = vrot.lane.b32.xlu0 %v546, 96
        %v669 = vpop.permute.xlu0 %668
        %670 = vrot.lane.b32.xlu0 %v605, 96
        %v671 = vpop.permute.xlu0 %670
        %672 = vrot.lane.b32.xlu0 %v560, 96
        %v673 = vpop.permute.xlu0 %672
        %674 = vrot.lane.b32.xlu0 %v607, 96
        %v675 = vpop.permute.xlu0 %674
        %676 = vrot.lane.b32.xlu0 %v568, 96
        %v677 = vpop.permute.xlu0 %676
        %678 = vrot.lane.b32.xlu0 %v609, 96
        %v679 = vpop.permute.xlu0 %678
        %680 = vrot.lane.b32.xlu0 %v570, 96
        %v681 = vpop.permute.xlu0 %680
        %682 = vrot.lane.b32.xlu0 %v611, 96
        %v683 = vpop.permute.xlu0 %682
        %684 = vrot.lane.b32.xlu0 %v553, 96
        %v685 = vpop.permute.xlu0 %684
        %686 = vrot.lane.b32.xlu0 %v613, 96
        %v687 = vpop.permute.xlu0 %686
        %688 = vrot.lane.b32.xlu0 %v567, 96
        %v689 = vpop.permute.xlu0 %688
        %690 = vrot.lane.b32.xlu0 %v615, 96
        %v691 = vpop.permute.xlu0 %690
        %692 = vrot.lane.b32.xlu0 %v569, 96
        %v693 = vpop.permute.xlu0 %692
        %694 = vrot.lane.b32.xlu0 %v617, 96
        %v695 = vpop.permute.xlu0 %694
        %696 = vrot.lane.b32.xlu0 %v571, 96
        %v697 = vpop.permute.xlu0 %696
        %698 = vrot.lane.b32.xlu0 %v619, 96
        %v699 = vpop.permute.xlu0 %698
        %v732 = vpack.c.bf16 %v497, %v497
        %v733 = vpack.c.bf16 %v589, %v589
        %v734 = vpack.c.bf16 %v511, %v511
        %v735 = vpack.c.bf16 %v591, %v591
        %v736 = vpack.c.bf16 %v519, %v519
        %v737 = vpack.c.bf16 %v593, %v593
        %v738 = vpack.c.bf16 %v521, %v521
        %v739 = vpack.c.bf16 %v595, %v595
        %v740 = vpack.c.bf16 %v637, %v637
        %v741 = vpack.c.bf16 %v639, %v639
        %v742 = vpack.c.bf16 %v641, %v641
        %v743 = vpack.c.bf16 %v643, %v643
        %v744 = vpack.c.bf16 %v645, %v645
        %v745 = vpack.c.bf16 %v647, %v647
        %v746 = vpack.c.bf16 %v649, %v649
        %v747 = vpack.c.bf16 %v651, %v651
        %v748 = vpack.c.bf16 %v504, %v504
        %v749 = vpack.c.bf16 %v597, %v597
        %v750 = vpack.c.bf16 %v518, %v518
        %v751 = vpack.c.bf16 %v599, %v599
        %v752 = vpack.c.bf16 %v520, %v520
        %v753 = vpack.c.bf16 %v601, %v601
        %v754 = vpack.c.bf16 %v522, %v522
        %v755 = vpack.c.bf16 %v603, %v603
        %v756 = vpack.c.bf16 %v653, %v653
        %v757 = vpack.c.bf16 %v655, %v655
        %v758 = vpack.c.bf16 %v657, %v657
        %v759 = vpack.c.bf16 %v659, %v659
        %v760 = vpack.c.bf16 %v661, %v661
        %v761 = vpack.c.bf16 %v663, %v663
        %v762 = vpack.c.bf16 %v665, %v665
        %v763 = vpack.c.bf16 %v667, %v667
        %v764 = vpack.c.bf16 %v546, %v546
        %v765 = vpack.c.bf16 %v605, %v605
        %v766 = vpack.c.bf16 %v560, %v560
        %v767 = vpack.c.bf16 %v607, %v607
        %v768 = vpack.c.bf16 %v568, %v568
        %v769 = vpack.c.bf16 %v609, %v609
        %v770 = vpack.c.bf16 %v570, %v570
        %v771 = vpack.c.bf16 %v611, %v611
        %v772 = vpack.c.bf16 %v669, %v669
        %v773 = vpack.c.bf16 %v671, %v671
        %v774 = vpack.c.bf16 %v673, %v673
        %v775 = vpack.c.bf16 %v675, %v675
        %v776 = vpack.c.bf16 %v677, %v677
        %v777 = vpack.c.bf16 %v679, %v679
        %v778 = vpack.c.bf16 %v681, %v681
        %v779 = vpack.c.bf16 %v683, %v683
        %v780 = vpack.c.bf16 %v553, %v553
        %v781 = vpack.c.bf16 %v613, %v613
        %v782 = vpack.c.bf16 %v567, %v567
        %v783 = vpack.c.bf16 %v615, %v615
        %v784 = vpack.c.bf16 %v569, %v569
        %v785 = vpack.c.bf16 %v617, %v617
        %v786 = vpack.c.bf16 %v571, %v571
        %v787 = vpack.c.bf16 %v619, %v619
        %v788 = vpack.c.bf16 %v685, %v685
        %v789 = vpack.c.bf16 %v687, %v687
        %v790 = vpack.c.bf16 %v689, %v689
        %v791 = vpack.c.bf16 %v691, %v691
        %v792 = vpack.c.bf16 %v693, %v693
        %v793 = vpack.c.bf16 %v695, %v695
        %v794 = vpack.c.bf16 %v697, %v697
        %v795 = vpack.c.bf16 %v699, %v699
        %v796 = vld [vmem:[%s377] sm:$0xf]
        %v797 = vld [vmem:[%s377 + $0x4] sm:$0xf]
        %v798 = vld [vmem:[%s377 + $0x8] sm:$0xf]
        %v799 = vld [vmem:[%s377 + $0xc] sm:$0xf]
        %v800 = vld [vmem:[%s377 + $0x10] sm:$0xf]
        %v801 = vld [vmem:[%s377 + $0x14] sm:$0xf]
        %v802 = vld [vmem:[%s377 + $0x18] sm:$0xf]
        %v803 = vld [vmem:[%s377 + $0x1c] sm:$0xf]
        %v868 = vunpack.c.l.b16 %v732
        %v869 = vunpack.c.l.b16 %v733
        %v870 = vunpack.c.l.b16 %v734
        %v871 = vunpack.c.l.b16 %v735
        %v872 = vunpack.c.l.b16 %v736
        %v873 = vunpack.c.l.b16 %v737
        %v874 = vunpack.c.l.b16 %v738
        %v875 = vunpack.c.l.b16 %v739
        %v876 = vunpack.c.l.b16 %v740
        %v877 = vunpack.c.l.b16 %v741
        %v878 = vunpack.c.l.b16 %v742
        %v879 = vunpack.c.l.b16 %v743
        %v880 = vunpack.c.l.b16 %v744
        %v881 = vunpack.c.l.b16 %v745
        %v882 = vunpack.c.l.b16 %v746
        %v883 = vunpack.c.l.b16 %v747
        %v884 = vunpack.c.l.b16 %v748
        %v885 = vunpack.c.l.b16 %v749
        %v886 = vunpack.c.l.b16 %v750
        %v887 = vunpack.c.l.b16 %v751
        %v888 = vunpack.c.l.b16 %v752
        %v889 = vunpack.c.l.b16 %v753
        %v890 = vunpack.c.l.b16 %v754
        %v891 = vunpack.c.l.b16 %v755
        %v892 = vunpack.c.l.b16 %v756
        %v893 = vunpack.c.l.b16 %v757
        %v894 = vunpack.c.l.b16 %v758
        %v895 = vunpack.c.l.b16 %v759
        %v896 = vunpack.c.l.b16 %v760
        %v897 = vunpack.c.l.b16 %v761
        %v898 = vunpack.c.l.b16 %v762
        %v899 = vunpack.c.l.b16 %v763
        %v900 = vunpack.c.l.b16 %v764
        %v901 = vunpack.c.l.b16 %v765
        %v902 = vunpack.c.l.b16 %v766
        %v903 = vunpack.c.l.b16 %v767
        %v904 = vunpack.c.l.b16 %v768
        %v905 = vunpack.c.l.b16 %v769
        %v906 = vunpack.c.l.b16 %v770
        %v907 = vunpack.c.l.b16 %v771
        %v908 = vunpack.c.l.b16 %v772
        %v909 = vunpack.c.l.b16 %v773
        %v910 = vunpack.c.l.b16 %v774
        %v911 = vunpack.c.l.b16 %v775
        %v912 = vunpack.c.l.b16 %v776
        %v913 = vunpack.c.l.b16 %v777
        %v914 = vunpack.c.l.b16 %v778
        %v915 = vunpack.c.l.b16 %v779
        %v916 = vunpack.c.l.b16 %v780
        %v917 = vunpack.c.l.b16 %v781
        %v918 = vunpack.c.l.b16 %v782
        %v919 = vunpack.c.l.b16 %v783
        %v920 = vunpack.c.l.b16 %v784
        %v921 = vunpack.c.l.b16 %v785
        %v922 = vunpack.c.l.b16 %v786
        %v923 = vunpack.c.l.b16 %v787
        %v924 = vunpack.c.l.b16 %v788
        %v925 = vunpack.c.l.b16 %v789
        %v926 = vunpack.c.l.b16 %v790
        %v927 = vunpack.c.l.b16 %v791
        %v928 = vunpack.c.l.b16 %v792
        %v929 = vunpack.c.l.b16 %v793
        %v930 = vunpack.c.l.b16 %v794
        %v931 = vunpack.c.l.b16 %v795
        %v932 = vrot.slane %v869, 7
        %vm933 = vcmask 1041409
        %v934 = vsel %vm933, %v932, %v868
        %v935 = vrot.slane %v870, 6
        %vm936 = vcmask 1042434
        %v937 = vsel %vm936, %v935, %v934
        %v938 = vrot.slane %v871, 5
        %vm939 = vcmask 1043459
        %v940 = vsel %vm939, %v938, %v937
        %v941 = vrot.slane %v872, 4
        %vm942 = vcmask 1044484
        %v943 = vsel %vm942, %v941, %v940
        %v944 = vrot.slane %v873, 3
        %vm945 = vcmask 1045509
        %v946 = vsel %vm945, %v944, %v943
        %v947 = vrot.slane %v874, 2
        %vm948 = vcmask 1046534
        %v949 = vsel %vm948, %v947, %v946
        %v950 = vrot.slane %v875, 1
        %vm951 = vcmask 1047559
        %v952 = vsel %vm951, %v950, %v949
        %v953 = vrot.slane %v877, 7
        %v954 = vsel %vm933, %v953, %v876
        %v955 = vrot.slane %v878, 6
        %v956 = vsel %vm936, %v955, %v954
        %v957 = vrot.slane %v879, 5
        %v958 = vsel %vm939, %v957, %v956
        %v959 = vrot.slane %v880, 4
        %v960 = vsel %vm942, %v959, %v958
        %v961 = vrot.slane %v881, 3
        %v962 = vsel %vm945, %v961, %v960
        %v963 = vrot.slane %v882, 2
        %v964 = vsel %vm948, %v963, %v962
        %v965 = vrot.slane %v883, 1
        %v966 = vsel %vm951, %v965, %v964
        %v967 = vrot.slane %v885, 7
        %v968 = vsel %vm933, %v967, %v884
        %v969 = vrot.slane %v886, 6
        %v970 = vsel %vm936, %v969, %v968
        %v971 = vrot.slane %v887, 5
        %v972 = vsel %vm939, %v971, %v970
        %v973 = vrot.slane %v888, 4
        %v974 = vsel %vm942, %v973, %v972
        %v975 = vrot.slane %v889, 3
        %v976 = vsel %vm945, %v975, %v974
        %v977 = vrot.slane %v890, 2
        %v978 = vsel %vm948, %v977, %v976
        %v979 = vrot.slane %v891, 1
        %v980 = vsel %vm951, %v979, %v978
        %v981 = vrot.slane %v893, 7
        %v982 = vsel %vm933, %v981, %v892
        %v983 = vrot.slane %v894, 6
        %v984 = vsel %vm936, %v983, %v982
        %v985 = vrot.slane %v895, 5
        %v986 = vsel %vm939, %v985, %v984
        %v987 = vrot.slane %v896, 4
        %v988 = vsel %vm942, %v987, %v986
        %v989 = vrot.slane %v897, 3
        %v990 = vsel %vm945, %v989, %v988
        %v991 = vrot.slane %v898, 2
        %v992 = vsel %vm948, %v991, %v990
        %v993 = vrot.slane %v899, 1
        %v994 = vsel %vm951, %v993, %v992
        %v995 = vrot.slane %v901, 7
        %v996 = vsel %vm933, %v995, %v900
        %v997 = vrot.slane %v902, 6
        %v998 = vsel %vm936, %v997, %v996
        %v999 = vrot.slane %v903, 5
        %v1000 = vsel %vm939, %v999, %v998
        %v1001 = vrot.slane %v904, 4
        %v1002 = vsel %vm942, %v1001, %v1000
        %v1003 = vrot.slane %v905, 3
        %v1004 = vsel %vm945, %v1003, %v1002
        %v1005 = vrot.slane %v906, 2
        %v1006 = vsel %vm948, %v1005, %v1004
        %v1007 = vrot.slane %v907, 1
        %v1008 = vsel %vm951, %v1007, %v1006
        %v1009 = vrot.slane %v909, 7
        %v1010 = vsel %vm933, %v1009, %v908
        %v1011 = vrot.slane %v910, 6
        %v1012 = vsel %vm936, %v1011, %v1010
        %v1013 = vrot.slane %v911, 5
        %v1014 = vsel %vm939, %v1013, %v1012
        %v1015 = vrot.slane %v912, 4
        %v1016 = vsel %vm942, %v1015, %v1014
        %v1017 = vrot.slane %v913, 3
        %v1018 = vsel %vm945, %v1017, %v1016
        %v1019 = vrot.slane %v914, 2
        %v1020 = vsel %vm948, %v1019, %v1018
        %v1021 = vrot.slane %v915, 1
        %v1022 = vsel %vm951, %v1021, %v1020
        %v1023 = vrot.slane %v917, 7
        %v1024 = vsel %vm933, %v1023, %v916
        %v1025 = vrot.slane %v918, 6
        %v1026 = vsel %vm936, %v1025, %v1024
        %v1027 = vrot.slane %v919, 5
        %v1028 = vsel %vm939, %v1027, %v1026
        %v1029 = vrot.slane %v920, 4
        %v1030 = vsel %vm942, %v1029, %v1028
        %v1031 = vrot.slane %v921, 3
        %v1032 = vsel %vm945, %v1031, %v1030
        %v1033 = vrot.slane %v922, 2
        %v1034 = vsel %vm948, %v1033, %v1032
        %v1035 = vrot.slane %v923, 1
        %v1036 = vsel %vm951, %v1035, %v1034
        %v1037 = vrot.slane %v925, 7
        %v1038 = vsel %vm933, %v1037, %v924
        %v1039 = vrot.slane %v926, 6
        %v1040 = vsel %vm936, %v1039, %v1038
        %v1041 = vrot.slane %v927, 5
        %v1042 = vsel %vm939, %v1041, %v1040
        %v1043 = vrot.slane %v928, 4
        %v1044 = vsel %vm942, %v1043, %v1042
        %v1045 = vrot.slane %v929, 3
        %v1046 = vsel %vm945, %v1045, %v1044
        %v1047 = vrot.slane %v930, 2
        %v1048 = vsel %vm948, %v1047, %v1046
        %v1049 = vrot.slane %v931, 1
        %v1050 = vsel %vm951, %v1049, %v1048
        %v1051 = vpack.c.b16 %v952, %v952
        %v1052 = vpack.c.b16 %v966, %v966
        %v1053 = vpack.c.b16 %v980, %v980
        %v1054 = vpack.c.b16 %v994, %v994
        %v1055 = vpack.c.b16 %v1008, %v1008
        %v1056 = vpack.c.b16 %v1022, %v1022
        %v1057 = vpack.c.b16 %v1036, %v1036
        %v1058 = vpack.c.b16 %v1050, %v1050
        %v1067 = vunpack.c.l.b16 %v796
        %v1068 = vunpack.c.l.b16 %v797
        %v1069 = vunpack.c.l.b16 %v798
        %v1070 = vunpack.c.l.b16 %v799
        %v1071 = vunpack.c.l.b16 %v800
        %v1072 = vunpack.c.l.b16 %v801
        %v1073 = vunpack.c.l.b16 %v802
        %v1074 = vunpack.c.l.b16 %v803
        %v1075 = vpack.c.b16 %v1067, %v1067
        %v1076 = vpack.c.b16 %v1068, %v1068
        %v1077 = vpack.c.b16 %v1069, %v1069
        %v1078 = vpack.c.b16 %v1070, %v1070
        %v1079 = vpack.c.b16 %v1071, %v1071
        %v1080 = vpack.c.b16 %v1072, %v1072
        %v1081 = vpack.c.b16 %v1073, %v1073
        %v1082 = vpack.c.b16 %v1074, %v1074
        %1083 = vrot.lane.b32.xlu0 %v1075, 16
        %v1084 = vpop.permute.xlu0 %1083
        %1085 = vrot.lane.b32.xlu0 %v1076, 16
        %v1086 = vpop.permute.xlu0 %1085
        %1087 = vrot.lane.b32.xlu0 %v1077, 16
        %v1088 = vpop.permute.xlu0 %1087
        %1089 = vrot.lane.b32.xlu0 %v1078, 16
        %v1090 = vpop.permute.xlu0 %1089
        %1091 = vrot.lane.b32.xlu0 %v1079, 16
        %v1092 = vpop.permute.xlu0 %1091
        %1093 = vrot.lane.b32.xlu0 %v1080, 16
        %v1094 = vpop.permute.xlu0 %1093
        %1095 = vrot.lane.b32.xlu0 %v1081, 16
        %v1096 = vpop.permute.xlu0 %1095
        %1097 = vrot.lane.b32.xlu0 %v1082, 16
        %v1098 = vpop.permute.xlu0 %1097
        %vm1099 = vcmask 130048
        %v1102 = vsel %vm1099, %v1051, %v1084
        %v1105 = vsel %vm1099, %v1052, %v1086
        %v1108 = vsel %vm1099, %v1053, %v1088
        %v1111 = vsel %vm1099, %v1054, %v1090
        %v1114 = vsel %vm1099, %v1055, %v1092
        %v1117 = vsel %vm1099, %v1056, %v1094
        %v1120 = vsel %vm1099, %v1057, %v1096
        %v1123 = vsel %vm1099, %v1058, %v1098
        %v1133 = vunpack.c.l.s4 1966171168
        %v1134 = vunpack.c.0.s8 %v1133
        %v1135 = vlaneseq
        %v1136 = vshrl.u32 %v1135, 7
        %v1137 = vsub.s32 %v1134, %v1136
        %v1138 = vrot.slane %v1102, %v1137
        %v1139 = vcombine.high %v1138, %v1138
        %v1141 = vunpack.c.l.s4 1966171168
        %v1142 = vunpack.c.0.s8 %v1141
        %v1143 = vlaneseq
        %v1144 = vshrl.u32 %v1143, 7
        %v1145 = vsub.s32 %v1142, %v1144
        %v1146 = vrot.slane %v1138, %v1145
        %v1148 = vunpack.c.l.s4 1966171168
        %v1149 = vunpack.c.0.s8 %v1148
        %v1150 = vlaneseq
        %v1151 = vshrl.u32 %v1150, 7
        %v1152 = vsub.s32 %v1149, %v1151
        %v1153 = vrot.slane %v1139, %v1152
        %v1154 = vcombine.high %v1146, %v1146
        %v1155 = vcombine.high %v1153, %v1153
        %v1157 = vunpack.c.l.s4 1966171168
        %v1158 = vunpack.c.0.s8 %v1157
        %v1159 = vlaneseq
        %v1160 = vshrl.u32 %v1159, 7
        %v1161 = vsub.s32 %v1158, %v1160
        %v1162 = vrot.slane %v1105, %v1161
        %v1163 = vcombine.high %v1162, %v1162
        %v1165 = vunpack.c.l.s4 1966171168
        %v1166 = vunpack.c.0.s8 %v1165
        %v1167 = vlaneseq
        %v1168 = vshrl.u32 %v1167, 7
        %v1169 = vsub.s32 %v1166, %v1168
        %v1170 = vrot.slane %v1162, %v1169
        %v1172 = vunpack.c.l.s4 1966171168
        %v1173 = vunpack.c.0.s8 %v1172
        %v1174 = vlaneseq
        %v1175 = vshrl.u32 %v1174, 7
        %v1176 = vsub.s32 %v1173, %v1175
        %v1177 = vrot.slane %v1163, %v1176
        %v1178 = vcombine.high %v1170, %v1170
        %v1179 = vcombine.high %v1177, %v1177
        %v1181 = vunpack.c.l.s4 1966171168
        %v1182 = vunpack.c.0.s8 %v1181
        %v1183 = vlaneseq
        %v1184 = vshrl.u32 %v1183, 7
        %v1185 = vsub.s32 %v1182, %v1184
        %v1186 = vrot.slane %v1108, %v1185
        %v1187 = vcombine.high %v1186, %v1186
        %v1189 = vunpack.c.l.s4 1966171168
        %v1190 = vunpack.c.0.s8 %v1189
        %v1191 = vlaneseq
        %v1192 = vshrl.u32 %v1191, 7
        %v1193 = vsub.s32 %v1190, %v1192
        %v1194 = vrot.slane %v1186, %v1193
        %v1196 = vunpack.c.l.s4 1966171168
        %v1197 = vunpack.c.0.s8 %v1196
        %v1198 = vlaneseq
        %v1199 = vshrl.u32 %v1198, 7
        %v1200 = vsub.s32 %v1197, %v1199
        %v1201 = vrot.slane %v1187, %v1200
        %v1202 = vcombine.high %v1194, %v1194
        %v1203 = vcombine.high %v1201, %v1201
        %v1205 = vunpack.c.l.s4 1966171168
        %v1206 = vunpack.c.0.s8 %v1205
        %v1207 = vlaneseq
        %v1208 = vshrl.u32 %v1207, 7
        %v1209 = vsub.s32 %v1206, %v1208
        %v1210 = vrot.slane %v1111, %v1209
        %v1211 = vcombine.high %v1210, %v1210
        %v1213 = vunpack.c.l.s4 1966171168
        %v1214 = vunpack.c.0.s8 %v1213
        %v1215 = vlaneseq
        %v1216 = vshrl.u32 %v1215, 7
        %v1217 = vsub.s32 %v1214, %v1216
        %v1218 = vrot.slane %v1210, %v1217
        %v1220 = vunpack.c.l.s4 1966171168
        %v1221 = vunpack.c.0.s8 %v1220
        %v1222 = vlaneseq
        %v1223 = vshrl.u32 %v1222, 7
        %v1224 = vsub.s32 %v1221, %v1223
        %v1225 = vrot.slane %v1211, %v1224
        %v1226 = vcombine.high %v1218, %v1218
        %v1227 = vcombine.high %v1225, %v1225
        %v1229 = vunpack.c.l.s4 1966171168
        %v1230 = vunpack.c.0.s8 %v1229
        %v1231 = vlaneseq
        %v1232 = vshrl.u32 %v1231, 7
        %v1233 = vsub.s32 %v1230, %v1232
        %v1234 = vrot.slane %v1114, %v1233
        %v1235 = vcombine.high %v1234, %v1234
        %v1237 = vunpack.c.l.s4 1966171168
        %v1238 = vunpack.c.0.s8 %v1237
        %v1239 = vlaneseq
        %v1240 = vshrl.u32 %v1239, 7
        %v1241 = vsub.s32 %v1238, %v1240
        %v1242 = vrot.slane %v1234, %v1241
        %v1244 = vunpack.c.l.s4 1966171168
        %v1245 = vunpack.c.0.s8 %v1244
        %v1246 = vlaneseq
        %v1247 = vshrl.u32 %v1246, 7
        %v1248 = vsub.s32 %v1245, %v1247
        %v1249 = vrot.slane %v1235, %v1248
        %v1250 = vcombine.high %v1242, %v1242
        %v1251 = vcombine.high %v1249, %v1249
        %v1253 = vunpack.c.l.s4 1966171168
        %v1254 = vunpack.c.0.s8 %v1253
        %v1255 = vlaneseq
        %v1256 = vshrl.u32 %v1255, 7
        %v1257 = vsub.s32 %v1254, %v1256
        %v1258 = vrot.slane %v1117, %v1257
        %v1259 = vcombine.high %v1258, %v1258
        %v1261 = vunpack.c.l.s4 1966171168
        %v1262 = vunpack.c.0.s8 %v1261
        %v1263 = vlaneseq
        %v1264 = vshrl.u32 %v1263, 7
        %v1265 = vsub.s32 %v1262, %v1264
        %v1266 = vrot.slane %v1258, %v1265
        %v1268 = vunpack.c.l.s4 1966171168
        %v1269 = vunpack.c.0.s8 %v1268
        %v1270 = vlaneseq
        %v1271 = vshrl.u32 %v1270, 7
        %v1272 = vsub.s32 %v1269, %v1271
        %v1273 = vrot.slane %v1259, %v1272
        %v1274 = vcombine.high %v1266, %v1266
        %v1275 = vcombine.high %v1273, %v1273
        %v1277 = vunpack.c.l.s4 1966171168
        %v1278 = vunpack.c.0.s8 %v1277
        %v1279 = vlaneseq
        %v1280 = vshrl.u32 %v1279, 7
        %v1281 = vsub.s32 %v1278, %v1280
        %v1282 = vrot.slane %v1120, %v1281
        %v1283 = vcombine.high %v1282, %v1282
        %v1285 = vunpack.c.l.s4 1966171168
        %v1286 = vunpack.c.0.s8 %v1285
        %v1287 = vlaneseq
        %v1288 = vshrl.u32 %v1287, 7
        %v1289 = vsub.s32 %v1286, %v1288
        %v1290 = vrot.slane %v1282, %v1289
        %v1292 = vunpack.c.l.s4 1966171168
        %v1293 = vunpack.c.0.s8 %v1292
        %v1294 = vlaneseq
        %v1295 = vshrl.u32 %v1294, 7
        %v1296 = vsub.s32 %v1293, %v1295
        %v1297 = vrot.slane %v1283, %v1296
        %v1298 = vcombine.high %v1290, %v1290
        %v1299 = vcombine.high %v1297, %v1297
        %v1301 = vunpack.c.l.s4 1966171168
        %v1302 = vunpack.c.0.s8 %v1301
        %v1303 = vlaneseq
        %v1304 = vshrl.u32 %v1303, 7
        %v1305 = vsub.s32 %v1302, %v1304
        %v1306 = vrot.slane %v1123, %v1305
        %v1307 = vcombine.high %v1306, %v1306
        %v1309 = vunpack.c.l.s4 1966171168
        %v1310 = vunpack.c.0.s8 %v1309
        %v1311 = vlaneseq
        %v1312 = vshrl.u32 %v1311, 7
        %v1313 = vsub.s32 %v1310, %v1312
        %v1314 = vrot.slane %v1306, %v1313
        %v1316 = vunpack.c.l.s4 1966171168
        %v1317 = vunpack.c.0.s8 %v1316
        %v1318 = vlaneseq
        %v1319 = vshrl.u32 %v1318, 7
        %v1320 = vsub.s32 %v1317, %v1319
        %v1321 = vrot.slane %v1307, %v1320
        %v1322 = vcombine.high %v1314, %v1314
        %v1323 = vcombine.high %v1321, %v1321
        %v1324 = vunpack.i.l.s16 %v1146
        %v1325 = vunpack.i.h.s16 %v1146
        %v1326 = vunpack.i.l.s16 %v1153
        %v1327 = vunpack.i.h.s16 %v1153
        %v1328 = vunpack.i.l.s16 %v1154
        %v1329 = vunpack.i.h.s16 %v1154
        %v1330 = vunpack.i.l.s16 %v1155
        %v1331 = vunpack.i.h.s16 %v1155
        %v1332 = vunpack.i.l.s16 %v1170
        %v1333 = vunpack.i.h.s16 %v1170
        %v1334 = vunpack.i.l.s16 %v1177
        %v1335 = vunpack.i.h.s16 %v1177
        %v1336 = vunpack.i.l.s16 %v1178
        %v1337 = vunpack.i.h.s16 %v1178
        %v1338 = vunpack.i.l.s16 %v1179
        %v1339 = vunpack.i.h.s16 %v1179
        %v1340 = vunpack.i.l.s16 %v1194
        %v1341 = vunpack.i.h.s16 %v1194
        %v1342 = vunpack.i.l.s16 %v1201
        %v1343 = vunpack.i.h.s16 %v1201
        %v1344 = vunpack.i.l.s16 %v1202
        %v1345 = vunpack.i.h.s16 %v1202
        %v1346 = vunpack.i.l.s16 %v1203
        %v1347 = vunpack.i.h.s16 %v1203
        %v1348 = vunpack.i.l.s16 %v1218
        %v1349 = vunpack.i.h.s16 %v1218
        %v1350 = vunpack.i.l.s16 %v1225
        %v1351 = vunpack.i.h.s16 %v1225
        %v1352 = vunpack.i.l.s16 %v1226
        %v1353 = vunpack.i.h.s16 %v1226
        %v1354 = vunpack.i.l.s16 %v1227
        %v1355 = vunpack.i.h.s16 %v1227
        %v1356 = vunpack.i.l.s16 %v1242
        %v1357 = vunpack.i.h.s16 %v1242
        %v1358 = vunpack.i.l.s16 %v1249
        %v1359 = vunpack.i.h.s16 %v1249
        %v1360 = vunpack.i.l.s16 %v1250
        %v1361 = vunpack.i.h.s16 %v1250
        %v1362 = vunpack.i.l.s16 %v1251
        %v1363 = vunpack.i.h.s16 %v1251
        %v1364 = vunpack.i.l.s16 %v1266
        %v1365 = vunpack.i.h.s16 %v1266
        %v1366 = vunpack.i.l.s16 %v1273
        %v1367 = vunpack.i.h.s16 %v1273
        %v1368 = vunpack.i.l.s16 %v1274
        %v1369 = vunpack.i.h.s16 %v1274
        %v1370 = vunpack.i.l.s16 %v1275
        %v1371 = vunpack.i.h.s16 %v1275
        %v1372 = vunpack.i.l.s16 %v1290
        %v1373 = vunpack.i.h.s16 %v1290
        %v1374 = vunpack.i.l.s16 %v1297
        %v1375 = vunpack.i.h.s16 %v1297
        %v1376 = vunpack.i.l.s16 %v1298
        %v1377 = vunpack.i.h.s16 %v1298
        %v1378 = vunpack.i.l.s16 %v1299
        %v1379 = vunpack.i.h.s16 %v1299
        %v1380 = vunpack.i.l.s16 %v1314
        %v1381 = vunpack.i.h.s16 %v1314
        %v1382 = vunpack.i.l.s16 %v1321
        %v1383 = vunpack.i.h.s16 %v1321
        %v1384 = vunpack.i.l.s16 %v1322
        %v1385 = vunpack.i.h.s16 %v1322
        %v1386 = vunpack.i.l.s16 %v1323
        %v1387 = vunpack.i.h.s16 %v1323
        %v1388 = vpack.i.b16 %v1324, %v1324
        %v1389 = vpack.i.b16 %v1325, %v1325
        %v1390 = vpack.i.b16 %v1326, %v1326
        %v1391 = vpack.i.b16 %v1327, %v1327
        %v1392 = vpack.i.b16 %v1328, %v1328
        %v1393 = vpack.i.b16 %v1329, %v1329
        %v1394 = vpack.i.b16 %v1330, %v1330
        %v1395 = vpack.i.b16 %v1331, %v1331
        %v1396 = vpack.i.b16 %v1332, %v1332
        %v1397 = vpack.i.b16 %v1333, %v1333
        %v1398 = vpack.i.b16 %v1334, %v1334
        %v1399 = vpack.i.b16 %v1335, %v1335
        %v1400 = vpack.i.b16 %v1336, %v1336
        %v1401 = vpack.i.b16 %v1337, %v1337
        %v1402 = vpack.i.b16 %v1338, %v1338
        %v1403 = vpack.i.b16 %v1339, %v1339
        %v1404 = vpack.i.b16 %v1340, %v1340
        %v1405 = vpack.i.b16 %v1341, %v1341
        %v1406 = vpack.i.b16 %v1342, %v1342
        %v1407 = vpack.i.b16 %v1343, %v1343
        %v1408 = vpack.i.b16 %v1344, %v1344
        %v1409 = vpack.i.b16 %v1345, %v1345
        %v1410 = vpack.i.b16 %v1346, %v1346
        %v1411 = vpack.i.b16 %v1347, %v1347
        %v1412 = vpack.i.b16 %v1348, %v1348
        %v1413 = vpack.i.b16 %v1349, %v1349
        %v1414 = vpack.i.b16 %v1350, %v1350
        %v1415 = vpack.i.b16 %v1351, %v1351
        %v1416 = vpack.i.b16 %v1352, %v1352
        %v1417 = vpack.i.b16 %v1353, %v1353
        %v1418 = vpack.i.b16 %v1354, %v1354
        %v1419 = vpack.i.b16 %v1355, %v1355
        %v1420 = vpack.i.b16 %v1356, %v1356
        %v1421 = vpack.i.b16 %v1357, %v1357
        %v1422 = vpack.i.b16 %v1358, %v1358
        %v1423 = vpack.i.b16 %v1359, %v1359
        %v1424 = vpack.i.b16 %v1360, %v1360
        %v1425 = vpack.i.b16 %v1361, %v1361
        %v1426 = vpack.i.b16 %v1362, %v1362
        %v1427 = vpack.i.b16 %v1363, %v1363
        %v1428 = vpack.i.b16 %v1364, %v1364
        %v1429 = vpack.i.b16 %v1365, %v1365
        %v1430 = vpack.i.b16 %v1366, %v1366
        %v1431 = vpack.i.b16 %v1367, %v1367
        %v1432 = vpack.i.b16 %v1368, %v1368
        %v1433 = vpack.i.b16 %v1369, %v1369
        %v1434 = vpack.i.b16 %v1370, %v1370
        %v1435 = vpack.i.b16 %v1371, %v1371
        %v1436 = vpack.i.b16 %v1372, %v1372
        %v1437 = vpack.i.b16 %v1373, %v1373
        %v1438 = vpack.i.b16 %v1374, %v1374
        %v1439 = vpack.i.b16 %v1375, %v1375
        %v1440 = vpack.i.b16 %v1376, %v1376
        %v1441 = vpack.i.b16 %v1377, %v1377
        %v1442 = vpack.i.b16 %v1378, %v1378
        %v1443 = vpack.i.b16 %v1379, %v1379
        %v1444 = vpack.i.b16 %v1380, %v1380
        %v1445 = vpack.i.b16 %v1381, %v1381
        %v1446 = vpack.i.b16 %v1382, %v1382
        %v1447 = vpack.i.b16 %v1383, %v1383
        %v1448 = vpack.i.b16 %v1384, %v1384
        %v1449 = vpack.i.b16 %v1385, %v1385
        %v1450 = vpack.i.b16 %v1386, %v1386
        %v1451 = vpack.i.b16 %v1387, %v1387
        %v1452 = vlaneseq
        %v1453 = vshrl.u32 %v1452, 7
        %v1454 = vsub.s32 0, %v1453
        %v1455 = vrot.slane %v1388, %v1454
        %v1456 = vlaneseq
        %v1457 = vshrl.u32 %v1456, 7
        %v1458 = vsub.s32 0, %v1457
        %v1459 = vrot.slane %v1389, %v1458
        %v1460 = vlaneseq
        %v1461 = vshrl.u32 %v1460, 7
        %v1462 = vsub.s32 0, %v1461
        %v1463 = vrot.slane %v1390, %v1462
        %v1464 = vlaneseq
        %v1465 = vshrl.u32 %v1464, 7
        %v1466 = vsub.s32 0, %v1465
        %v1467 = vrot.slane %v1391, %v1466
        %v1468 = vlaneseq
        %v1469 = vshrl.u32 %v1468, 7
        %v1470 = vsub.s32 0, %v1469
        %v1471 = vrot.slane %v1392, %v1470
        %v1472 = vlaneseq
        %v1473 = vshrl.u32 %v1472, 7
        %v1474 = vsub.s32 0, %v1473
        %v1475 = vrot.slane %v1393, %v1474
        %v1476 = vlaneseq
        %v1477 = vshrl.u32 %v1476, 7
        %v1478 = vsub.s32 0, %v1477
        %v1479 = vrot.slane %v1394, %v1478
        %v1480 = vlaneseq
        %v1481 = vshrl.u32 %v1480, 7
        %v1482 = vsub.s32 0, %v1481
        %v1483 = vrot.slane %v1395, %v1482
        %v1484 = vlaneseq
        %v1485 = vshrl.u32 %v1484, 7
        %v1486 = vsub.s32 0, %v1485
        %v1487 = vrot.slane %v1396, %v1486
        %v1488 = vlaneseq
        %v1489 = vshrl.u32 %v1488, 7
        %v1490 = vsub.s32 0, %v1489
        %v1491 = vrot.slane %v1397, %v1490
        %v1492 = vlaneseq
        %v1493 = vshrl.u32 %v1492, 7
        %v1494 = vsub.s32 0, %v1493
        %v1495 = vrot.slane %v1398, %v1494
        %v1496 = vlaneseq
        %v1497 = vshrl.u32 %v1496, 7
        %v1498 = vsub.s32 0, %v1497
        %v1499 = vrot.slane %v1399, %v1498
        %v1500 = vlaneseq
        %v1501 = vshrl.u32 %v1500, 7
        %v1502 = vsub.s32 0, %v1501
        %v1503 = vrot.slane %v1400, %v1502
        %v1504 = vlaneseq
        %v1505 = vshrl.u32 %v1504, 7
        %v1506 = vsub.s32 0, %v1505
        %v1507 = vrot.slane %v1401, %v1506
        %v1508 = vlaneseq
        %v1509 = vshrl.u32 %v1508, 7
        %v1510 = vsub.s32 0, %v1509
        %v1511 = vrot.slane %v1402, %v1510
        %v1512 = vlaneseq
        %v1513 = vshrl.u32 %v1512, 7
        %v1514 = vsub.s32 0, %v1513
        %v1515 = vrot.slane %v1403, %v1514
        %v1516 = vlaneseq
        %v1517 = vshrl.u32 %v1516, 7
        %v1518 = vsub.s32 0, %v1517
        %v1519 = vrot.slane %v1404, %v1518
        %v1520 = vlaneseq
        %v1521 = vshrl.u32 %v1520, 7
        %v1522 = vsub.s32 0, %v1521
        %v1523 = vrot.slane %v1405, %v1522
        %v1524 = vlaneseq
        %v1525 = vshrl.u32 %v1524, 7
        %v1526 = vsub.s32 0, %v1525
        %v1527 = vrot.slane %v1406, %v1526
        %v1528 = vlaneseq
        %v1529 = vshrl.u32 %v1528, 7
        %v1530 = vsub.s32 0, %v1529
        %v1531 = vrot.slane %v1407, %v1530
        %v1532 = vlaneseq
        %v1533 = vshrl.u32 %v1532, 7
        %v1534 = vsub.s32 0, %v1533
        %v1535 = vrot.slane %v1408, %v1534
        %v1536 = vlaneseq
        %v1537 = vshrl.u32 %v1536, 7
        %v1538 = vsub.s32 0, %v1537
        %v1539 = vrot.slane %v1409, %v1538
        %v1540 = vlaneseq
        %v1541 = vshrl.u32 %v1540, 7
        %v1542 = vsub.s32 0, %v1541
        %v1543 = vrot.slane %v1410, %v1542
        %v1544 = vlaneseq
        %v1545 = vshrl.u32 %v1544, 7
        %v1546 = vsub.s32 0, %v1545
        %v1547 = vrot.slane %v1411, %v1546
        %v1548 = vlaneseq
        %v1549 = vshrl.u32 %v1548, 7
        %v1550 = vsub.s32 0, %v1549
        %v1551 = vrot.slane %v1412, %v1550
        %v1552 = vlaneseq
        %v1553 = vshrl.u32 %v1552, 7
        %v1554 = vsub.s32 0, %v1553
        %v1555 = vrot.slane %v1413, %v1554
        %v1556 = vlaneseq
        %v1557 = vshrl.u32 %v1556, 7
        %v1558 = vsub.s32 0, %v1557
        %v1559 = vrot.slane %v1414, %v1558
        %v1560 = vlaneseq
        %v1561 = vshrl.u32 %v1560, 7
        %v1562 = vsub.s32 0, %v1561
        %v1563 = vrot.slane %v1415, %v1562
        %v1564 = vlaneseq
        %v1565 = vshrl.u32 %v1564, 7
        %v1566 = vsub.s32 0, %v1565
        %v1567 = vrot.slane %v1416, %v1566
        %v1568 = vlaneseq
        %v1569 = vshrl.u32 %v1568, 7
        %v1570 = vsub.s32 0, %v1569
        %v1571 = vrot.slane %v1417, %v1570
        %v1572 = vlaneseq
        %v1573 = vshrl.u32 %v1572, 7
        %v1574 = vsub.s32 0, %v1573
        %v1575 = vrot.slane %v1418, %v1574
        %v1576 = vlaneseq
        %v1577 = vshrl.u32 %v1576, 7
        %v1578 = vsub.s32 0, %v1577
        %v1579 = vrot.slane %v1419, %v1578
        %v1580 = vlaneseq
        %v1581 = vshrl.u32 %v1580, 7
        %v1582 = vsub.s32 0, %v1581
        %v1583 = vrot.slane %v1420, %v1582
        %v1584 = vlaneseq
        %v1585 = vshrl.u32 %v1584, 7
        %v1586 = vsub.s32 0, %v1585
        %v1587 = vrot.slane %v1421, %v1586
        %v1588 = vlaneseq
        %v1589 = vshrl.u32 %v1588, 7
        %v1590 = vsub.s32 0, %v1589
        %v1591 = vrot.slane %v1422, %v1590
        %v1592 = vlaneseq
        %v1593 = vshrl.u32 %v1592, 7
        %v1594 = vsub.s32 0, %v1593
        %v1595 = vrot.slane %v1423, %v1594
        %v1596 = vlaneseq
        %v1597 = vshrl.u32 %v1596, 7
        %v1598 = vsub.s32 0, %v1597
        %v1599 = vrot.slane %v1424, %v1598
        %v1600 = vlaneseq
        %v1601 = vshrl.u32 %v1600, 7
        %v1602 = vsub.s32 0, %v1601
        %v1603 = vrot.slane %v1425, %v1602
        %v1604 = vlaneseq
        %v1605 = vshrl.u32 %v1604, 7
        %v1606 = vsub.s32 0, %v1605
        %v1607 = vrot.slane %v1426, %v1606
        %v1608 = vlaneseq
        %v1609 = vshrl.u32 %v1608, 7
        %v1610 = vsub.s32 0, %v1609
        %v1611 = vrot.slane %v1427, %v1610
        %v1612 = vlaneseq
        %v1613 = vshrl.u32 %v1612, 7
        %v1614 = vsub.s32 0, %v1613
        %v1615 = vrot.slane %v1428, %v1614
        %v1616 = vlaneseq
        %v1617 = vshrl.u32 %v1616, 7
        %v1618 = vsub.s32 0, %v1617
        %v1619 = vrot.slane %v1429, %v1618
        %v1620 = vlaneseq
        %v1621 = vshrl.u32 %v1620, 7
        %v1622 = vsub.s32 0, %v1621
        %v1623 = vrot.slane %v1430, %v1622
        %v1624 = vlaneseq
        %v1625 = vshrl.u32 %v1624, 7
        %v1626 = vsub.s32 0, %v1625
        %v1627 = vrot.slane %v1431, %v1626
        %v1628 = vlaneseq
        %v1629 = vshrl.u32 %v1628, 7
        %v1630 = vsub.s32 0, %v1629
        %v1631 = vrot.slane %v1432, %v1630
        %v1632 = vlaneseq
        %v1633 = vshrl.u32 %v1632, 7
        %v1634 = vsub.s32 0, %v1633
        %v1635 = vrot.slane %v1433, %v1634
        %v1636 = vlaneseq
        %v1637 = vshrl.u32 %v1636, 7
        %v1638 = vsub.s32 0, %v1637
        %v1639 = vrot.slane %v1434, %v1638
        %v1640 = vlaneseq
        %v1641 = vshrl.u32 %v1640, 7
        %v1642 = vsub.s32 0, %v1641
        %v1643 = vrot.slane %v1435, %v1642
        %v1644 = vlaneseq
        %v1645 = vshrl.u32 %v1644, 7
        %v1646 = vsub.s32 0, %v1645
        %v1647 = vrot.slane %v1436, %v1646
        %v1648 = vlaneseq
        %v1649 = vshrl.u32 %v1648, 7
        %v1650 = vsub.s32 0, %v1649
        %v1651 = vrot.slane %v1437, %v1650
        %v1652 = vlaneseq
        %v1653 = vshrl.u32 %v1652, 7
        %v1654 = vsub.s32 0, %v1653
        %v1655 = vrot.slane %v1438, %v1654
        %v1656 = vlaneseq
        %v1657 = vshrl.u32 %v1656, 7
        %v1658 = vsub.s32 0, %v1657
        %v1659 = vrot.slane %v1439, %v1658
        %v1660 = vlaneseq
        %v1661 = vshrl.u32 %v1660, 7
        %v1662 = vsub.s32 0, %v1661
        %v1663 = vrot.slane %v1440, %v1662
        %v1664 = vlaneseq
        %v1665 = vshrl.u32 %v1664, 7
        %v1666 = vsub.s32 0, %v1665
        %v1667 = vrot.slane %v1441, %v1666
        %v1668 = vlaneseq
        %v1669 = vshrl.u32 %v1668, 7
        %v1670 = vsub.s32 0, %v1669
        %v1671 = vrot.slane %v1442, %v1670
        %v1672 = vlaneseq
        %v1673 = vshrl.u32 %v1672, 7
        %v1674 = vsub.s32 0, %v1673
        %v1675 = vrot.slane %v1443, %v1674
        %v1676 = vlaneseq
        %v1677 = vshrl.u32 %v1676, 7
        %v1678 = vsub.s32 0, %v1677
        %v1679 = vrot.slane %v1444, %v1678
        %v1680 = vlaneseq
        %v1681 = vshrl.u32 %v1680, 7
        %v1682 = vsub.s32 0, %v1681
        %v1683 = vrot.slane %v1445, %v1682
        %v1684 = vlaneseq
        %v1685 = vshrl.u32 %v1684, 7
        %v1686 = vsub.s32 0, %v1685
        %v1687 = vrot.slane %v1446, %v1686
        %v1688 = vlaneseq
        %v1689 = vshrl.u32 %v1688, 7
        %v1690 = vsub.s32 0, %v1689
        %v1691 = vrot.slane %v1447, %v1690
        %v1692 = vlaneseq
        %v1693 = vshrl.u32 %v1692, 7
        %v1694 = vsub.s32 0, %v1693
        %v1695 = vrot.slane %v1448, %v1694
        %v1696 = vlaneseq
        %v1697 = vshrl.u32 %v1696, 7
        %v1698 = vsub.s32 0, %v1697
        %v1699 = vrot.slane %v1449, %v1698
        %v1700 = vlaneseq
        %v1701 = vshrl.u32 %v1700, 7
        %v1702 = vsub.s32 0, %v1701
        %v1703 = vrot.slane %v1450, %v1702
        %v1704 = vlaneseq
        %v1705 = vshrl.u32 %v1704, 7
        %v1706 = vsub.s32 0, %v1705
        %v1707 = vrot.slane %v1451, %v1706
        %v1709 = vunpack.c.l.b16 0
        %v1710 = vunpack.c.l.b16 %v1455
        %v1711 = vunpack.c.l.b16 %v1459
        %v1712 = vunpack.c.l.b16 %v1463
        %v1713 = vunpack.c.l.b16 %v1467
        %v1714 = vunpack.c.l.b16 %v1471
        %v1715 = vunpack.c.l.b16 %v1475
        %v1716 = vunpack.c.l.b16 %v1479
        %v1717 = vunpack.c.l.b16 %v1483
        %v1718 = vunpack.c.l.b16 %v1487
        %v1719 = vunpack.c.l.b16 %v1491
        %v1720 = vunpack.c.l.b16 %v1495
        %v1721 = vunpack.c.l.b16 %v1499
        %v1722 = vunpack.c.l.b16 %v1503
        %v1723 = vunpack.c.l.b16 %v1507
        %v1724 = vunpack.c.l.b16 %v1511
        %v1725 = vunpack.c.l.b16 %v1515
        %v1726 = vunpack.c.l.b16 %v1519
        %v1727 = vunpack.c.l.b16 %v1523
        %v1728 = vunpack.c.l.b16 %v1527
        %v1729 = vunpack.c.l.b16 %v1531
        %v1730 = vunpack.c.l.b16 %v1535
        %v1731 = vunpack.c.l.b16 %v1539
        %v1732 = vunpack.c.l.b16 %v1543
        %v1733 = vunpack.c.l.b16 %v1547
        %v1734 = vunpack.c.l.b16 %v1551
        %v1735 = vunpack.c.l.b16 %v1555
        %v1736 = vunpack.c.l.b16 %v1559
        %v1737 = vunpack.c.l.b16 %v1563
        %v1738 = vunpack.c.l.b16 %v1567
        %v1739 = vunpack.c.l.b16 %v1571
        %v1740 = vunpack.c.l.b16 %v1575
        %v1741 = vunpack.c.l.b16 %v1579
        %v1742 = vunpack.c.l.b16 %v1583
        %v1743 = vunpack.c.l.b16 %v1587
        %v1744 = vunpack.c.l.b16 %v1591
        %v1745 = vunpack.c.l.b16 %v1595
        %v1746 = vunpack.c.l.b16 %v1599
        %v1747 = vunpack.c.l.b16 %v1603
        %v1748 = vunpack.c.l.b16 %v1607
        %v1749 = vunpack.c.l.b16 %v1611
        %v1750 = vunpack.c.l.b16 %v1615
        %v1751 = vunpack.c.l.b16 %v1619
        %v1752 = vunpack.c.l.b16 %v1623
        %v1753 = vunpack.c.l.b16 %v1627
        %v1754 = vunpack.c.l.b16 %v1631
        %v1755 = vunpack.c.l.b16 %v1635
        %v1756 = vunpack.c.l.b16 %v1639
        %v1757 = vunpack.c.l.b16 %v1643
        %v1758 = vunpack.c.l.b16 %v1647
        %v1759 = vunpack.c.l.b16 %v1651
        %v1760 = vunpack.c.l.b16 %v1655
        %v1761 = vunpack.c.l.b16 %v1659
        %v1762 = vunpack.c.l.b16 %v1663
        %v1763 = vunpack.c.l.b16 %v1667
        %v1764 = vunpack.c.l.b16 %v1671
        %v1765 = vunpack.c.l.b16 %v1675
        %v1766 = vunpack.c.l.b16 %v1679
        %v1767 = vunpack.c.l.b16 %v1683
        %v1768 = vunpack.c.l.b16 %v1687
        %v1769 = vunpack.c.l.b16 %v1691
        %v1770 = vunpack.c.l.b16 %v1695
        %v1771 = vunpack.c.l.b16 %v1699
        %v1772 = vunpack.c.l.b16 %v1703
        %v1773 = vunpack.c.l.b16 %v1707
        %v1774 = vrot.slane %v1710, 7
        %v1775 = vsel %vm933, %v1774, %v1709
        %v1776 = vrot.slane %v1711, 6
        %v1777 = vsel %vm936, %v1776, %v1775
        %v1778 = vrot.slane %v1712, 5
        %v1779 = vsel %vm939, %v1778, %v1777
        %v1780 = vrot.slane %v1713, 4
        %v1781 = vsel %vm942, %v1780, %v1779
        %v1782 = vrot.slane %v1714, 3
        %v1783 = vsel %vm945, %v1782, %v1781
        %v1784 = vrot.slane %v1715, 2
        %v1785 = vsel %vm948, %v1784, %v1783
        %v1786 = vrot.slane %v1716, 1
        %v1787 = vsel %vm951, %v1786, %v1785
        %v1788 = vrot.slane %v1709, 7
        %v1789 = vsel %vm933, %v1788, %v1717
        %v1790 = vrot.slane %v1718, 7
        %v1791 = vsel %vm933, %v1790, %v1709
        %v1792 = vrot.slane %v1719, 6
        %v1793 = vsel %vm936, %v1792, %v1791
        %v1794 = vrot.slane %v1720, 5
        %v1795 = vsel %vm939, %v1794, %v1793
        %v1796 = vrot.slane %v1721, 4
        %v1797 = vsel %vm942, %v1796, %v1795
        %v1798 = vrot.slane %v1722, 3
        %v1799 = vsel %vm945, %v1798, %v1797
        %v1800 = vrot.slane %v1723, 2
        %v1801 = vsel %vm948, %v1800, %v1799
        %v1802 = vrot.slane %v1724, 1
        %v1803 = vsel %vm951, %v1802, %v1801
        %v1804 = vsel %vm933, %v1788, %v1725
        %v1805 = vrot.slane %v1726, 7
        %v1806 = vsel %vm933, %v1805, %v1709
        %v1807 = vrot.slane %v1727, 6
        %v1808 = vsel %vm936, %v1807, %v1806
        %v1809 = vrot.slane %v1728, 5
        %v1810 = vsel %vm939, %v1809, %v1808
        %v1811 = vrot.slane %v1729, 4
        %v1812 = vsel %vm942, %v1811, %v1810
        %v1813 = vrot.slane %v1730, 3
        %v1814 = vsel %vm945, %v1813, %v1812
        %v1815 = vrot.slane %v1731, 2
        %v1816 = vsel %vm948, %v1815, %v1814
        %v1817 = vrot.slane %v1732, 1
        %v1818 = vsel %vm951, %v1817, %v1816
        %v1819 = vsel %vm933, %v1788, %v1733
        %v1820 = vrot.slane %v1734, 7
        %v1821 = vsel %vm933, %v1820, %v1709
        %v1822 = vrot.slane %v1735, 6
        %v1823 = vsel %vm936, %v1822, %v1821
        %v1824 = vrot.slane %v1736, 5
        %v1825 = vsel %vm939, %v1824, %v1823
        %v1826 = vrot.slane %v1737, 4
        %v1827 = vsel %vm942, %v1826, %v1825
        %v1828 = vrot.slane %v1738, 3
        %v1829 = vsel %vm945, %v1828, %v1827
        %v1830 = vrot.slane %v1739, 2
        %v1831 = vsel %vm948, %v1830, %v1829
        %v1832 = vrot.slane %v1740, 1
        %v1833 = vsel %vm951, %v1832, %v1831
        %v1834 = vsel %vm933, %v1788, %v1741
        %v1835 = vrot.slane %v1742, 7
        %v1836 = vsel %vm933, %v1835, %v1709
        %v1837 = vrot.slane %v1743, 6
        %v1838 = vsel %vm936, %v1837, %v1836
        %v1839 = vrot.slane %v1744, 5
        %v1840 = vsel %vm939, %v1839, %v1838
        %v1841 = vrot.slane %v1745, 4
        %v1842 = vsel %vm942, %v1841, %v1840
        %v1843 = vrot.slane %v1746, 3
        %v1844 = vsel %vm945, %v1843, %v1842
        %v1845 = vrot.slane %v1747, 2
        %v1846 = vsel %vm948, %v1845, %v1844
        %v1847 = vrot.slane %v1748, 1
        %v1848 = vsel %vm951, %v1847, %v1846
        %v1849 = vsel %vm933, %v1788, %v1749
        %v1850 = vrot.slane %v1750, 7
        %v1851 = vsel %vm933, %v1850, %v1709
        %v1852 = vrot.slane %v1751, 6
        %v1853 = vsel %vm936, %v1852, %v1851
        %v1854 = vrot.slane %v1752, 5
        %v1855 = vsel %vm939, %v1854, %v1853
        %v1856 = vrot.slane %v1753, 4
        %v1857 = vsel %vm942, %v1856, %v1855
        %v1858 = vrot.slane %v1754, 3
        %v1859 = vsel %vm945, %v1858, %v1857
        %v1860 = vrot.slane %v1755, 2
        %v1861 = vsel %vm948, %v1860, %v1859
        %v1862 = vrot.slane %v1756, 1
        %v1863 = vsel %vm951, %v1862, %v1861
        %v1864 = vsel %vm933, %v1788, %v1757
        %v1865 = vrot.slane %v1758, 7
        %v1866 = vsel %vm933, %v1865, %v1709
        %v1867 = vrot.slane %v1759, 6
        %v1868 = vsel %vm936, %v1867, %v1866
        %v1869 = vrot.slane %v1760, 5
        %v1870 = vsel %vm939, %v1869, %v1868
        %v1871 = vrot.slane %v1761, 4
        %v1872 = vsel %vm942, %v1871, %v1870
        %v1873 = vrot.slane %v1762, 3
        %v1874 = vsel %vm945, %v1873, %v1872
        %v1875 = vrot.slane %v1763, 2
        %v1876 = vsel %vm948, %v1875, %v1874
        %v1877 = vrot.slane %v1764, 1
        %v1878 = vsel %vm951, %v1877, %v1876
        %v1879 = vsel %vm933, %v1788, %v1765
        %v1880 = vrot.slane %v1766, 7
        %v1881 = vsel %vm933, %v1880, %v1709
        %v1882 = vrot.slane %v1767, 6
        %v1883 = vsel %vm936, %v1882, %v1881
        %v1884 = vrot.slane %v1768, 5
        %v1885 = vsel %vm939, %v1884, %v1883
        %v1886 = vrot.slane %v1769, 4
        %v1887 = vsel %vm942, %v1886, %v1885
        %v1888 = vrot.slane %v1770, 3
        %v1889 = vsel %vm945, %v1888, %v1887
        %v1890 = vrot.slane %v1771, 2
        %v1891 = vsel %vm948, %v1890, %v1889
        %v1892 = vrot.slane %v1772, 1
        %v1893 = vsel %vm951, %v1892, %v1891
        %v1894 = vsel %vm933, %v1788, %v1773
        %v1895 = vunpack.c.h.b16 0
        %v1896 = vpack.c.b16 %v1709, %v1709
        %v1897 = vpack.c.b16 %v1895, %v1895
        %v1898 = vpack.c.b16 %v1787, %v1787
        %v1899 = vpack.c.b16 %v1789, %v1789
        %v1900 = vpack.c.b16 %v1803, %v1803
        %v1901 = vpack.c.b16 %v1804, %v1804
        %v1902 = vpack.c.b16 %v1818, %v1818
        %v1903 = vpack.c.b16 %v1819, %v1819
        %v1904 = vpack.c.b16 %v1833, %v1833
        %v1905 = vpack.c.b16 %v1834, %v1834
        %v1906 = vpack.c.b16 %v1848, %v1848
        %v1907 = vpack.c.b16 %v1849, %v1849
        %v1908 = vpack.c.b16 %v1863, %v1863
        %v1909 = vpack.c.b16 %v1864, %v1864
        %v1910 = vpack.c.b16 %v1878, %v1878
        %v1911 = vpack.c.b16 %v1879, %v1879
        %vm1912 = vsmask.f32 3328
        %vm1913 = vsmask.f32 7440
        %vm1914 = vmor %vm1912, %vm1913
        %v1916 = vshrl.u32 %v1896, 16
        %v1918 = vrot.slane %v1916, 4
        %v1919 = vshll.u32 %v1896, 16
        %v1921 = vrot.slane %v1919, 5
        %v1922 = vor.u32 %v1918, %v1921
        %v1923 = vrot.slane %v1922, 4
        %v1925 = vshll.u32 %v1897, 16
        %v1927 = vrot.slane %v1925, 5
        %v1928 = vsel %vm1914, %v1923, %v1927
        %v1930 = vshrl.u32 %v1898, 16
        %v1932 = vrot.slane %v1930, 4
        %v1933 = vshll.u32 %v1898, 16
        %v1935 = vrot.slane %v1933, 5
        %v1936 = vor.u32 %v1932, %v1935
        %v1937 = vrot.slane %v1936, 4
        %v1939 = vshll.u32 %v1899, 16
        %v1941 = vrot.slane %v1939, 5
        %v1942 = vsel %vm1914, %v1937, %v1941
        %v1944 = vshrl.u32 %v1900, 16
        %v1946 = vrot.slane %v1944, 4
        %v1947 = vshll.u32 %v1900, 16
        %v1949 = vrot.slane %v1947, 5
        %v1950 = vor.u32 %v1946, %v1949
        %v1951 = vrot.slane %v1950, 4
        %v1953 = vshll.u32 %v1901, 16
        %v1955 = vrot.slane %v1953, 5
        %v1956 = vsel %vm1914, %v1951, %v1955
        %v1958 = vshrl.u32 %v1902, 16
        %v1960 = vrot.slane %v1958, 4
        %v1961 = vshll.u32 %v1902, 16
        %v1963 = vrot.slane %v1961, 5
        %v1964 = vor.u32 %v1960, %v1963
        %v1965 = vrot.slane %v1964, 4
        %v1967 = vshll.u32 %v1903, 16
        %v1969 = vrot.slane %v1967, 5
        %v1970 = vsel %vm1914, %v1965, %v1969
        %v1972 = vshrl.u32 %v1904, 16
        %v1974 = vrot.slane %v1972, 4
        %v1975 = vshll.u32 %v1904, 16
        %v1977 = vrot.slane %v1975, 5
        %v1978 = vor.u32 %v1974, %v1977
        %v1979 = vrot.slane %v1978, 4
        %v1981 = vshll.u32 %v1905, 16
        %v1983 = vrot.slane %v1981, 5
        %v1984 = vsel %vm1914, %v1979, %v1983
        %v1986 = vshrl.u32 %v1906, 16
        %v1988 = vrot.slane %v1986, 4
        %v1989 = vshll.u32 %v1906, 16
        %v1991 = vrot.slane %v1989, 5
        %v1992 = vor.u32 %v1988, %v1991
        %v1993 = vrot.slane %v1992, 4
        %v1995 = vshll.u32 %v1907, 16
        %v1997 = vrot.slane %v1995, 5
        %v1998 = vsel %vm1914, %v1993, %v1997
        %v2000 = vshrl.u32 %v1908, 16
        %v2002 = vrot.slane %v2000, 4
        %v2003 = vshll.u32 %v1908, 16
        %v2005 = vrot.slane %v2003, 5
        %v2006 = vor.u32 %v2002, %v2005
        %v2007 = vrot.slane %v2006, 4
        %v2009 = vshll.u32 %v1909, 16
        %v2011 = vrot.slane %v2009, 5
        %v2012 = vsel %vm1914, %v2007, %v2011
        %v2014 = vshrl.u32 %v1910, 16
        %v2016 = vrot.slane %v2014, 4
        %v2017 = vshll.u32 %v1910, 16
        %v2019 = vrot.slane %v2017, 5
        %v2020 = vor.u32 %v2016, %v2019
        %v2021 = vrot.slane %v2020, 4
        %v2023 = vshll.u32 %v1911, 16
        %v2025 = vrot.slane %v2023, 5
        %v2026 = vsel %vm1914, %v2021, %v2025
        %vm2027 = vcmask 1042432
        %vm2028 = vcmask 1046532
        %vm2029 = vmor %vm2027, %vm2028
        %v2030 = vrot.slane %v1896, 5
        %v2031 = vrot.slane %v2030, 4
        %v2032 = vrot.slane %v1897, 5
        %v2033 = vsel %vm2029, %v2031, %v2032
        %v2034 = vrot.slane %v1898, 5
        %v2035 = vrot.slane %v2034, 4
        %v2036 = vrot.slane %v1899, 5
        %v2037 = vsel %vm2029, %v2035, %v2036
        %v2038 = vrot.slane %v1900, 5
        %v2039 = vrot.slane %v2038, 4
        %v2040 = vrot.slane %v1901, 5
        %v2041 = vsel %vm2029, %v2039, %v2040
        %v2042 = vrot.slane %v1902, 5
        %v2043 = vrot.slane %v2042, 4
        %v2044 = vrot.slane %v1903, 5
        %v2045 = vsel %vm2029, %v2043, %v2044
        %v2046 = vrot.slane %v1904, 5
        %v2047 = vrot.slane %v2046, 4
        %v2048 = vrot.slane %v1905, 5
        %v2049 = vsel %vm2029, %v2047, %v2048
        %v2050 = vrot.slane %v1906, 5
        %v2051 = vrot.slane %v2050, 4
        %v2052 = vrot.slane %v1907, 5
        %v2053 = vsel %vm2029, %v2051, %v2052
        %v2054 = vrot.slane %v1908, 5
        %v2055 = vrot.slane %v2054, 4
        %v2056 = vrot.slane %v1909, 5
        %v2057 = vsel %vm2029, %v2055, %v2056
        %v2058 = vrot.slane %v1910, 5
        %v2059 = vrot.slane %v2058, 4
        %v2060 = vrot.slane %v1911, 5
        %v2061 = vsel %vm2029, %v2059, %v2060
        %v2062 = vpack.c.b16 %v1893, %v1893
        %v2063 = vpack.c.b16 %v1894, %v1894
        %v2065 = vshrl.u32 %v2062, 16
        %v2067 = vrot.slane %v2065, 4
        %v2068 = vshll.u32 %v2062, 16
        %v2070 = vrot.slane %v2068, 5
        %v2071 = vor.u32 %v2067, %v2070
        %v2072 = vrot.slane %v2071, 4
        %v2074 = vshll.u32 %v2063, 16
        %v2076 = vrot.slane %v2074, 5
        %v2077 = vsel %vm1914, %v2072, %v2076
        %v2078 = vrot.slane %v2062, 5
        %v2079 = vrot.slane %v2078, 4
        %v2080 = vrot.slane %v2063, 5
        %v2081 = vsel %vm2029, %v2079, %v2080
        %v2082 = vpack.c.b16 %v1787, %v1709
        %v2083 = vpack.c.b16 %v1818, %v1803
        %v2084 = vpack.c.b16 %v1848, %v1833
        %v2085 = vpack.c.b16 %v1878, %v1863
        %v2086 = vunpack.c.l.b16 %v1928
        %v2087 = vunpack.c.l.b16 %v1942
        %v2088 = vunpack.c.l.b16 %v1956
        %v2089 = vunpack.c.l.b16 %v1970
        %v2090 = vunpack.c.l.b16 %v1984
        %v2091 = vunpack.c.l.b16 %v1998
        %v2092 = vunpack.c.l.b16 %v2012
        %v2093 = vunpack.c.l.b16 %v2026
        %v2094 = vpack.c.b16 %v2087, %v2086
        %v2095 = vpack.c.b16 %v2089, %v2088
        %v2096 = vpack.c.b16 %v2091, %v2090
        %v2097 = vpack.c.b16 %v2093, %v2092
        %2098 = vrot.lane.b32.xlu0 %v2094, 32
        %v2099 = vpop.permute.xlu0 %2098
        %2100 = vrot.lane.b32.xlu0 %v2095, 32
        %v2101 = vpop.permute.xlu0 %2100
        %2102 = vrot.lane.b32.xlu0 %v2096, 32
        %v2103 = vpop.permute.xlu0 %2102
        %2104 = vrot.lane.b32.xlu0 %v2097, 32
        %v2105 = vpop.permute.xlu0 %2104
        %v2106 = vunpack.c.l.b16 %v2033
        %v2107 = vunpack.c.l.b16 %v2037
        %v2108 = vunpack.c.l.b16 %v2041
        %v2109 = vunpack.c.l.b16 %v2045
        %v2110 = vunpack.c.l.b16 %v2049
        %v2111 = vunpack.c.l.b16 %v2053
        %v2112 = vunpack.c.l.b16 %v2057
        %v2113 = vunpack.c.l.b16 %v2061
        %v2114 = vpack.c.b16 %v2107, %v2106
        %v2115 = vpack.c.b16 %v2109, %v2108
        %v2116 = vpack.c.b16 %v2111, %v2110
        %v2117 = vpack.c.b16 %v2113, %v2112
        %2118 = vrot.lane.b32.xlu0 %v2114, 64
        %v2119 = vpop.permute.xlu0 %2118
        %2120 = vrot.lane.b32.xlu0 %v2115, 64
        %v2121 = vpop.permute.xlu0 %2120
        %2122 = vrot.lane.b32.xlu0 %v2116, 64
        %v2123 = vpop.permute.xlu0 %2122
        %2124 = vrot.lane.b32.xlu0 %v2117, 64
        %v2125 = vpop.permute.xlu0 %2124
        %v2126 = vpack.c.b16 %v1803, %v1787
        %v2127 = vpack.c.b16 %v1833, %v1818
        %v2128 = vpack.c.b16 %v1863, %v1848
        %v2129 = vpack.c.b16 %v1893, %v1878
        %2130 = vrot.lane.b32.xlu0 %v2126, 96
        %v2131 = vpop.permute.xlu0 %2130
        %2132 = vrot.lane.b32.xlu0 %v2127, 96
        %v2133 = vpop.permute.xlu0 %2132
        %2134 = vrot.lane.b32.xlu0 %v2128, 96
        %v2135 = vpop.permute.xlu0 %2134
        %2136 = vrot.lane.b32.xlu0 %v2129, 96
        %v2137 = vpop.permute.xlu0 %2136
        %v2138 = vunpack.c.l.b16 %v2077
        %v2139 = vpack.c.b16 %v2088, %v2087
        %v2140 = vpack.c.b16 %v2090, %v2089
        %v2141 = vpack.c.b16 %v2092, %v2091
        %v2142 = vpack.c.b16 %v2138, %v2093
        %v2143 = vunpack.c.l.b16 %v2081
        %v2144 = vpack.c.b16 %v2108, %v2107
        %v2145 = vpack.c.b16 %v2110, %v2109
        %v2146 = vpack.c.b16 %v2112, %v2111
        %v2147 = vpack.c.b16 %v2143, %v2113
        %2148 = vrot.lane.b32.xlu0 %v2144, 32
        %v2149 = vpop.permute.xlu0 %2148
        %2150 = vrot.lane.b32.xlu0 %v2145, 32
        %v2151 = vpop.permute.xlu0 %2150
        %2152 = vrot.lane.b32.xlu0 %v2146, 32
        %v2153 = vpop.permute.xlu0 %2152
        %2154 = vrot.lane.b32.xlu0 %v2147, 32
        %v2155 = vpop.permute.xlu0 %2154
        %v2156 = vpack.c.b16 %v1709, %v1893
        %2157 = vrot.lane.b32.xlu0 %v2083, 64
        %v2158 = vpop.permute.xlu0 %2157
        %2159 = vrot.lane.b32.xlu0 %v2084, 64
        %v2160 = vpop.permute.xlu0 %2159
        %2161 = vrot.lane.b32.xlu0 %v2085, 64
        %v2162 = vpop.permute.xlu0 %2161
        %2163 = vrot.lane.b32.xlu0 %v2156, 64
        %v2164 = vpop.permute.xlu0 %2163
        %v2165 = vpack.c.b16 %v2086, %v2138
        %2166 = vrot.lane.b32.xlu0 %v2095, 96
        %v2167 = vpop.permute.xlu0 %2166
        %2168 = vrot.lane.b32.xlu0 %v2096, 96
        %v2169 = vpop.permute.xlu0 %2168
        %2170 = vrot.lane.b32.xlu0 %v2097, 96
        %v2171 = vpop.permute.xlu0 %2170
        %2172 = vrot.lane.b32.xlu0 %v2165, 96
        %v2173 = vpop.permute.xlu0 %2172
        %v2174 = vpack.c.b16 %v2106, %v2143
        %v2177 = vsel %vm427, %v2082, %v2099
        %v2180 = vsel %vm427, %v2083, %v2101
        %v2183 = vsel %vm427, %v2084, %v2103
        %v2186 = vsel %vm427, %v2085, %v2105
        %vm2187 = vcmask 523264
        %v2189 = vsel %vm2187, %v2177, %v2119
        %v2191 = vsel %vm2187, %v2180, %v2121
        %v2193 = vsel %vm2187, %v2183, %v2123
        %v2195 = vsel %vm2187, %v2186, %v2125
        %vm2196 = vcmask 785408
        %v2198 = vsel %vm2196, %v2189, %v2131
        %v2201 = vsel %vm2196, %v2191, %v2133
        %v2204 = vsel %vm2196, %v2193, %v2135
        %v2207 = vsel %vm2196, %v2195, %v2137
        %v2211 = vsel %vm427, %v2139, %v2149
        %v2214 = vsel %vm427, %v2140, %v2151
        %v2217 = vsel %vm427, %v2141, %v2153
        %v2220 = vsel %vm427, %v2142, %v2155
        %v2222 = vsel %vm2187, %v2211, %v2158
        %v2224 = vsel %vm2187, %v2214, %v2160
        %v2226 = vsel %vm2187, %v2217, %v2162
        %v2228 = vsel %vm2187, %v2220, %v2164
        %v2230 = vsel %vm2196, %v2222, %v2167
        %v2233 = vsel %vm2196, %v2224, %v2169
        %v2236 = vsel %vm2196, %v2226, %v2171
        %v2239 = vsel %vm2196, %v2228, %v2173
        %v2241 = vld [vmem:[%s4] sm:$0xf]
        %v2242 = vld [vmem:[%s4 + $0x4] sm:$0xf]
        %v2243 = vld [vmem:[%s4 + $0x8] sm:$0xf]
        %v2244 = vld [vmem:[%s4 + $0xc] sm:$0xf]
        %v2245 = vld [vmem:[%s4 + $0x10] sm:$0xf]
        %v2246 = vld [vmem:[%s4 + $0x14] sm:$0xf]
        %v2247 = vld [vmem:[%s4 + $0x18] sm:$0xf]
        %v2248 = vld [vmem:[%s4 + $0x1c] sm:$0xf]
        %v2249 = vld [vmem:[%s4 + $0x20] sm:$0xf]
        %v2250 = vld [vmem:[%s4 + $0x24] sm:$0xf]
        %v2251 = vld [vmem:[%s4 + $0x28] sm:$0xf]
        %v2252 = vld [vmem:[%s4 + $0x2c] sm:$0xf]
        %v2253 = vld [vmem:[%s4 + $0x30] sm:$0xf]
        %v2254 = vld [vmem:[%s4 + $0x34] sm:$0xf]
        %v2255 = vld [vmem:[%s4 + $0x38] sm:$0xf]
        %v2256 = vld [vmem:[%s4 + $0x3c] sm:$0xf]
        %v2257 = vld [vmem:[%s4 + $0x40] sm:$0xf]
        %v2258 = vld [vmem:[%s4 + $0x44] sm:$0xf]
        %v2259 = vld [vmem:[%s4 + $0x48] sm:$0xf]
        %v2260 = vld [vmem:[%s4 + $0x4c] sm:$0xf]
        %v2261 = vld [vmem:[%s4 + $0x50] sm:$0xf]
        %v2262 = vld [vmem:[%s4 + $0x54] sm:$0xf]
        %v2263 = vld [vmem:[%s4 + $0x58] sm:$0xf]
        %v2264 = vld [vmem:[%s4 + $0x5c] sm:$0xf]
        %v2265 = vld [vmem:[%s4 + $0x60] sm:$0xf]
        %v2266 = vld [vmem:[%s4 + $0x64] sm:$0xf]
        %v2267 = vld [vmem:[%s4 + $0x68] sm:$0xf]
        %v2268 = vld [vmem:[%s4 + $0x6c] sm:$0xf]
        %v2269 = vld [vmem:[%s4 + $0x70] sm:$0xf]
        %v2270 = vld [vmem:[%s4 + $0x74] sm:$0xf]
        %v2271 = vld [vmem:[%s4 + $0x78] sm:$0xf]
        %v2272 = vld [vmem:[%s4 + $0x7c] sm:$0xf]
        %v2273 = vld [vmem:[%s4 + $0x80] sm:$0xf]
        %v2274 = vld [vmem:[%s4 + $0x84] sm:$0xf]
        %v2275 = vld [vmem:[%s4 + $0x88] sm:$0xf]
        %v2276 = vld [vmem:[%s4 + $0x8c] sm:$0xf]
        %v2313 = vunpack.c.l.b16 %v2241
        %v2314 = vunpack.c.l.b16 %v2242
        %v2315 = vunpack.c.l.b16 %v2243
        %v2316 = vunpack.c.l.b16 %v2244
        %v2317 = vunpack.c.l.b16 %v2245
        %v2318 = vunpack.c.l.b16 %v2246
        %v2319 = vunpack.c.l.b16 %v2247
        %v2320 = vunpack.c.l.b16 %v2248
        %v2321 = vunpack.c.l.b16 %v2249
        %v2322 = vunpack.c.l.b16 %v2250
        %v2323 = vunpack.c.l.b16 %v2251
        %v2324 = vunpack.c.l.b16 %v2252
        %v2325 = vunpack.c.l.b16 %v2253
        %v2326 = vunpack.c.l.b16 %v2254
        %v2327 = vunpack.c.l.b16 %v2255
        %v2328 = vunpack.c.l.b16 %v2256
        %v2329 = vunpack.c.l.b16 %v2257
        %v2330 = vunpack.c.l.b16 %v2258
        %v2331 = vunpack.c.l.b16 %v2259
        %v2332 = vunpack.c.l.b16 %v2260
        %v2333 = vunpack.c.l.b16 %v2261
        %v2334 = vunpack.c.l.b16 %v2262
        %v2335 = vunpack.c.l.b16 %v2263
        %v2336 = vunpack.c.l.b16 %v2264
        %v2337 = vunpack.c.l.b16 %v2265
        %v2338 = vunpack.c.l.b16 %v2266
        %v2339 = vunpack.c.l.b16 %v2267
        %v2340 = vunpack.c.l.b16 %v2268
        %v2341 = vunpack.c.l.b16 %v2269
        %v2342 = vunpack.c.l.b16 %v2270
        %v2343 = vunpack.c.l.b16 %v2271
        %v2344 = vunpack.c.l.b16 %v2272
        %v2345 = vunpack.c.l.b16 %v2273
        %v2346 = vunpack.c.l.b16 %v2274
        %v2347 = vunpack.c.l.b16 %v2275
        %v2348 = vunpack.c.l.b16 %v2276
        %v2349 = vpack.c.b16 %v2314, %v2313
        %v2350 = vpack.c.b16 %v2316, %v2315
        %v2351 = vpack.c.b16 %v2318, %v2317
        %v2352 = vpack.c.b16 %v2320, %v2319
        %v2353 = vpack.c.b16 %v2322, %v2321
        %v2354 = vpack.c.b16 %v2324, %v2323
        %v2355 = vpack.c.b16 %v2326, %v2325
        %v2356 = vpack.c.b16 %v2328, %v2327
        %v2357 = vpack.c.b16 %v2330, %v2329
        %v2358 = vpack.c.b16 %v2332, %v2331
        %v2359 = vpack.c.b16 %v2334, %v2333
        %v2360 = vpack.c.b16 %v2336, %v2335
        %v2361 = vpack.c.b16 %v2338, %v2337
        %v2362 = vpack.c.b16 %v2340, %v2339
        %v2363 = vpack.c.b16 %v2342, %v2341
        %v2364 = vpack.c.b16 %v2344, %v2343
        %v2365 = vpack.c.b16 %v2346, %v2345
        %v2366 = vpack.c.b16 %v2348, %v2347
        %v2386 = vsel %vm427, %v2115, 0
        %v2389 = vsel %vm427, %v2116, 0
        %v2392 = vsel %vm427, %v2117, 0
        %v2395 = vsel %vm427, %v2174, 0
        %2397 = vmatprep.subr.bf16.mxu0 0
        %2398 = vmatpush1.bf16.msra.mxu0 %v2356
        %2399 = vmatprep.subr.bf16.mxu0 0
        %2400 = vmatpush1.bf16.msra.mxu0 %v2355
        %2401 = vmatprep.subr.bf16.mxu0 0
        %2402 = vmatpush1.bf16.msra.mxu0 %v2354
        %2403 = vmatprep.subr.bf16.mxu0 0
        %2404 = vmatpush1.bf16.msra.mxu0 %v2353
        %2405 = vmatprep.subr.bf16.mxu0 0
        %2406 = vmatpush1.bf16.msra.mxu0 %v2352
        %2407 = vmatprep.subr.bf16.mxu0 0
        %2408 = vmatpush1.bf16.msra.mxu0 %v2351
        %2409 = vmatprep.subr.bf16.mxu0 0
        %2410 = vmatpush1.bf16.msra.mxu0 %v2350
        %2411 = vmatprep.subr.bf16.mxu0 0
        %2412 = vmatpush1.bf16.msra.mxu0 %v2349
        %2413 = vmatprep.subr.bf16.mxu0 0
        %2414 = vmatpush2.bf16.msra.mxu0 %v2364
        %2415 = vmatprep.subr.bf16.mxu0 0
        %2416 = vmatpush2.bf16.msra.mxu0 %v2363
        %2417 = vmatprep.subr.bf16.mxu0 0
        %2418 = vmatpush2.bf16.msra.mxu0 %v2362
        %2419 = vmatprep.subr.bf16.mxu0 0
        %2420 = vmatpush2.bf16.msra.mxu0 %v2361
        %2421 = vmatprep.subr.bf16.mxu0 0
        %2422 = vmatpush2.bf16.msra.mxu0 %v2360
        %2423 = vmatprep.subr.bf16.mxu0 0
        %2424 = vmatpush2.bf16.msra.mxu0 %v2359
        %2425 = vmatprep.subr.bf16.mxu0 0
        %2426 = vmatpush2.bf16.msra.mxu0 %v2358
        %2427 = vmatprep.subr.bf16.mxu0 0
        %2428 = vmatpush2.bf16.msra.mxu0 %v2357
        %2429 = vmatprep.mubr.bf16.mxu0 %v2230
        %2430 = vmatmul.mubr.bf16.gmra.mxu0 %v2198
        %v2431 = vpop.f32.mrf.mxu0
        %v2432 = vadd.f32 0.0, %v2431
        %v2433 = vpop.f32.mrf.mxu0
        %v2434 = vpop.f32.mrf.mxu0
        %v2435 = vadd.f32 0.0, %v2434
        %v2436 = vpop.f32.mrf.mxu0
        %2437 = vmatprep.mubr.bf16.mxu0 %v2233
        %2438 = vmatmul.mubr.bf16.gmra.mxu0 %v2201
        %v2439 = vpop.f32.mrf.mxu0
        %v2440 = vadd.f32 0.0, %v2439
        %v2441 = vpop.f32.mrf.mxu0
        %v2442 = vpop.f32.mrf.mxu0
        %v2443 = vadd.f32 0.0, %v2442
        %v2444 = vpop.f32.mrf.mxu0
        %2445 = vmatprep.mubr.bf16.mxu0 %v2236
        %2446 = vmatmul.mubr.bf16.gmra.mxu0 %v2204
        %v2447 = vpop.f32.mrf.mxu0
        %v2448 = vadd.f32 0.0, %v2447
        %v2449 = vpop.f32.mrf.mxu0
        %v2450 = vpop.f32.mrf.mxu0
        %v2451 = vadd.f32 0.0, %v2450
        %v2452 = vpop.f32.mrf.mxu0
        %2453 = vmatprep.mubr.bf16.mxu0 %v2239
        %2454 = vmatmul.mubr.bf16.gmra.mxu0 %v2207
        %v2455 = vpop.f32.mrf.mxu0
        %v2456 = vadd.f32 0.0, %v2455
        %v2457 = vpop.f32.mrf.mxu0
        %v2458 = vpop.f32.mrf.mxu0
        %v2459 = vadd.f32 0.0, %v2458
        %v2460 = vpop.f32.mrf.mxu0
        %2461 = vdwg.mxu0
        %2462 = vmatprep.subr.bf16.mxu0 0
        %2463 = vmatpush1.bf16.msra.mxu0 0
        %2464 = vmatprep.subr.bf16.mxu0 0
        %2465 = vmatpush1.bf16.msra.mxu0 0
        %2466 = vmatprep.subr.bf16.mxu0 0
        %2467 = vmatpush1.bf16.msra.mxu0 0
        %2468 = vmatprep.subr.bf16.mxu0 0
        %2469 = vmatpush1.bf16.msra.mxu0 0
        %2470 = vmatprep.subr.bf16.mxu0 0
        %2471 = vmatpush1.bf16.msra.mxu0 0
        %2472 = vmatprep.subr.bf16.mxu0 0
        %2473 = vmatpush1.bf16.msra.mxu0 0
        %2474 = vmatprep.subr.bf16.mxu0 0
        %2475 = vmatpush1.bf16.msra.mxu0 %v2366
        %2476 = vmatprep.subr.bf16.mxu0 0
        %2477 = vmatpush1.bf16.msra.mxu0 %v2365
        %2478 = vmatprep.subr.bf16.mxu0 0
        %2479 = vmatpush2.bf16.msra.mxu0 0
        %2480 = vmatprep.subr.bf16.mxu0 0
        %2481 = vmatpush2.bf16.msra.mxu0 0
        %2482 = vmatprep.subr.bf16.mxu0 0
        %2483 = vmatpush2.bf16.msra.mxu0 0
        %2484 = vmatprep.subr.bf16.mxu0 0
        %2485 = vmatpush2.bf16.msra.mxu0 0
        %2486 = vmatprep.subr.bf16.mxu0 0
        %2487 = vmatpush2.bf16.msra.mxu0 0
        %2488 = vmatprep.subr.bf16.mxu0 0
        %2489 = vmatpush2.bf16.msra.mxu0 0
        %2490 = vmatprep.subr.bf16.mxu0 0
        %2491 = vmatpush2.bf16.msra.mxu0 0
        %2492 = vmatprep.subr.bf16.mxu0 0
        %2493 = vmatpush2.bf16.msra.mxu0 0
        %2494 = vmatprep.mubr.bf16.mxu0 0
        %2495 = vmatmul.mubr.bf16.gmra.mxu0 %v2386
        %v2496 = vpop.f32.mrf.mxu0
        %v2497 = vadd.f32 %v2432, %v2496
        %v2498 = vpop.f32.mrf.mxu0
        %v2499 = vpop.f32.mrf.mxu0
        %v2500 = vadd.f32 %v2435, %v2499
        %v2501 = vpop.f32.mrf.mxu0
        %2502 = vmatprep.mubr.bf16.mxu0 0
        %2503 = vmatmul.mubr.bf16.gmra.mxu0 %v2389
        %v2504 = vpop.f32.mrf.mxu0
        %v2505 = vadd.f32 %v2440, %v2504
        %v2506 = vpop.f32.mrf.mxu0
        %v2507 = vpop.f32.mrf.mxu0
        %v2508 = vadd.f32 %v2443, %v2507
        %v2509 = vpop.f32.mrf.mxu0
        %2510 = vmatprep.mubr.bf16.mxu0 0
        %2511 = vmatmul.mubr.bf16.gmra.mxu0 %v2392
        %v2512 = vpop.f32.mrf.mxu0
        %v2513 = vadd.f32 %v2448, %v2512
        %v2514 = vpop.f32.mrf.mxu0
        %v2515 = vpop.f32.mrf.mxu0
        %v2516 = vadd.f32 %v2451, %v2515
        %v2517 = vpop.f32.mrf.mxu0
        %2518 = vmatprep.mubr.bf16.mxu0 0
        %2519 = vmatmul.mubr.bf16.gmra.mxu0 %v2395
        %v2520 = vpop.f32.mrf.mxu0
        %v2521 = vadd.f32 %v2456, %v2520
        %v2522 = vpop.f32.mrf.mxu0
        %v2523 = vpop.f32.mrf.mxu0
        %v2524 = vadd.f32 %v2459, %v2523
        %v2525 = vpop.f32.mrf.mxu0
        %2526 = vdwg.mxu0
        %v2527 = vsel %vm1099, %v2497, 0.0
        %v2528 = vsel %vm1099, %v2500, 0.0
        %v2529 = vadd.f32 %v2527, %v2528
        %v2530 = vsel %vm1099, %v2505, 0.0
        %v2531 = vadd.f32 %v2529, %v2530
        %v2532 = vsel %vm1099, %v2508, 0.0
        %v2533 = vadd.f32 %v2531, %v2532
        %v2534 = vsel %vm1099, %v2513, 0.0
        %v2535 = vadd.f32 %v2533, %v2534
        %v2536 = vsel %vm1099, %v2516, 0.0
        %v2537 = vadd.f32 %v2535, %v2536
        %v2538 = vsel %vm1099, %v2521, 0.0
        %v2539 = vadd.f32 %v2537, %v2538
        %v2540 = vsel %vm1099, %v2524, 0.0
        %v2541 = vadd.f32 %v2539, %v2540
        %v2542 = vrot.slane %v2541, 4
        %v2543 = vadd.f32 %v2541, %v2542
        %v2544 = vrot.slane %v2543, 2
        %v2545 = vadd.f32 %v2543, %v2544
        %v2546 = vrot.slane %v2545, 1
        %v2547 = vadd.f32 %v2545, %v2546
        %v2548 = vrcp.pop 64.0
        %v2549 = vmul.f32 %v2547, %v2548
        %v2550 = vmul.f32 %v2497, %v2497
        %v2551 = vmul.f32 %v2500, %v2500
        %v2552 = vmul.f32 %v2505, %v2505
        %v2553 = vmul.f32 %v2508, %v2508
        %v2554 = vmul.f32 %v2513, %v2513
        %v2555 = vmul.f32 %v2516, %v2516
        %v2556 = vmul.f32 %v2521, %v2521
        %v2557 = vmul.f32 %v2524, %v2524
        %v2558 = vsel %vm1099, %v2550, 0.0
        %v2559 = vsel %vm1099, %v2551, 0.0
        %v2560 = vadd.f32 %v2558, %v2559
        %v2561 = vsel %vm1099, %v2552, 0.0
        %v2562 = vadd.f32 %v2560, %v2561
        %v2563 = vsel %vm1099, %v2553, 0.0
        %v2564 = vadd.f32 %v2562, %v2563
        %v2565 = vsel %vm1099, %v2554, 0.0
        %v2566 = vadd.f32 %v2564, %v2565
        %v2567 = vsel %vm1099, %v2555, 0.0
        %v2568 = vadd.f32 %v2566, %v2567
        %v2569 = vsel %vm1099, %v2556, 0.0
        %v2570 = vadd.f32 %v2568, %v2569
        %v2571 = vsel %vm1099, %v2557, 0.0
        %v2572 = vadd.f32 %v2570, %v2571
        %v2573 = vrot.slane %v2572, 4
        %v2574 = vadd.f32 %v2572, %v2573
        %v2575 = vrot.slane %v2574, 2
        %v2576 = vadd.f32 %v2574, %v2575
        %v2577 = vrot.slane %v2576, 1
        %v2578 = vadd.f32 %v2576, %v2577
        %v2579 = vmul.f32 %v2578, %v2548
        %v2580 = vmul.f32 %v2549, %v2549
        %v2581 = vsub.f32 %v2579, %v2580
        %v2582 = vmax.f32 %v2581, 0.0
        %v2583 = vadd.f32 %v2582, 1e-05
        %v2584 = vrsqrt.pop %v2583
        %v2585 = vld [vmem:[%s5] sm:$0x1]
        %v2586 = vmul.f32 %v2584, %v2585
        %v2587 = vld [vmem:[%s6] sm:$0x1]
        %v2588 = vmul.f32 %v2549, %v2586
        %v2589 = vsub.f32 %v2587, %v2588
        %v2590 = vlaneseq
        %v2591 = vshrl.u32 %v2590, 7
        %v2592 = vsub.s32 0, %v2591
        %v2593 = vrot.slane %v2586, %v2592
        %v2594 = vmul.f32 %v2497, %v2593
        %v2595 = vmul.f32 %v2500, %v2593
        %v2596 = vmul.f32 %v2505, %v2593
        %v2597 = vmul.f32 %v2508, %v2593
        %v2598 = vmul.f32 %v2513, %v2593
        %v2599 = vmul.f32 %v2516, %v2593
        %v2600 = vmul.f32 %v2521, %v2593
        %v2601 = vmul.f32 %v2524, %v2593
        %v2603 = vlaneseq
        %v2604 = vshrl.u32 %v2603, 7
        %v2605 = vsub.s32 0, %v2604
        %v2606 = vrot.slane %v2589, %v2605
        %v2608 = vadd.f32 %v2594, %v2606
        %v2609 = vadd.f32 %v2595, %v2606
        %v2610 = vadd.f32 %v2596, %v2606
        %v2611 = vadd.f32 %v2597, %v2606
        %v2612 = vadd.f32 %v2598, %v2606
        %v2613 = vadd.f32 %v2599, %v2606
        %v2614 = vadd.f32 %v2600, %v2606
        %v2615 = vadd.f32 %v2601, %v2606
        %vm2616 = vcmp.gt.f32.partialorder %v2608, 0.0
        %vm2617 = vcmp.gt.f32.partialorder %v2609, 0.0
        %vm2618 = vcmp.gt.f32.partialorder %v2610, 0.0
        %vm2619 = vcmp.gt.f32.partialorder %v2611, 0.0
        %vm2620 = vcmp.gt.f32.partialorder %v2612, 0.0
        %vm2621 = vcmp.gt.f32.partialorder %v2613, 0.0
        %vm2622 = vcmp.gt.f32.partialorder %v2614, 0.0
        %vm2623 = vcmp.gt.f32.partialorder %v2615, 0.0
        %v2624 = vmul.f32 %v2608, 0.01
        %v2625 = vmul.f32 %v2609, 0.01
        %v2626 = vmul.f32 %v2610, 0.01
        %v2627 = vmul.f32 %v2611, 0.01
        %v2628 = vmul.f32 %v2612, 0.01
        %v2629 = vmul.f32 %v2613, 0.01
        %v2630 = vmul.f32 %v2614, 0.01
        %v2631 = vmul.f32 %v2615, 0.01
        %v2632 = vsel %vm2616, %v2608, %v2624
        %v2633 = vsel %vm2617, %v2609, %v2625
        %v2634 = vsel %vm2618, %v2610, %v2626
        %v2635 = vsel %vm2619, %v2611, %v2627
        %v2636 = vsel %vm2620, %v2612, %v2628
        %v2637 = vsel %vm2621, %v2613, %v2629
        %v2638 = vsel %vm2622, %v2614, %v2630
        %v2639 = vsel %vm2623, %v2615, %v2631
        %v2640 = vpack.c.bf16 %v2633, %v2632
        %v2641 = vpack.c.bf16 %v2635, %v2634
        %v2642 = vpack.c.bf16 %v2637, %v2636
        %v2643 = vpack.c.bf16 %v2639, %v2638
        %v2648 = vcombine.high %v2640, %v2640
        %v2650 = vunpack.c.l.s4 1966171168
        %v2651 = vunpack.c.0.s8 %v2650
        %v2652 = vlaneseq
        %v2653 = vshrl.u32 %v2652, 7
        %v2654 = vsub.s32 %v2651, %v2653
        %v2655 = vrot.slane %v2640, %v2654
        %v2657 = vunpack.c.l.s4 1966171168
        %v2658 = vunpack.c.0.s8 %v2657
        %v2659 = vlaneseq
        %v2660 = vshrl.u32 %v2659, 7
        %v2661 = vsub.s32 %v2658, %v2660
        %v2662 = vrot.slane %v2648, %v2661
        %v2663 = vcombine.high %v2655, %v2655
        %v2664 = vcombine.high %v2662, %v2662
        %v2666 = vunpack.c.l.s4 1966171168
        %v2667 = vunpack.c.0.s8 %v2666
        %v2668 = vlaneseq
        %v2669 = vshrl.u32 %v2668, 7
        %v2670 = vsub.s32 %v2667, %v2669
        %v2671 = vrot.slane %v2655, %v2670
        %v2673 = vunpack.c.l.s4 1966171168
        %v2674 = vunpack.c.0.s8 %v2673
        %v2675 = vlaneseq
        %v2676 = vshrl.u32 %v2675, 7
        %v2677 = vsub.s32 %v2674, %v2676
        %v2678 = vrot.slane %v2662, %v2677
        %v2680 = vunpack.c.l.s4 1966171168
        %v2681 = vunpack.c.0.s8 %v2680
        %v2682 = vlaneseq
        %v2683 = vshrl.u32 %v2682, 7
        %v2684 = vsub.s32 %v2681, %v2683
        %v2685 = vrot.slane %v2663, %v2684
        %v2687 = vunpack.c.l.s4 1966171168
        %v2688 = vunpack.c.0.s8 %v2687
        %v2689 = vlaneseq
        %v2690 = vshrl.u32 %v2689, 7
        %v2691 = vsub.s32 %v2688, %v2690
        %v2692 = vrot.slane %v2664, %v2691
        %v2693 = vcombine.high %v2671, %v2671
        %v2694 = vcombine.high %v2678, %v2678
        %v2695 = vcombine.high %v2685, %v2685
        %v2696 = vcombine.high %v2692, %v2692
        %v2697 = vcombine.high %v2641, %v2641
        %v2699 = vunpack.c.l.s4 1966171168
        %v2700 = vunpack.c.0.s8 %v2699
        %v2701 = vlaneseq
        %v2702 = vshrl.u32 %v2701, 7
        %v2703 = vsub.s32 %v2700, %v2702
        %v2704 = vrot.slane %v2641, %v2703
        %v2706 = vunpack.c.l.s4 1966171168
        %v2707 = vunpack.c.0.s8 %v2706
        %v2708 = vlaneseq
        %v2709 = vshrl.u32 %v2708, 7
        %v2710 = vsub.s32 %v2707, %v2709
        %v2711 = vrot.slane %v2697, %v2710
        %v2712 = vcombine.high %v2704, %v2704
        %v2713 = vcombine.high %v2711, %v2711
        %v2715 = vunpack.c.l.s4 1966171168
        %v2716 = vunpack.c.0.s8 %v2715
        %v2717 = vlaneseq
        %v2718 = vshrl.u32 %v2717, 7
        %v2719 = vsub.s32 %v2716, %v2718
        %v2720 = vrot.slane %v2704, %v2719
        %v2722 = vunpack.c.l.s4 1966171168
        %v2723 = vunpack.c.0.s8 %v2722
        %v2724 = vlaneseq
        %v2725 = vshrl.u32 %v2724, 7
        %v2726 = vsub.s32 %v2723, %v2725
        %v2727 = vrot.slane %v2711, %v2726
        %v2729 = vunpack.c.l.s4 1966171168
        %v2730 = vunpack.c.0.s8 %v2729
        %v2731 = vlaneseq
        %v2732 = vshrl.u32 %v2731, 7
        %v2733 = vsub.s32 %v2730, %v2732
        %v2734 = vrot.slane %v2712, %v2733
        %v2736 = vunpack.c.l.s4 1966171168
        %v2737 = vunpack.c.0.s8 %v2736
        %v2738 = vlaneseq
        %v2739 = vshrl.u32 %v2738, 7
        %v2740 = vsub.s32 %v2737, %v2739
        %v2741 = vrot.slane %v2713, %v2740
        %v2742 = vcombine.high %v2720, %v2720
        %v2743 = vcombine.high %v2727, %v2727
        %v2744 = vcombine.high %v2734, %v2734
        %v2745 = vcombine.high %v2741, %v2741
        %v2746 = vcombine.high %v2642, %v2642
        %v2748 = vunpack.c.l.s4 1966171168
        %v2749 = vunpack.c.0.s8 %v2748
        %v2750 = vlaneseq
        %v2751 = vshrl.u32 %v2750, 7
        %v2752 = vsub.s32 %v2749, %v2751
        %v2753 = vrot.slane %v2642, %v2752
        %v2755 = vunpack.c.l.s4 1966171168
        %v2756 = vunpack.c.0.s8 %v2755
        %v2757 = vlaneseq
        %v2758 = vshrl.u32 %v2757, 7
        %v2759 = vsub.s32 %v2756, %v2758
        %v2760 = vrot.slane %v2746, %v2759
        %v2761 = vcombine.high %v2753, %v2753
        %v2762 = vcombine.high %v2760, %v2760
        %v2764 = vunpack.c.l.s4 1966171168
        %v2765 = vunpack.c.0.s8 %v2764
        %v2766 = vlaneseq
        %v2767 = vshrl.u32 %v2766, 7
        %v2768 = vsub.s32 %v2765, %v2767
        %v2769 = vrot.slane %v2753, %v2768
        %v2771 = vunpack.c.l.s4 1966171168
        %v2772 = vunpack.c.0.s8 %v2771
        %v2773 = vlaneseq
        %v2774 = vshrl.u32 %v2773, 7
        %v2775 = vsub.s32 %v2772, %v2774
        %v2776 = vrot.slane %v2760, %v2775
        %v2778 = vunpack.c.l.s4 1966171168
        %v2779 = vunpack.c.0.s8 %v2778
        %v2780 = vlaneseq
        %v2781 = vshrl.u32 %v2780, 7
        %v2782 = vsub.s32 %v2779, %v2781
        %v2783 = vrot.slane %v2761, %v2782
        %v2785 = vunpack.c.l.s4 1966171168
        %v2786 = vunpack.c.0.s8 %v2785
        %v2787 = vlaneseq
        %v2788 = vshrl.u32 %v2787, 7
        %v2789 = vsub.s32 %v2786, %v2788
        %v2790 = vrot.slane %v2762, %v2789
        %v2791 = vcombine.high %v2769, %v2769
        %v2792 = vcombine.high %v2776, %v2776
        %v2793 = vcombine.high %v2783, %v2783
        %v2794 = vcombine.high %v2790, %v2790
        %v2795 = vcombine.high %v2643, %v2643
        %v2797 = vunpack.c.l.s4 1966171168
        %v2798 = vunpack.c.0.s8 %v2797
        %v2799 = vlaneseq
        %v2800 = vshrl.u32 %v2799, 7
        %v2801 = vsub.s32 %v2798, %v2800
        %v2802 = vrot.slane %v2643, %v2801
        %v2804 = vunpack.c.l.s4 1966171168
        %v2805 = vunpack.c.0.s8 %v2804
        %v2806 = vlaneseq
        %v2807 = vshrl.u32 %v2806, 7
        %v2808 = vsub.s32 %v2805, %v2807
        %v2809 = vrot.slane %v2795, %v2808
        %v2810 = vcombine.high %v2802, %v2802
        %v2811 = vcombine.high %v2809, %v2809
        %v2813 = vunpack.c.l.s4 1966171168
        %v2814 = vunpack.c.0.s8 %v2813
        %v2815 = vlaneseq
        %v2816 = vshrl.u32 %v2815, 7
        %v2817 = vsub.s32 %v2814, %v2816
        %v2818 = vrot.slane %v2802, %v2817
        %v2820 = vunpack.c.l.s4 1966171168
        %v2821 = vunpack.c.0.s8 %v2820
        %v2822 = vlaneseq
        %v2823 = vshrl.u32 %v2822, 7
        %v2824 = vsub.s32 %v2821, %v2823
        %v2825 = vrot.slane %v2809, %v2824
        %v2827 = vunpack.c.l.s4 1966171168
        %v2828 = vunpack.c.0.s8 %v2827
        %v2829 = vlaneseq
        %v2830 = vshrl.u32 %v2829, 7
        %v2831 = vsub.s32 %v2828, %v2830
        %v2832 = vrot.slane %v2810, %v2831
        %v2834 = vunpack.c.l.s4 1966171168
        %v2835 = vunpack.c.0.s8 %v2834
        %v2836 = vlaneseq
        %v2837 = vshrl.u32 %v2836, 7
        %v2838 = vsub.s32 %v2835, %v2837
        %v2839 = vrot.slane %v2811, %v2838
        %v2840 = vcombine.high %v2818, %v2818
        %v2841 = vcombine.high %v2825, %v2825
        %v2842 = vcombine.high %v2832, %v2832
        %v2843 = vcombine.high %v2839, %v2839
        %v2844 = vunpack.i.l.s16 %v2671
        %v2845 = vunpack.i.h.s16 %v2671
        %v2846 = vunpack.i.l.s16 %v2685
        %v2847 = vunpack.i.h.s16 %v2685
        %v2848 = vunpack.i.l.s16 %v2693
        %v2849 = vunpack.i.h.s16 %v2693
        %v2850 = vunpack.i.l.s16 %v2695
        %v2851 = vunpack.i.h.s16 %v2695
        %v2852 = vunpack.i.l.s16 %v2678
        %v2853 = vunpack.i.h.s16 %v2678
        %v2854 = vunpack.i.l.s16 %v2692
        %v2855 = vunpack.i.h.s16 %v2692
        %v2856 = vunpack.i.l.s16 %v2694
        %v2857 = vunpack.i.h.s16 %v2694
        %v2858 = vunpack.i.l.s16 %v2696
        %v2859 = vunpack.i.h.s16 %v2696
        %v2860 = vunpack.i.l.s16 %v2720
        %v2861 = vunpack.i.h.s16 %v2720
        %v2862 = vunpack.i.l.s16 %v2734
        %v2863 = vunpack.i.h.s16 %v2734
        %v2864 = vunpack.i.l.s16 %v2742
        %v2865 = vunpack.i.h.s16 %v2742
        %v2866 = vunpack.i.l.s16 %v2744
        %v2867 = vunpack.i.h.s16 %v2744
        %v2868 = vunpack.i.l.s16 %v2727
        %v2869 = vunpack.i.h.s16 %v2727
        %v2870 = vunpack.i.l.s16 %v2741
        %v2871 = vunpack.i.h.s16 %v2741
        %v2872 = vunpack.i.l.s16 %v2743
        %v2873 = vunpack.i.h.s16 %v2743
        %v2874 = vunpack.i.l.s16 %v2745
        %v2875 = vunpack.i.h.s16 %v2745
        %v2876 = vunpack.i.l.s16 %v2769
        %v2877 = vunpack.i.h.s16 %v2769
        %v2878 = vunpack.i.l.s16 %v2783
        %v2879 = vunpack.i.h.s16 %v2783
        %v2880 = vunpack.i.l.s16 %v2791
        %v2881 = vunpack.i.h.s16 %v2791
        %v2882 = vunpack.i.l.s16 %v2793
        %v2883 = vunpack.i.h.s16 %v2793
        %v2884 = vunpack.i.l.s16 %v2776
        %v2885 = vunpack.i.h.s16 %v2776
        %v2886 = vunpack.i.l.s16 %v2790
        %v2887 = vunpack.i.h.s16 %v2790
        %v2888 = vunpack.i.l.s16 %v2792
        %v2889 = vunpack.i.h.s16 %v2792
        %v2890 = vunpack.i.l.s16 %v2794
        %v2891 = vunpack.i.h.s16 %v2794
        %v2892 = vunpack.i.l.s16 %v2818
        %v2893 = vunpack.i.h.s16 %v2818
        %v2894 = vunpack.i.l.s16 %v2832
        %v2895 = vunpack.i.h.s16 %v2832
        %v2896 = vunpack.i.l.s16 %v2840
        %v2897 = vunpack.i.h.s16 %v2840
        %v2898 = vunpack.i.l.s16 %v2842
        %v2899 = vunpack.i.h.s16 %v2842
        %v2900 = vunpack.i.l.s16 %v2825
        %v2901 = vunpack.i.h.s16 %v2825
        %v2902 = vunpack.i.l.s16 %v2839
        %v2903 = vunpack.i.h.s16 %v2839
        %v2904 = vunpack.i.l.s16 %v2841
        %v2905 = vunpack.i.h.s16 %v2841
        %v2906 = vunpack.i.l.s16 %v2843
        %v2907 = vunpack.i.h.s16 %v2843
        %v2908 = vpack.i.b16 %v2844, %v2844
        %v2909 = vpack.i.b16 %v2845, %v2845
        %v2910 = vpack.i.b16 %v2846, %v2846
        %v2911 = vpack.i.b16 %v2847, %v2847
        %v2912 = vpack.i.b16 %v2848, %v2848
        %v2913 = vpack.i.b16 %v2849, %v2849
        %v2914 = vpack.i.b16 %v2850, %v2850
        %v2915 = vpack.i.b16 %v2851, %v2851
        %v2916 = vpack.i.b16 %v2852, %v2852
        %v2917 = vpack.i.b16 %v2853, %v2853
        %v2918 = vpack.i.b16 %v2854, %v2854
        %v2919 = vpack.i.b16 %v2855, %v2855
        %v2920 = vpack.i.b16 %v2856, %v2856
        %v2921 = vpack.i.b16 %v2857, %v2857
        %v2922 = vpack.i.b16 %v2858, %v2858
        %v2923 = vpack.i.b16 %v2859, %v2859
        %v2924 = vpack.i.b16 %v2860, %v2860
        %v2925 = vpack.i.b16 %v2861, %v2861
        %v2926 = vpack.i.b16 %v2862, %v2862
        %v2927 = vpack.i.b16 %v2863, %v2863
        %v2928 = vpack.i.b16 %v2864, %v2864
        %v2929 = vpack.i.b16 %v2865, %v2865
        %v2930 = vpack.i.b16 %v2866, %v2866
        %v2931 = vpack.i.b16 %v2867, %v2867
        %v2932 = vpack.i.b16 %v2868, %v2868
        %v2933 = vpack.i.b16 %v2869, %v2869
        %v2934 = vpack.i.b16 %v2870, %v2870
        %v2935 = vpack.i.b16 %v2871, %v2871
        %v2936 = vpack.i.b16 %v2872, %v2872
        %v2937 = vpack.i.b16 %v2873, %v2873
        %v2938 = vpack.i.b16 %v2874, %v2874
        %v2939 = vpack.i.b16 %v2875, %v2875
        %v2940 = vpack.i.b16 %v2876, %v2876
        %v2941 = vpack.i.b16 %v2877, %v2877
        %v2942 = vpack.i.b16 %v2878, %v2878
        %v2943 = vpack.i.b16 %v2879, %v2879
        %v2944 = vpack.i.b16 %v2880, %v2880
        %v2945 = vpack.i.b16 %v2881, %v2881
        %v2946 = vpack.i.b16 %v2882, %v2882
        %v2947 = vpack.i.b16 %v2883, %v2883
        %v2948 = vpack.i.b16 %v2884, %v2884
        %v2949 = vpack.i.b16 %v2885, %v2885
        %v2950 = vpack.i.b16 %v2886, %v2886
        %v2951 = vpack.i.b16 %v2887, %v2887
        %v2952 = vpack.i.b16 %v2888, %v2888
        %v2953 = vpack.i.b16 %v2889, %v2889
        %v2954 = vpack.i.b16 %v2890, %v2890
        %v2955 = vpack.i.b16 %v2891, %v2891
        %v2956 = vpack.i.b16 %v2892, %v2892
        %v2957 = vpack.i.b16 %v2893, %v2893
        %v2958 = vpack.i.b16 %v2894, %v2894
        %v2959 = vpack.i.b16 %v2895, %v2895
        %v2960 = vpack.i.b16 %v2896, %v2896
        %v2961 = vpack.i.b16 %v2897, %v2897
        %v2962 = vpack.i.b16 %v2898, %v2898
        %v2963 = vpack.i.b16 %v2899, %v2899
        %v2964 = vpack.i.b16 %v2900, %v2900
        %v2965 = vpack.i.b16 %v2901, %v2901
        %v2966 = vpack.i.b16 %v2902, %v2902
        %v2967 = vpack.i.b16 %v2903, %v2903
        %v2968 = vpack.i.b16 %v2904, %v2904
        %v2969 = vpack.i.b16 %v2905, %v2905
        %v2970 = vpack.i.b16 %v2906, %v2906
        %v2971 = vpack.i.b16 %v2907, %v2907
        %v2972 = vlaneseq
        %v2973 = vshrl.u32 %v2972, 7
        %v2974 = vsub.s32 0, %v2973
        %v2975 = vrot.slane %v2908, %v2974
        %v2976 = vlaneseq
        %v2977 = vshrl.u32 %v2976, 7
        %v2978 = vsub.s32 0, %v2977
        %v2979 = vrot.slane %v2909, %v2978
        %v2980 = vlaneseq
        %v2981 = vshrl.u32 %v2980, 7
        %v2982 = vsub.s32 0, %v2981
        %v2983 = vrot.slane %v2910, %v2982
        %v2984 = vlaneseq
        %v2985 = vshrl.u32 %v2984, 7
        %v2986 = vsub.s32 0, %v2985
        %v2987 = vrot.slane %v2911, %v2986
        %v2988 = vlaneseq
        %v2989 = vshrl.u32 %v2988, 7
        %v2990 = vsub.s32 0, %v2989
        %v2991 = vrot.slane %v2912, %v2990
        %v2992 = vlaneseq
        %v2993 = vshrl.u32 %v2992, 7
        %v2994 = vsub.s32 0, %v2993
        %v2995 = vrot.slane %v2913, %v2994
        %v2996 = vlaneseq
        %v2997 = vshrl.u32 %v2996, 7
        %v2998 = vsub.s32 0, %v2997
        %v2999 = vrot.slane %v2914, %v2998
        %v3000 = vlaneseq
        %v3001 = vshrl.u32 %v3000, 7
        %v3002 = vsub.s32 0, %v3001
        %v3003 = vrot.slane %v2915, %v3002
        %v3004 = vlaneseq
        %v3005 = vshrl.u32 %v3004, 7
        %v3006 = vsub.s32 0, %v3005
        %v3007 = vrot.slane %v2916, %v3006
        %v3008 = vlaneseq
        %v3009 = vshrl.u32 %v3008, 7
        %v3010 = vsub.s32 0, %v3009
        %v3011 = vrot.slane %v2917, %v3010
        %v3012 = vlaneseq
        %v3013 = vshrl.u32 %v3012, 7
        %v3014 = vsub.s32 0, %v3013
        %v3015 = vrot.slane %v2918, %v3014
        %v3016 = vlaneseq
        %v3017 = vshrl.u32 %v3016, 7
        %v3018 = vsub.s32 0, %v3017
        %v3019 = vrot.slane %v2919, %v3018
        %v3020 = vlaneseq
        %v3021 = vshrl.u32 %v3020, 7
        %v3022 = vsub.s32 0, %v3021
        %v3023 = vrot.slane %v2920, %v3022
        %v3024 = vlaneseq
        %v3025 = vshrl.u32 %v3024, 7
        %v3026 = vsub.s32 0, %v3025
        %v3027 = vrot.slane %v2921, %v3026
        %v3028 = vlaneseq
        %v3029 = vshrl.u32 %v3028, 7
        %v3030 = vsub.s32 0, %v3029
        %v3031 = vrot.slane %v2922, %v3030
        %v3032 = vlaneseq
        %v3033 = vshrl.u32 %v3032, 7
        %v3034 = vsub.s32 0, %v3033
        %v3035 = vrot.slane %v2923, %v3034
        %v3036 = vlaneseq
        %v3037 = vshrl.u32 %v3036, 7
        %v3038 = vsub.s32 0, %v3037
        %v3039 = vrot.slane %v2924, %v3038
        %v3040 = vlaneseq
        %v3041 = vshrl.u32 %v3040, 7
        %v3042 = vsub.s32 0, %v3041
        %v3043 = vrot.slane %v2925, %v3042
        %v3044 = vlaneseq
        %v3045 = vshrl.u32 %v3044, 7
        %v3046 = vsub.s32 0, %v3045
        %v3047 = vrot.slane %v2926, %v3046
        %v3048 = vlaneseq
        %v3049 = vshrl.u32 %v3048, 7
        %v3050 = vsub.s32 0, %v3049
        %v3051 = vrot.slane %v2927, %v3050
        %v3052 = vlaneseq
        %v3053 = vshrl.u32 %v3052, 7
        %v3054 = vsub.s32 0, %v3053
        %v3055 = vrot.slane %v2928, %v3054
        %v3056 = vlaneseq
        %v3057 = vshrl.u32 %v3056, 7
        %v3058 = vsub.s32 0, %v3057
        %v3059 = vrot.slane %v2929, %v3058
        %v3060 = vlaneseq
        %v3061 = vshrl.u32 %v3060, 7
        %v3062 = vsub.s32 0, %v3061
        %v3063 = vrot.slane %v2930, %v3062
        %v3064 = vlaneseq
        %v3065 = vshrl.u32 %v3064, 7
        %v3066 = vsub.s32 0, %v3065
        %v3067 = vrot.slane %v2931, %v3066
        %v3068 = vlaneseq
        %v3069 = vshrl.u32 %v3068, 7
        %v3070 = vsub.s32 0, %v3069
        %v3071 = vrot.slane %v2932, %v3070
        %v3072 = vlaneseq
        %v3073 = vshrl.u32 %v3072, 7
        %v3074 = vsub.s32 0, %v3073
        %v3075 = vrot.slane %v2933, %v3074
        %v3076 = vlaneseq
        %v3077 = vshrl.u32 %v3076, 7
        %v3078 = vsub.s32 0, %v3077
        %v3079 = vrot.slane %v2934, %v3078
        %v3080 = vlaneseq
        %v3081 = vshrl.u32 %v3080, 7
        %v3082 = vsub.s32 0, %v3081
        %v3083 = vrot.slane %v2935, %v3082
        %v3084 = vlaneseq
        %v3085 = vshrl.u32 %v3084, 7
        %v3086 = vsub.s32 0, %v3085
        %v3087 = vrot.slane %v2936, %v3086
        %v3088 = vlaneseq
        %v3089 = vshrl.u32 %v3088, 7
        %v3090 = vsub.s32 0, %v3089
        %v3091 = vrot.slane %v2937, %v3090
        %v3092 = vlaneseq
        %v3093 = vshrl.u32 %v3092, 7
        %v3094 = vsub.s32 0, %v3093
        %v3095 = vrot.slane %v2938, %v3094
        %v3096 = vlaneseq
        %v3097 = vshrl.u32 %v3096, 7
        %v3098 = vsub.s32 0, %v3097
        %v3099 = vrot.slane %v2939, %v3098
        %v3100 = vlaneseq
        %v3101 = vshrl.u32 %v3100, 7
        %v3102 = vsub.s32 0, %v3101
        %v3103 = vrot.slane %v2940, %v3102
        %v3104 = vlaneseq
        %v3105 = vshrl.u32 %v3104, 7
        %v3106 = vsub.s32 0, %v3105
        %v3107 = vrot.slane %v2941, %v3106
        %v3108 = vlaneseq
        %v3109 = vshrl.u32 %v3108, 7
        %v3110 = vsub.s32 0, %v3109
        %v3111 = vrot.slane %v2942, %v3110
        %v3112 = vlaneseq
        %v3113 = vshrl.u32 %v3112, 7
        %v3114 = vsub.s32 0, %v3113
        %v3115 = vrot.slane %v2943, %v3114
        %v3116 = vlaneseq
        %v3117 = vshrl.u32 %v3116, 7
        %v3118 = vsub.s32 0, %v3117
        %v3119 = vrot.slane %v2944, %v3118
        %v3120 = vlaneseq
        %v3121 = vshrl.u32 %v3120, 7
        %v3122 = vsub.s32 0, %v3121
        %v3123 = vrot.slane %v2945, %v3122
        %v3124 = vlaneseq
        %v3125 = vshrl.u32 %v3124, 7
        %v3126 = vsub.s32 0, %v3125
        %v3127 = vrot.slane %v2946, %v3126
        %v3128 = vlaneseq
        %v3129 = vshrl.u32 %v3128, 7
        %v3130 = vsub.s32 0, %v3129
        %v3131 = vrot.slane %v2947, %v3130
        %v3132 = vlaneseq
        %v3133 = vshrl.u32 %v3132, 7
        %v3134 = vsub.s32 0, %v3133
        %v3135 = vrot.slane %v2948, %v3134
        %v3136 = vlaneseq
        %v3137 = vshrl.u32 %v3136, 7
        %v3138 = vsub.s32 0, %v3137
        %v3139 = vrot.slane %v2949, %v3138
        %v3140 = vlaneseq
        %v3141 = vshrl.u32 %v3140, 7
        %v3142 = vsub.s32 0, %v3141
        %v3143 = vrot.slane %v2950, %v3142
        %v3144 = vlaneseq
        %v3145 = vshrl.u32 %v3144, 7
        %v3146 = vsub.s32 0, %v3145
        %v3147 = vrot.slane %v2951, %v3146
        %v3148 = vlaneseq
        %v3149 = vshrl.u32 %v3148, 7
        %v3150 = vsub.s32 0, %v3149
        %v3151 = vrot.slane %v2952, %v3150
        %v3152 = vlaneseq
        %v3153 = vshrl.u32 %v3152, 7
        %v3154 = vsub.s32 0, %v3153
        %v3155 = vrot.slane %v2953, %v3154
        %v3156 = vlaneseq
        %v3157 = vshrl.u32 %v3156, 7
        %v3158 = vsub.s32 0, %v3157
        %v3159 = vrot.slane %v2954, %v3158
        %v3160 = vlaneseq
        %v3161 = vshrl.u32 %v3160, 7
        %v3162 = vsub.s32 0, %v3161
        %v3163 = vrot.slane %v2955, %v3162
        %v3164 = vlaneseq
        %v3165 = vshrl.u32 %v3164, 7
        %v3166 = vsub.s32 0, %v3165
        %v3167 = vrot.slane %v2956, %v3166
        %v3168 = vlaneseq
        %v3169 = vshrl.u32 %v3168, 7
        %v3170 = vsub.s32 0, %v3169
        %v3171 = vrot.slane %v2957, %v3170
        %v3172 = vlaneseq
        %v3173 = vshrl.u32 %v3172, 7
        %v3174 = vsub.s32 0, %v3173
        %v3175 = vrot.slane %v2958, %v3174
        %v3176 = vlaneseq
        %v3177 = vshrl.u32 %v3176, 7
        %v3178 = vsub.s32 0, %v3177
        %v3179 = vrot.slane %v2959, %v3178
        %v3180 = vlaneseq
        %v3181 = vshrl.u32 %v3180, 7
        %v3182 = vsub.s32 0, %v3181
        %v3183 = vrot.slane %v2960, %v3182
        %v3184 = vlaneseq
        %v3185 = vshrl.u32 %v3184, 7
        %v3186 = vsub.s32 0, %v3185
        %v3187 = vrot.slane %v2961, %v3186
        %v3188 = vlaneseq
        %v3189 = vshrl.u32 %v3188, 7
        %v3190 = vsub.s32 0, %v3189
        %v3191 = vrot.slane %v2962, %v3190
        %v3192 = vlaneseq
        %v3193 = vshrl.u32 %v3192, 7
        %v3194 = vsub.s32 0, %v3193
        %v3195 = vrot.slane %v2963, %v3194
        %v3196 = vlaneseq
        %v3197 = vshrl.u32 %v3196, 7
        %v3198 = vsub.s32 0, %v3197
        %v3199 = vrot.slane %v2964, %v3198
        %v3200 = vlaneseq
        %v3201 = vshrl.u32 %v3200, 7
        %v3202 = vsub.s32 0, %v3201
        %v3203 = vrot.slane %v2965, %v3202
        %v3204 = vlaneseq
        %v3205 = vshrl.u32 %v3204, 7
        %v3206 = vsub.s32 0, %v3205
        %v3207 = vrot.slane %v2966, %v3206
        %v3208 = vlaneseq
        %v3209 = vshrl.u32 %v3208, 7
        %v3210 = vsub.s32 0, %v3209
        %v3211 = vrot.slane %v2967, %v3210
        %v3212 = vlaneseq
        %v3213 = vshrl.u32 %v3212, 7
        %v3214 = vsub.s32 0, %v3213
        %v3215 = vrot.slane %v2968, %v3214
        %v3216 = vlaneseq
        %v3217 = vshrl.u32 %v3216, 7
        %v3218 = vsub.s32 0, %v3217
        %v3219 = vrot.slane %v2969, %v3218
        %v3220 = vlaneseq
        %v3221 = vshrl.u32 %v3220, 7
        %v3222 = vsub.s32 0, %v3221
        %v3223 = vrot.slane %v2970, %v3222
        %v3224 = vlaneseq
        %v3225 = vshrl.u32 %v3224, 7
        %v3226 = vsub.s32 0, %v3225
        %v3227 = vrot.slane %v2971, %v3226
        %v3228 = vunpack.c.l.b16 %v2975
        %v3229 = vunpack.c.l.b16 %v2979
        %v3230 = vunpack.c.l.b16 %v2983
        %v3231 = vunpack.c.l.b16 %v2987
        %v3232 = vunpack.c.l.b16 %v2991
        %v3233 = vunpack.c.l.b16 %v2995
        %v3234 = vunpack.c.l.b16 %v2999
        %v3235 = vunpack.c.l.b16 %v3003
        %v3236 = vunpack.c.l.b16 %v3007
        %v3237 = vunpack.c.l.b16 %v3011
        %v3238 = vunpack.c.l.b16 %v3015
        %v3239 = vunpack.c.l.b16 %v3019
        %v3240 = vunpack.c.l.b16 %v3023
        %v3241 = vunpack.c.l.b16 %v3027
        %v3242 = vunpack.c.l.b16 %v3031
        %v3243 = vunpack.c.l.b16 %v3035
        %v3244 = vunpack.c.l.b16 %v3039
        %v3245 = vunpack.c.l.b16 %v3043
        %v3246 = vunpack.c.l.b16 %v3047
        %v3247 = vunpack.c.l.b16 %v3051
        %v3248 = vunpack.c.l.b16 %v3055
        %v3249 = vunpack.c.l.b16 %v3059
        %v3250 = vunpack.c.l.b16 %v3063
        %v3251 = vunpack.c.l.b16 %v3067
        %v3252 = vunpack.c.l.b16 %v3071
        %v3253 = vunpack.c.l.b16 %v3075
        %v3254 = vunpack.c.l.b16 %v3079
        %v3255 = vunpack.c.l.b16 %v3083
        %v3256 = vunpack.c.l.b16 %v3087
        %v3257 = vunpack.c.l.b16 %v3091
        %v3258 = vunpack.c.l.b16 %v3095
        %v3259 = vunpack.c.l.b16 %v3099
        %v3260 = vunpack.c.l.b16 %v3103
        %v3261 = vunpack.c.l.b16 %v3107
        %v3262 = vunpack.c.l.b16 %v3111
        %v3263 = vunpack.c.l.b16 %v3115
        %v3264 = vunpack.c.l.b16 %v3119
        %v3265 = vunpack.c.l.b16 %v3123
        %v3266 = vunpack.c.l.b16 %v3127
        %v3267 = vunpack.c.l.b16 %v3131
        %v3268 = vunpack.c.l.b16 %v3135
        %v3269 = vunpack.c.l.b16 %v3139
        %v3270 = vunpack.c.l.b16 %v3143
        %v3271 = vunpack.c.l.b16 %v3147
        %v3272 = vunpack.c.l.b16 %v3151
        %v3273 = vunpack.c.l.b16 %v3155
        %v3274 = vunpack.c.l.b16 %v3159
        %v3275 = vunpack.c.l.b16 %v3163
        %v3276 = vunpack.c.l.b16 %v3167
        %v3277 = vunpack.c.l.b16 %v3171
        %v3278 = vunpack.c.l.b16 %v3175
        %v3279 = vunpack.c.l.b16 %v3179
        %v3280 = vunpack.c.l.b16 %v3183
        %v3281 = vunpack.c.l.b16 %v3187
        %v3282 = vunpack.c.l.b16 %v3191
        %v3283 = vunpack.c.l.b16 %v3195
        %v3284 = vunpack.c.l.b16 %v3199
        %v3285 = vunpack.c.l.b16 %v3203
        %v3286 = vunpack.c.l.b16 %v3207
        %v3287 = vunpack.c.l.b16 %v3211
        %v3288 = vunpack.c.l.b16 %v3215
        %v3289 = vunpack.c.l.b16 %v3219
        %v3290 = vunpack.c.l.b16 %v3223
        %v3291 = vunpack.c.l.b16 %v3227
        %v3292 = vrot.slane %v3228, 7
        %v3293 = vsel %vm933, %v3292, %v1709
        %v3294 = vrot.slane %v3229, 6
        %v3295 = vsel %vm936, %v3294, %v3293
        %v3296 = vrot.slane %v3230, 5
        %v3297 = vsel %vm939, %v3296, %v3295
        %v3298 = vrot.slane %v3231, 4
        %v3299 = vsel %vm942, %v3298, %v3297
        %v3300 = vrot.slane %v3232, 3
        %v3301 = vsel %vm945, %v3300, %v3299
        %v3302 = vrot.slane %v3233, 2
        %v3303 = vsel %vm948, %v3302, %v3301
        %v3304 = vrot.slane %v3234, 1
        %v3305 = vsel %vm951, %v3304, %v3303
        %v3306 = vsel %vm933, %v1788, %v3235
        %v3307 = vrot.slane %v3236, 7
        %v3308 = vsel %vm933, %v3307, %v1709
        %v3309 = vrot.slane %v3237, 6
        %v3310 = vsel %vm936, %v3309, %v3308
        %v3311 = vrot.slane %v3238, 5
        %v3312 = vsel %vm939, %v3311, %v3310
        %v3313 = vrot.slane %v3239, 4
        %v3314 = vsel %vm942, %v3313, %v3312
        %v3315 = vrot.slane %v3240, 3
        %v3316 = vsel %vm945, %v3315, %v3314
        %v3317 = vrot.slane %v3241, 2
        %v3318 = vsel %vm948, %v3317, %v3316
        %v3319 = vrot.slane %v3242, 1
        %v3320 = vsel %vm951, %v3319, %v3318
        %v3321 = vsel %vm933, %v1788, %v3243
        %v3322 = vrot.slane %v3244, 7
        %v3323 = vsel %vm933, %v3322, %v1709
        %v3324 = vrot.slane %v3245, 6
        %v3325 = vsel %vm936, %v3324, %v3323
        %v3326 = vrot.slane %v3246, 5
        %v3327 = vsel %vm939, %v3326, %v3325
        %v3328 = vrot.slane %v3247, 4
        %v3329 = vsel %vm942, %v3328, %v3327
        %v3330 = vrot.slane %v3248, 3
        %v3331 = vsel %vm945, %v3330, %v3329
        %v3332 = vrot.slane %v3249, 2
        %v3333 = vsel %vm948, %v3332, %v3331
        %v3334 = vrot.slane %v3250, 1
        %v3335 = vsel %vm951, %v3334, %v3333
        %v3336 = vsel %vm933, %v1788, %v3251
        %v3337 = vrot.slane %v3252, 7
        %v3338 = vsel %vm933, %v3337, %v1709
        %v3339 = vrot.slane %v3253, 6
        %v3340 = vsel %vm936, %v3339, %v3338
        %v3341 = vrot.slane %v3254, 5
        %v3342 = vsel %vm939, %v3341, %v3340
        %v3343 = vrot.slane %v3255, 4
        %v3344 = vsel %vm942, %v3343, %v3342
        %v3345 = vrot.slane %v3256, 3
        %v3346 = vsel %vm945, %v3345, %v3344
        %v3347 = vrot.slane %v3257, 2
        %v3348 = vsel %vm948, %v3347, %v3346
        %v3349 = vrot.slane %v3258, 1
        %v3350 = vsel %vm951, %v3349, %v3348
        %v3351 = vsel %vm933, %v1788, %v3259
        %v3352 = vrot.slane %v3260, 7
        %v3353 = vsel %vm933, %v3352, %v1709
        %v3354 = vrot.slane %v3261, 6
        %v3355 = vsel %vm936, %v3354, %v3353
        %v3356 = vrot.slane %v3262, 5
        %v3357 = vsel %vm939, %v3356, %v3355
        %v3358 = vrot.slane %v3263, 4
        %v3359 = vsel %vm942, %v3358, %v3357
        %v3360 = vrot.slane %v3264, 3
        %v3361 = vsel %vm945, %v3360, %v3359
        %v3362 = vrot.slane %v3265, 2
        %v3363 = vsel %vm948, %v3362, %v3361
        %v3364 = vrot.slane %v3266, 1
        %v3365 = vsel %vm951, %v3364, %v3363
        %v3366 = vsel %vm933, %v1788, %v3267
        %v3367 = vrot.slane %v3268, 7
        %v3368 = vsel %vm933, %v3367, %v1709
        %v3369 = vrot.slane %v3269, 6
        %v3370 = vsel %vm936, %v3369, %v3368
        %v3371 = vrot.slane %v3270, 5
        %v3372 = vsel %vm939, %v3371, %v3370
        %v3373 = vrot.slane %v3271, 4
        %v3374 = vsel %vm942, %v3373, %v3372
        %v3375 = vrot.slane %v3272, 3
        %v3376 = vsel %vm945, %v3375, %v3374
        %v3377 = vrot.slane %v3273, 2
        %v3378 = vsel %vm948, %v3377, %v3376
        %v3379 = vrot.slane %v3274, 1
        %v3380 = vsel %vm951, %v3379, %v3378
        %v3381 = vsel %vm933, %v1788, %v3275
        %v3382 = vrot.slane %v3276, 7
        %v3383 = vsel %vm933, %v3382, %v1709
        %v3384 = vrot.slane %v3277, 6
        %v3385 = vsel %vm936, %v3384, %v3383
        %v3386 = vrot.slane %v3278, 5
        %v3387 = vsel %vm939, %v3386, %v3385
        %v3388 = vrot.slane %v3279, 4
        %v3389 = vsel %vm942, %v3388, %v3387
        %v3390 = vrot.slane %v3280, 3
        %v3391 = vsel %vm945, %v3390, %v3389
        %v3392 = vrot.slane %v3281, 2
        %v3393 = vsel %vm948, %v3392, %v3391
        %v3394 = vrot.slane %v3282, 1
        %v3395 = vsel %vm951, %v3394, %v3393
        %v3396 = vsel %vm933, %v1788, %v3283
        %v3397 = vrot.slane %v3284, 7
        %v3398 = vsel %vm933, %v3397, %v1709
        %v3399 = vrot.slane %v3285, 6
        %v3400 = vsel %vm936, %v3399, %v3398
        %v3401 = vrot.slane %v3286, 5
        %v3402 = vsel %vm939, %v3401, %v3400
        %v3403 = vrot.slane %v3287, 4
        %v3404 = vsel %vm942, %v3403, %v3402
        %v3405 = vrot.slane %v3288, 3
        %v3406 = vsel %vm945, %v3405, %v3404
        %v3407 = vrot.slane %v3289, 2
        %v3408 = vsel %vm948, %v3407, %v3406
        %v3409 = vrot.slane %v3290, 1
        %v3410 = vsel %vm951, %v3409, %v3408
        %v3411 = vsel %vm933, %v1788, %v3291
        %v3412 = vpack.c.b16 %v3305, %v3305
        %v3413 = vpack.c.b16 %v3306, %v3306
        %v3414 = vpack.c.b16 %v3320, %v3320
        %v3415 = vpack.c.b16 %v3321, %v3321
        %v3416 = vpack.c.b16 %v3335, %v3335
        %v3417 = vpack.c.b16 %v3336, %v3336
        %v3418 = vpack.c.b16 %v3350, %v3350
        %v3419 = vpack.c.b16 %v3351, %v3351
        %v3420 = vpack.c.b16 %v3365, %v3365
        %v3421 = vpack.c.b16 %v3366, %v3366
        %v3422 = vpack.c.b16 %v3380, %v3380
        %v3423 = vpack.c.b16 %v3381, %v3381
        %v3424 = vpack.c.b16 %v3395, %v3395
        %v3425 = vpack.c.b16 %v3396, %v3396
        %v3427 = vshrl.u32 %v3412, 16
        %v3429 = vrot.slane %v3427, 4
        %v3430 = vshll.u32 %v3412, 16
        %v3432 = vrot.slane %v3430, 5
        %v3433 = vor.u32 %v3429, %v3432
        %v3434 = vrot.slane %v3433, 4
        %v3436 = vshll.u32 %v3413, 16
        %v3438 = vrot.slane %v3436, 5
        %v3439 = vsel %vm1914, %v3434, %v3438
        %v3441 = vshrl.u32 %v3414, 16
        %v3443 = vrot.slane %v3441, 4
        %v3444 = vshll.u32 %v3414, 16
        %v3446 = vrot.slane %v3444, 5
        %v3447 = vor.u32 %v3443, %v3446
        %v3448 = vrot.slane %v3447, 4
        %v3450 = vshll.u32 %v3415, 16
        %v3452 = vrot.slane %v3450, 5
        %v3453 = vsel %vm1914, %v3448, %v3452
        %v3455 = vshrl.u32 %v3416, 16
        %v3457 = vrot.slane %v3455, 4
        %v3458 = vshll.u32 %v3416, 16
        %v3460 = vrot.slane %v3458, 5
        %v3461 = vor.u32 %v3457, %v3460
        %v3462 = vrot.slane %v3461, 4
        %v3464 = vshll.u32 %v3417, 16
        %v3466 = vrot.slane %v3464, 5
        %v3467 = vsel %vm1914, %v3462, %v3466
        %v3469 = vshrl.u32 %v3418, 16
        %v3471 = vrot.slane %v3469, 4
        %v3472 = vshll.u32 %v3418, 16
        %v3474 = vrot.slane %v3472, 5
        %v3475 = vor.u32 %v3471, %v3474
        %v3476 = vrot.slane %v3475, 4
        %v3478 = vshll.u32 %v3419, 16
        %v3480 = vrot.slane %v3478, 5
        %v3481 = vsel %vm1914, %v3476, %v3480
        %v3483 = vshrl.u32 %v3420, 16
        %v3485 = vrot.slane %v3483, 4
        %v3486 = vshll.u32 %v3420, 16
        %v3488 = vrot.slane %v3486, 5
        %v3489 = vor.u32 %v3485, %v3488
        %v3490 = vrot.slane %v3489, 4
        %v3492 = vshll.u32 %v3421, 16
        %v3494 = vrot.slane %v3492, 5
        %v3495 = vsel %vm1914, %v3490, %v3494
        %v3497 = vshrl.u32 %v3422, 16
        %v3499 = vrot.slane %v3497, 4
        %v3500 = vshll.u32 %v3422, 16
        %v3502 = vrot.slane %v3500, 5
        %v3503 = vor.u32 %v3499, %v3502
        %v3504 = vrot.slane %v3503, 4
        %v3506 = vshll.u32 %v3423, 16
        %v3508 = vrot.slane %v3506, 5
        %v3509 = vsel %vm1914, %v3504, %v3508
        %v3511 = vshrl.u32 %v3424, 16
        %v3513 = vrot.slane %v3511, 4
        %v3514 = vshll.u32 %v3424, 16
        %v3516 = vrot.slane %v3514, 5
        %v3517 = vor.u32 %v3513, %v3516
        %v3518 = vrot.slane %v3517, 4
        %v3520 = vshll.u32 %v3425, 16
        %v3522 = vrot.slane %v3520, 5
        %v3523 = vsel %vm1914, %v3518, %v3522
        %v3524 = vrot.slane %v3412, 5
        %v3525 = vrot.slane %v3524, 4
        %v3526 = vrot.slane %v3413, 5
        %v3527 = vsel %vm2029, %v3525, %v3526
        %v3528 = vrot.slane %v3414, 5
        %v3529 = vrot.slane %v3528, 4
        %v3530 = vrot.slane %v3415, 5
        %v3531 = vsel %vm2029, %v3529, %v3530
        %v3532 = vrot.slane %v3416, 5
        %v3533 = vrot.slane %v3532, 4
        %v3534 = vrot.slane %v3417, 5
        %v3535 = vsel %vm2029, %v3533, %v3534
        %v3536 = vrot.slane %v3418, 5
        %v3537 = vrot.slane %v3536, 4
        %v3538 = vrot.slane %v3419, 5
        %v3539 = vsel %vm2029, %v3537, %v3538
        %v3540 = vrot.slane %v3420, 5
        %v3541 = vrot.slane %v3540, 4
        %v3542 = vrot.slane %v3421, 5
        %v3543 = vsel %vm2029, %v3541, %v3542
        %v3544 = vrot.slane %v3422, 5
        %v3545 = vrot.slane %v3544, 4
        %v3546 = vrot.slane %v3423, 5
        %v3547 = vsel %vm2029, %v3545, %v3546
        %v3548 = vrot.slane %v3424, 5
        %v3549 = vrot.slane %v3548, 4
        %v3550 = vrot.slane %v3425, 5
        %v3551 = vsel %vm2029, %v3549, %v3550
        %v3552 = vpack.c.b16 %v3410, %v3410
        %v3553 = vpack.c.b16 %v3411, %v3411
        %v3555 = vshrl.u32 %v3552, 16
        %v3557 = vrot.slane %v3555, 4
        %v3558 = vshll.u32 %v3552, 16
        %v3560 = vrot.slane %v3558, 5
        %v3561 = vor.u32 %v3557, %v3560
        %v3562 = vrot.slane %v3561, 4
        %v3564 = vshll.u32 %v3553, 16
        %v3566 = vrot.slane %v3564, 5
        %v3567 = vsel %vm1914, %v3562, %v3566
        %v3568 = vrot.slane %v3552, 5
        %v3569 = vrot.slane %v3568, 4
        %v3570 = vrot.slane %v3553, 5
        %v3571 = vsel %vm2029, %v3569, %v3570
        %v3572 = vpack.c.b16 %v3305, %v1709
        %v3573 = vpack.c.b16 %v3335, %v3320
        %v3574 = vpack.c.b16 %v3365, %v3350
        %v3575 = vpack.c.b16 %v3395, %v3380
        %v3576 = vunpack.c.l.b16 %v3439
        %v3577 = vunpack.c.l.b16 %v3453
        %v3578 = vunpack.c.l.b16 %v3467
        %v3579 = vunpack.c.l.b16 %v3481
        %v3580 = vunpack.c.l.b16 %v3495
        %v3581 = vunpack.c.l.b16 %v3509
        %v3582 = vunpack.c.l.b16 %v3523
        %v3583 = vpack.c.b16 %v3576, %v2086
        %v3584 = vpack.c.b16 %v3578, %v3577
        %v3585 = vpack.c.b16 %v3580, %v3579
        %v3586 = vpack.c.b16 %v3582, %v3581
        %3587 = vrot.lane.b32.xlu0 %v3583, 16
        %v3588 = vpop.permute.xlu0 %3587
        %3589 = vrot.lane.b32.xlu0 %v3584, 16
        %v3590 = vpop.permute.xlu0 %3589
        %3591 = vrot.lane.b32.xlu0 %v3585, 16
        %v3592 = vpop.permute.xlu0 %3591
        %3593 = vrot.lane.b32.xlu0 %v3586, 16
        %v3594 = vpop.permute.xlu0 %3593
        %v3595 = vunpack.c.l.b16 %v3527
        %v3596 = vunpack.c.l.b16 %v3531
        %v3597 = vunpack.c.l.b16 %v3535
        %v3598 = vunpack.c.l.b16 %v3539
        %v3599 = vunpack.c.l.b16 %v3543
        %v3600 = vunpack.c.l.b16 %v3547
        %v3601 = vunpack.c.l.b16 %v3551
        %v3602 = vpack.c.b16 %v3595, %v2106
        %v3603 = vpack.c.b16 %v3597, %v3596
        %v3604 = vpack.c.b16 %v3599, %v3598
        %v3605 = vpack.c.b16 %v3601, %v3600
        %3606 = vrot.lane.b32.xlu0 %v3602, 32
        %v3607 = vpop.permute.xlu0 %3606
        %3608 = vrot.lane.b32.xlu0 %v3603, 32
        %v3609 = vpop.permute.xlu0 %3608
        %3610 = vrot.lane.b32.xlu0 %v3604, 32
        %v3611 = vpop.permute.xlu0 %3610
        %3612 = vrot.lane.b32.xlu0 %v3605, 32
        %v3613 = vpop.permute.xlu0 %3612
        %v3614 = vpack.c.b16 %v3320, %v3305
        %v3615 = vpack.c.b16 %v3350, %v3335
        %v3616 = vpack.c.b16 %v3380, %v3365
        %v3617 = vpack.c.b16 %v3410, %v3395
        %3618 = vrot.lane.b32.xlu0 %v3614, 48
        %v3619 = vpop.permute.xlu0 %3618
        %3620 = vrot.lane.b32.xlu0 %v3615, 48
        %v3621 = vpop.permute.xlu0 %3620
        %3622 = vrot.lane.b32.xlu0 %v3616, 48
        %v3623 = vpop.permute.xlu0 %3622
        %3624 = vrot.lane.b32.xlu0 %v3617, 48
        %v3625 = vpop.permute.xlu0 %3624
        %v3626 = vunpack.c.l.b16 %v3567
        %v3627 = vpack.c.b16 %v3577, %v3576
        %v3628 = vpack.c.b16 %v3579, %v3578
        %v3629 = vpack.c.b16 %v3581, %v3580
        %v3630 = vpack.c.b16 %v3626, %v3582
        %3631 = vrot.lane.b32.xlu0 %v3627, 64
        %v3632 = vpop.permute.xlu0 %3631
        %3633 = vrot.lane.b32.xlu0 %v3628, 64
        %v3634 = vpop.permute.xlu0 %3633
        %3635 = vrot.lane.b32.xlu0 %v3629, 64
        %v3636 = vpop.permute.xlu0 %3635
        %3637 = vrot.lane.b32.xlu0 %v3630, 64
        %v3638 = vpop.permute.xlu0 %3637
        %v3639 = vunpack.c.l.b16 %v3571
        %v3640 = vpack.c.b16 %v3596, %v3595
        %v3641 = vpack.c.b16 %v3598, %v3597
        %v3642 = vpack.c.b16 %v3600, %v3599
        %v3643 = vpack.c.b16 %v3639, %v3601
        %3644 = vrot.lane.b32.xlu0 %v3640, 80
        %v3645 = vpop.permute.xlu0 %3644
        %3646 = vrot.lane.b32.xlu0 %v3641, 80
        %v3647 = vpop.permute.xlu0 %3646
        %3648 = vrot.lane.b32.xlu0 %v3642, 80
        %v3649 = vpop.permute.xlu0 %3648
        %3650 = vrot.lane.b32.xlu0 %v3643, 80
        %v3651 = vpop.permute.xlu0 %3650
        %v3652 = vpack.c.b16 %v1709, %v3410
        %3653 = vrot.lane.b32.xlu0 %v3573, 96
        %v3654 = vpop.permute.xlu0 %3653
        %3655 = vrot.lane.b32.xlu0 %v3574, 96
        %v3656 = vpop.permute.xlu0 %3655
        %3657 = vrot.lane.b32.xlu0 %v3575, 96
        %v3658 = vpop.permute.xlu0 %3657
        %3659 = vrot.lane.b32.xlu0 %v3652, 96
        %v3660 = vpop.permute.xlu0 %3659
        %v3661 = vpack.c.b16 %v2086, %v3626
        %3662 = vrot.lane.b32.xlu0 %v3584, 112
        %v3663 = vpop.permute.xlu0 %3662
        %3664 = vrot.lane.b32.xlu0 %v3585, 112
        %v3665 = vpop.permute.xlu0 %3664
        %3666 = vrot.lane.b32.xlu0 %v3586, 112
        %v3667 = vpop.permute.xlu0 %3666
        %3668 = vrot.lane.b32.xlu0 %v3661, 112
        %v3669 = vpop.permute.xlu0 %3668
        %v3670 = vpack.c.b16 %v2106, %v3639
        %v3673 = vsel %vm1099, %v3572, %v3588
        %v3676 = vsel %vm1099, %v3573, %v3590
        %v3679 = vsel %vm1099, %v3574, %v3592
        %v3682 = vsel %vm1099, %v3575, %v3594
        %v3684 = vsel %vm427, %v3673, %v3607
        %v3686 = vsel %vm427, %v3676, %v3609
        %v3688 = vsel %vm427, %v3679, %v3611
        %v3690 = vsel %vm427, %v3682, %v3613
        %vm3691 = vcmask 392192
        %v3693 = vsel %vm3691, %v3684, %v3619
        %v3695 = vsel %vm3691, %v3686, %v3621
        %v3697 = vsel %vm3691, %v3688, %v3623
        %v3699 = vsel %vm3691, %v3690, %v3625
        %v3701 = vsel %vm2187, %v3693, %v3632
        %v3703 = vsel %vm2187, %v3695, %v3634
        %v3705 = vsel %vm2187, %v3697, %v3636
        %v3707 = vsel %vm2187, %v3699, %v3638
        %vm3708 = vcmask 654336
        %v3710 = vsel %vm3708, %v3701, %v3645
        %v3712 = vsel %vm3708, %v3703, %v3647
        %v3714 = vsel %vm3708, %v3705, %v3649
        %v3716 = vsel %vm3708, %v3707, %v3651
        %v3718 = vsel %vm2196, %v3710, %v3654
        %v3720 = vsel %vm2196, %v3712, %v3656
        %v3722 = vsel %vm2196, %v3714, %v3658
        %v3724 = vsel %vm2196, %v3716, %v3660
        %vm3725 = vcmask 916480
        %v3727 = vsel %vm3725, %v3718, %v3663
        %v3730 = vsel %vm3725, %v3720, %v3665
        %v3733 = vsel %vm3725, %v3722, %v3667
        %v3736 = vsel %vm3725, %v3724, %v3669
        %v3738 = vld [vmem:[%s7] sm:$0xf]
        %v3739 = vld [vmem:[%s7 + $0x4] sm:$0xf]
        %v3740 = vld [vmem:[%s7 + $0x8] sm:$0xf]
        %v3741 = vld [vmem:[%s7 + $0xc] sm:$0xf]
        %v3742 = vld [vmem:[%s7 + $0x10] sm:$0xf]
        %v3743 = vld [vmem:[%s7 + $0x14] sm:$0xf]
        %v3744 = vld [vmem:[%s7 + $0x18] sm:$0xf]
        %v3745 = vld [vmem:[%s7 + $0x1c] sm:$0xf]
        %v3746 = vld [vmem:[%s7 + $0x20] sm:$0xf]
        %v3747 = vld [vmem:[%s7 + $0x24] sm:$0xf]
        %v3748 = vld [vmem:[%s7 + $0x28] sm:$0xf]
        %v3749 = vld [vmem:[%s7 + $0x2c] sm:$0xf]
        %v3750 = vld [vmem:[%s7 + $0x30] sm:$0xf]
        %v3751 = vld [vmem:[%s7 + $0x34] sm:$0xf]
        %v3752 = vld [vmem:[%s7 + $0x38] sm:$0xf]
        %v3753 = vld [vmem:[%s7 + $0x3c] sm:$0xf]
        %v3754 = vld [vmem:[%s7 + $0x40] sm:$0xf]
        %v3755 = vld [vmem:[%s7 + $0x44] sm:$0xf]
        %v3774 = vunpack.c.l.b16 %v3738
        %v3775 = vunpack.c.l.b16 %v3739
        %v3776 = vunpack.c.l.b16 %v3740
        %v3777 = vunpack.c.l.b16 %v3741
        %v3778 = vunpack.c.l.b16 %v3742
        %v3779 = vunpack.c.l.b16 %v3743
        %v3780 = vunpack.c.l.b16 %v3744
        %v3781 = vunpack.c.l.b16 %v3745
        %v3782 = vunpack.c.l.b16 %v3746
        %v3783 = vunpack.c.l.b16 %v3747
        %v3784 = vunpack.c.l.b16 %v3748
        %v3785 = vunpack.c.l.b16 %v3749
        %v3786 = vunpack.c.l.b16 %v3750
        %v3787 = vunpack.c.l.b16 %v3751
        %v3788 = vunpack.c.l.b16 %v3752
        %v3789 = vunpack.c.l.b16 %v3753
        %v3790 = vunpack.c.l.b16 %v3754
        %v3791 = vunpack.c.l.b16 %v3755
        %v3792 = vpack.c.b16 %v3775, %v3774
        %v3793 = vpack.c.b16 %v3777, %v3776
        %v3794 = vpack.c.b16 %v3779, %v3778
        %v3795 = vpack.c.b16 %v3781, %v3780
        %v3796 = vpack.c.b16 %v3783, %v3782
        %v3797 = vpack.c.b16 %v3785, %v3784
        %v3798 = vpack.c.b16 %v3787, %v3786
        %v3799 = vpack.c.b16 %v3789, %v3788
        %v3800 = vpack.c.b16 %v3791, %v3790
        %v3811 = vsel %vm1099, %v3603, 0
        %v3814 = vsel %vm1099, %v3604, 0
        %v3817 = vsel %vm1099, %v3605, 0
        %v3820 = vsel %vm1099, %v3670, 0
        %3822 = vmatprep.subr.bf16.mxu0 0
        %3823 = vmatpush1.bf16.msra.mxu0 %v3799
        %3824 = vmatprep.subr.bf16.mxu0 0
        %3825 = vmatpush1.bf16.msra.mxu0 %v3798
        %3826 = vmatprep.subr.bf16.mxu0 0
        %3827 = vmatpush1.bf16.msra.mxu0 %v3797
        %3828 = vmatprep.subr.bf16.mxu0 0
        %3829 = vmatpush1.bf16.msra.mxu0 %v3796
        %3830 = vmatprep.subr.bf16.mxu0 0
        %3831 = vmatpush1.bf16.msra.mxu0 %v3795
        %3832 = vmatprep.subr.bf16.mxu0 0
        %3833 = vmatpush1.bf16.msra.mxu0 %v3794
        %3834 = vmatprep.subr.bf16.mxu0 0
        %3835 = vmatpush1.bf16.msra.mxu0 %v3793
        %3836 = vmatprep.subr.bf16.mxu0 0
        %3837 = vmatpush1.bf16.msra.mxu0 %v3792
        %3838 = vmatprep.subr.bf16.mxu0 0
        %3839 = vmatpush2.bf16.msra.mxu0 0
        %3840 = vmatprep.subr.bf16.mxu0 0
        %3841 = vmatpush2.bf16.msra.mxu0 0
        %3842 = vmatprep.subr.bf16.mxu0 0
        %3843 = vmatpush2.bf16.msra.mxu0 0
        %3844 = vmatprep.subr.bf16.mxu0 0
        %3845 = vmatpush2.bf16.msra.mxu0 0
        %3846 = vmatprep.subr.bf16.mxu0 0
        %3847 = vmatpush2.bf16.msra.mxu0 0
        %3848 = vmatprep.subr.bf16.mxu0 0
        %3849 = vmatpush2.bf16.msra.mxu0 0
        %3850 = vmatprep.subr.bf16.mxu0 0
        %3851 = vmatpush2.bf16.msra.mxu0 0
        %3852 = vmatprep.subr.bf16.mxu0 0
        %3853 = vmatpush2.bf16.msra.mxu0 %v3800
        %3854 = vmatprep.mubr.bf16.mxu0 %v3811
        %3855 = vmatmul.mubr.bf16.gmra.mxu0 %v3727
        %v3856 = vpop.f32.mrf.mxu0
        %v3857 = vadd.f32 0.0, %v3856
        %v3858 = vpop.f32.mrf.mxu0
        %v3859 = vpop.f32.mrf.mxu0
        %v3860 = vadd.f32 0.0, %v3859
        %v3861 = vpop.f32.mrf.mxu0
        %3862 = vmatprep.mubr.bf16.mxu0 %v3814
        %3863 = vmatmul.mubr.bf16.gmra.mxu0 %v3730
        %v3864 = vpop.f32.mrf.mxu0
        %v3865 = vadd.f32 0.0, %v3864
        %v3866 = vpop.f32.mrf.mxu0
        %v3867 = vpop.f32.mrf.mxu0
        %v3868 = vadd.f32 0.0, %v3867
        %v3869 = vpop.f32.mrf.mxu0
        %3870 = vmatprep.mubr.bf16.mxu0 %v3817
        %3871 = vmatmul.mubr.bf16.gmra.mxu0 %v3733
        %v3872 = vpop.f32.mrf.mxu0
        %v3873 = vadd.f32 0.0, %v3872
        %v3874 = vpop.f32.mrf.mxu0
        %v3875 = vpop.f32.mrf.mxu0
        %v3876 = vadd.f32 0.0, %v3875
        %v3877 = vpop.f32.mrf.mxu0
        %3878 = vmatprep.mubr.bf16.mxu0 %v3820
        %3879 = vmatmul.mubr.bf16.gmra.mxu0 %v3736
        %v3880 = vpop.f32.mrf.mxu0
        %v3881 = vadd.f32 0.0, %v3880
        %v3882 = vpop.f32.mrf.mxu0
        %v3883 = vpop.f32.mrf.mxu0
        %v3884 = vadd.f32 0.0, %v3883
        %v3885 = vpop.f32.mrf.mxu0
        %3886 = vdwg.mxu0
        %v3887 = vsel %vm1099, %v3857, 0.0
        %v3888 = vsel %vm1099, %v3860, 0.0
        %v3889 = vadd.f32 %v3887, %v3888
        %v3890 = vsel %vm1099, %v3865, 0.0
        %v3891 = vadd.f32 %v3889, %v3890
        %v3892 = vsel %vm1099, %v3868, 0.0
        %v3893 = vadd.f32 %v3891, %v3892
        %v3894 = vsel %vm1099, %v3873, 0.0
        %v3895 = vadd.f32 %v3893, %v3894
        %v3896 = vsel %vm1099, %v3876, 0.0
        %v3897 = vadd.f32 %v3895, %v3896
        %v3898 = vsel %vm1099, %v3881, 0.0
        %v3899 = vadd.f32 %v3897, %v3898
        %v3900 = vsel %vm1099, %v3884, 0.0
        %v3901 = vadd.f32 %v3899, %v3900
        %v3902 = vrot.slane %v3901, 4
        %v3903 = vadd.f32 %v3901, %v3902
        %v3904 = vrot.slane %v3903, 2
        %v3905 = vadd.f32 %v3903, %v3904
        %v3906 = vrot.slane %v3905, 1
        %v3907 = vadd.f32 %v3905, %v3906
        %v3908 = vmul.f32 %v3907, %v2548
        %v3909 = vmul.f32 %v3857, %v3857
        %v3910 = vmul.f32 %v3860, %v3860
        %v3911 = vmul.f32 %v3865, %v3865
        %v3912 = vmul.f32 %v3868, %v3868
        %v3913 = vmul.f32 %v3873, %v3873
        %v3914 = vmul.f32 %v3876, %v3876
        %v3915 = vmul.f32 %v3881, %v3881
        %v3916 = vmul.f32 %v3884, %v3884
        %v3917 = vsel %vm1099, %v3909, 0.0
        %v3918 = vsel %vm1099, %v3910, 0.0
        %v3919 = vadd.f32 %v3917, %v3918
        %v3920 = vsel %vm1099, %v3911, 0.0
        %v3921 = vadd.f32 %v3919, %v3920
        %v3922 = vsel %vm1099, %v3912, 0.0
        %v3923 = vadd.f32 %v3921, %v3922
        %v3924 = vsel %vm1099, %v3913, 0.0
        %v3925 = vadd.f32 %v3923, %v3924
        %v3926 = vsel %vm1099, %v3914, 0.0
        %v3927 = vadd.f32 %v3925, %v3926
        %v3928 = vsel %vm1099, %v3915, 0.0
        %v3929 = vadd.f32 %v3927, %v3928
        %v3930 = vsel %vm1099, %v3916, 0.0
        %v3931 = vadd.f32 %v3929, %v3930
        %v3932 = vrot.slane %v3931, 4
        %v3933 = vadd.f32 %v3931, %v3932
        %v3934 = vrot.slane %v3933, 2
        %v3935 = vadd.f32 %v3933, %v3934
        %v3936 = vrot.slane %v3935, 1
        %v3937 = vadd.f32 %v3935, %v3936
        %v3938 = vmul.f32 %v3937, %v2548
        %v3939 = vmul.f32 %v3908, %v3908
        %v3940 = vsub.f32 %v3938, %v3939
        %v3941 = vmax.f32 %v3940, 0.0
        %v3942 = vadd.f32 %v3941, 1e-05
        %v3943 = vrsqrt.pop %v3942
        %v3944 = vld [vmem:[%s8] sm:$0x1]
        %v3945 = vmul.f32 %v3943, %v3944
        %v3946 = vld [vmem:[%s9] sm:$0x1]
        %v3947 = vmul.f32 %v3908, %v3945
        %v3948 = vsub.f32 %v3946, %v3947
        %v3949 = vlaneseq
        %v3950 = vshrl.u32 %v3949, 7
        %v3951 = vsub.s32 0, %v3950
        %v3952 = vrot.slane %v3945, %v3951
        %v3953 = vmul.f32 %v3857, %v3952
        %v3954 = vmul.f32 %v3860, %v3952
        %v3955 = vmul.f32 %v3865, %v3952
        %v3956 = vmul.f32 %v3868, %v3952
        %v3957 = vmul.f32 %v3873, %v3952
        %v3958 = vmul.f32 %v3876, %v3952
        %v3959 = vmul.f32 %v3881, %v3952
        %v3960 = vmul.f32 %v3884, %v3952
        %v3962 = vlaneseq
        %v3963 = vshrl.u32 %v3962, 7
        %v3964 = vsub.s32 0, %v3963
        %v3965 = vrot.slane %v3948, %v3964
        %v3967 = vadd.f32 %v3953, %v3965
        %v3968 = vadd.f32 %v3954, %v3965
        %v3969 = vadd.f32 %v3955, %v3965
        %v3970 = vadd.f32 %v3956, %v3965
        %v3971 = vadd.f32 %v3957, %v3965
        %v3972 = vadd.f32 %v3958, %v3965
        %v3973 = vadd.f32 %v3959, %v3965
        %v3974 = vadd.f32 %v3960, %v3965
        %vm3975 = vcmp.gt.f32.partialorder %v3967, 0.0
        %vm3976 = vcmp.gt.f32.partialorder %v3968, 0.0
        %vm3977 = vcmp.gt.f32.partialorder %v3969, 0.0
        %vm3978 = vcmp.gt.f32.partialorder %v3970, 0.0
        %vm3979 = vcmp.gt.f32.partialorder %v3971, 0.0
        %vm3980 = vcmp.gt.f32.partialorder %v3972, 0.0
        %vm3981 = vcmp.gt.f32.partialorder %v3973, 0.0
        %vm3982 = vcmp.gt.f32.partialorder %v3974, 0.0
        %v3983 = vmul.f32 %v3967, 0.01
        %v3984 = vmul.f32 %v3968, 0.01
        %v3985 = vmul.f32 %v3969, 0.01
        %v3986 = vmul.f32 %v3970, 0.01
        %v3987 = vmul.f32 %v3971, 0.01
        %v3988 = vmul.f32 %v3972, 0.01
        %v3989 = vmul.f32 %v3973, 0.01
        %v3990 = vmul.f32 %v3974, 0.01
        %v3991 = vsel %vm3975, %v3967, %v3983
        %v3992 = vsel %vm3976, %v3968, %v3984
        %v3993 = vsel %vm3977, %v3969, %v3985
        %v3994 = vsel %vm3978, %v3970, %v3986
        %v3995 = vsel %vm3979, %v3971, %v3987
        %v3996 = vsel %vm3980, %v3972, %v3988
        %v3997 = vsel %vm3981, %v3973, %v3989
        %v3998 = vsel %vm3982, %v3974, %v3990
        %v3999 = vpack.c.bf16 %v3992, %v3991
        %v4000 = vpack.c.bf16 %v3994, %v3993
        %v4001 = vpack.c.bf16 %v3996, %v3995
        %v4002 = vpack.c.bf16 %v3998, %v3997
        %v4007 = vunpack.c.l.b16 %v3999
        %v4008 = vunpack.c.h.b16 %v3999
        %v4009 = vunpack.c.l.b16 %v4000
        %v4010 = vunpack.c.h.b16 %v4000
        %v4011 = vunpack.c.l.b16 %v4001
        %v4012 = vunpack.c.h.b16 %v4001
        %v4013 = vunpack.c.l.b16 %v4002
        %v4014 = vunpack.c.h.b16 %v4002
        %v4015 = vpack.c.b16 %v4007, %v4007
        %v4016 = vpack.c.b16 %v4008, %v4008
        %v4017 = vpack.c.b16 %v4009, %v4009
        %v4018 = vpack.c.b16 %v4010, %v4010
        %v4019 = vpack.c.b16 %v4011, %v4011
        %v4020 = vpack.c.b16 %v4012, %v4012
        %v4021 = vpack.c.b16 %v4013, %v4013
        %v4022 = vpack.c.b16 %v4014, %v4014
        %vm4031 = vcmask 125952
        %4032 = vst.msk [vmem:[%s367] sm:$0xf] %vm4031, %v4015
        %4033 = vst.msk [vmem:[%s367 + $0x4] sm:$0xf] %vm4031, %v4016
        %4034 = vst.msk [vmem:[%s367 + $0x8] sm:$0xf] %vm4031, %v4017
        %4035 = vst.msk [vmem:[%s367 + $0xc] sm:$0xf] %vm4031, %v4018
        %4036 = vst.msk [vmem:[%s367 + $0x10] sm:$0xf] %vm4031, %v4019
        %4037 = vst.msk [vmem:[%s367 + $0x14] sm:$0xf] %vm4031, %v4020
        %4038 = vst.msk [vmem:[%s367 + $0x18] sm:$0xf] %vm4031, %v4021
        %4039 = vst.msk [vmem:[%s367 + $0x1c] sm:$0xf] %vm4031, %v4022
        %s4040 = sand.u32 %s252, 1
        %s4041 = scalar_lea.sflag [#allocation3], %s4040
        %s4042 = sand.u32 %s252, 1
        %s4043 = smul.addr %s4042, 32
        %s4044 = scalar_lea.vmem [#allocation2], %s4043
        // Predicated region
        $region61: #{tpu_custom_call.1} parent=59 // pred_check
          %p4045 = pneg %p262
        $region62: #{tpu_custom_call.1} parent=59 // pred_check_branch
          %4047 = sbr.rel (%p4045) target = $region64
        $region63: #{tpu_custom_call.1} parent=59 // pred_region
          %s4049 = ssub.s32 512, 512
          %4050 = vsyncadd %s4041, %s4049
          %s4051 = smul.addr %s24, 8
          %s4052 = smul.addr %s4051, 64
          %s4053 = scalar_lea.hbm %s10, %s4052
          %s4054 = sshll.u32 %s4044, 4
          %s4055 = int_to_ptr.vmem [resolvable:$true] %s4054
          %4060 = dma.vmem_to_hbm [thread:$0]  %s4055, 512, %s4053, %s4041, 64, 64, 4
        $region64: #{tpu_custom_call.1} parent=59 // pred_fallthru
          _
      $region60: #{tpu_custom_call.1} parent=5 // pred_fallthru
        _
      %p4061 = scmp.le.s32.totalorder 2, %s19
      // Predicated region
      $region65: #{tpu_custom_call.1} parent=5 // pred_check
        %p4062 = pneg %p4061
      $region66: #{tpu_custom_call.1} parent=5 // pred_check_branch
        %4064 = sbr.rel (%p4062) target = $region68
      $region67: #{tpu_custom_call.1} parent=5 // pred_region
        %s4065 = ssub.s32 %s19, 2
        // Predicated region
        $region69: #{tpu_custom_call.1} parent=67 // pred_check
          %p4066 = pneg %p268
        $region70: #{tpu_custom_call.1} parent=67 // pred_check_branch
          %4068 = sbr.rel (%p4066) target = $region72
        $region71: #{tpu_custom_call.1} parent=67 // pred_region
          %s4069 = sand.u32 %s253, 1
          %s4070 = scalar_lea.sflag [#allocation3], %s4069
          %s4071 = sand.u32 %s253, 1
          %s4072 = smul.addr %s4071, 32
          %s4073 = scalar_lea.vmem [#allocation2], %s4072
          %4074 = dma.done %s4070, 512
        $region72: #{tpu_custom_call.1} parent=67 // pred_fallthru
          _
      $region68: #{tpu_custom_call.1} parent=5 // pred_fallthru
        _
    $region6: #{tpu_custom_call.1} parent=1 // loop_footer
      %s23 = sadd.s32 1, %s19
    $region7: #{tpu_custom_call.1} parent=1 // loop_footer_branch
      %18 = sbr.rel target = $region3
    $region8: #{tpu_custom_call.1} parent=1 // loop_exit
      _
    %4075 = vsyncpa [#allocation3], 1
    %s4076 = scalar_lea.sflag [#allocation3], 1
    %4077 = vsyncpa %s4076, 1

</llo_original>
